<compile_context>
chip_gen: v6e
topology: v6e:2x2x1
jax: 0.10.0
libtpu: 0.0.40
codegen_flags: <defaults>
</compile_context>

<pallas_src>
import jax
import jax.numpy as jnp
from jax.experimental import pallas as pl
from jax.experimental.pallas import tpu as pltpu


# ----------------------------------------------------------------------------
# Fused kernel: conv0 (1x1 conv == matmul, BN scale folded) + shift + ReLU
#               -> max/mean pool over points
#               -> Linear(2048->512, BN scale folded) + shift + ReLU
#               -> Linear(512->cls, padded to 128 lanes)
# Whole batch in one grid step.
# ----------------------------------------------------------------------------
def fused_head_kernel(x_ref, w0_ref, sh0_ref, w1m_ref, w1a_ref, sh1_ref,
                      w2_ref, b2_ref, o_ref):
    B, N, Cin = x_ref.shape

    # conv0: one MXU matmul over the whole batch (bf16 operands, f32 acc).
    xb = x_ref[...].reshape(B * N, Cin)                               # bf16
    y = jnp.dot(xb, w0_ref[...], preferred_element_type=jnp.float32)  # (B*N, 1024) f32
    y = jnp.maximum(y + sh0_ref[...], 0.0)                            # folded-BN shift + ReLU

    # adaptive max / avg pool over the point axis, per batch element
    # (static unroll over B; slices are tile-aligned since N % 8 == 0).
    maxs, avgs = [], []
    for b in range(B):
        yb = y[b * N:(b + 1) * N]
        maxs.append(jnp.max(yb, axis=0, keepdims=True))
        avgs.append(jnp.mean(yb, axis=0, keepdims=True))
    x_max = jnp.concatenate(maxs, axis=0).astype(jnp.bfloat16)        # (B, 1024)
    x_avg = jnp.concatenate(avgs, axis=0).astype(jnp.bfloat16)        # (B, 1024)

    # conv1 + bn1 + ReLU:  cat([max, avg]) @ W1  ==  max @ W1[:1024] + avg @ W1[1024:]
    h = (jnp.dot(x_max, w1m_ref[...], preferred_element_type=jnp.float32)
         + jnp.dot(x_avg, w1a_ref[...], preferred_element_type=jnp.float32))
    h = jnp.maximum(h + sh1_ref[...], 0.0)                            # (B, 512) f32
    # dp1: nn.Dropout(p=0.5) -> identity at inference time.

    # conv2: Linear(512 -> cls_dim), lane-padded output (unmasked stores).
    o_ref[...] = (jnp.dot(h.astype(jnp.bfloat16), w2_ref[...],
                          preferred_element_type=jnp.float32) + b2_ref[...])


def curvenet_head_fused(x_bnc_bf16, p):
    B, N, Cin = x_bnc_bf16.shape
    Cout = p["w0s"].shape[1]
    H = p["w1m"].shape[1]
    CP = p["w2p"].shape[1]
    return pl.pallas_call(
        fused_head_kernel,
        out_shape=jax.ShapeDtypeStruct((B, CP), jnp.float32),
        grid_spec=pltpu.PrefetchScalarGridSpec(
            num_scalar_prefetch=0,
            grid=(1,),
            in_specs=[
                pl.BlockSpec((B, N, Cin), lambda i: (0, 0, 0)),   # activations (bf16)
                pl.BlockSpec((Cin, Cout), lambda i: (0, 0)),      # w0 * bn0_scale (bf16)
                pl.BlockSpec((1, Cout), lambda i: (0, 0)),        # bn0 shift (f32)
                pl.BlockSpec((Cout, H), lambda i: (0, 0)),        # w1[:1024] * bn1_scale (bf16)
                pl.BlockSpec((Cout, H), lambda i: (0, 0)),        # w1[1024:] * bn1_scale (bf16)
                pl.BlockSpec((1, H), lambda i: (0, 0)),           # bn1 shift (f32)
                pl.BlockSpec((H, CP), lambda i: (0, 0)),          # w2 padded (bf16)
                pl.BlockSpec((1, CP), lambda i: (0, 0)),          # b2 padded (f32)
            ],
            out_specs=pl.BlockSpec((B, CP), lambda i: (0, 0)),
        ),
        compiler_params=pltpu.CompilerParams(
            dimension_semantics=("arbitrary",)),
    )(x_bnc_bf16, p["w0s"], p["sh0"], p["w1m"], p["w1a"], p["sh1"],
      p["w2p"], p["b2p"])


def curvenet_head_forward(l4_points_ncw, p, cls_dim):
    """l4_points_ncw: [B, 512, N]  (PyTorch NCW, output of self.cic42)."""
    # layout: NCW -> NWC so channels sit on the 128-lane axis; fuse the bf16
    # cast into the same op (halves activation DMA bytes into the kernel).
    x_bnc = jnp.transpose(l4_points_ncw, (0, 2, 1)).astype(jnp.bfloat16)   # [B, N, 512]
    out_padded = curvenet_head_fused(x_bnc, p)                             # [B, 128] f32
    return out_padded[:, :cls_dim]                                         # [B, cls_dim]


# ----------------------------------------------------------------------------
# Parameter construction (deterministic, synthetic) + host-side weight prep.
# ----------------------------------------------------------------------------
def fold_bn(gamma, beta, running_mean, running_var, eps=1e-5):
    scale = gamma / jnp.sqrt(running_var + eps)
    shift = beta - running_mean * scale
    return scale, shift


def make_params(key, cls_dim=40):
    keys = jax.random.split(key, 12)
    # NOTE: real PyTorch Conv1d/Linear checkpoints store (out, in) weights and
    # must be transposed to this (in, out) layout when loading.
    w0 = jax.random.normal(keys[0], (512, 1024), jnp.float32) * 0.02   # conv0 (no bias)
    bn0_g = 1.0 + 0.1 * jax.random.normal(keys[1], (1024,), jnp.float32)
    bn0_b = 0.1 * jax.random.normal(keys[2], (1024,), jnp.float32)
    bn0_m = 0.1 * jax.random.normal(keys[3], (1024,), jnp.float32)
    bn0_v = 0.5 + jax.random.uniform(keys[4], (1024,), jnp.float32)
    w1 = jax.random.normal(keys[5], (2048, 512), jnp.float32) * 0.02   # conv1 (no bias)
    bn1_g = 1.0 + 0.1 * jax.random.normal(keys[6], (512,), jnp.float32)
    bn1_b = 0.1 * jax.random.normal(keys[7], (512,), jnp.float32)
    bn1_m = 0.1 * jax.random.normal(keys[8], (512,), jnp.float32)
    bn1_v = 0.5 + jax.random.uniform(keys[9], (512,), jnp.float32)
    w2 = jax.random.normal(keys[10], (512, cls_dim), jnp.float32) * 0.02   # conv2
    b2 = 0.01 * jax.random.normal(keys[11], (cls_dim,), jnp.float32)
    return dict(w0=w0, bn0_g=bn0_g, bn0_b=bn0_b, bn0_m=bn0_m, bn0_v=bn0_v,
                w1=w1, bn1_g=bn1_g, bn1_b=bn1_b, bn1_m=bn1_m, bn1_v=bn1_v,
                w2=w2, b2=b2)


def prep_params(p, cls_dim, lane_pad=128):
    """Fold BN scales into weight columns (f32), split w1, pad w2, cast to bf16."""
    s0, sh0 = fold_bn(p["bn0_g"], p["bn0_b"], p["bn0_m"], p["bn0_v"])
    s1, sh1 = fold_bn(p["bn1_g"], p["bn1_b"], p["bn1_m"], p["bn1_v"])
    w0s = (p["w0"] * s0[None, :]).astype(jnp.bfloat16)
    w1s = p["w1"] * s1[None, :]
    K0 = p["w0"].shape[1]                       # 1024 (max-pool half of the concat)
    w1m = w1s[:K0].astype(jnp.bfloat16)
    w1a = w1s[K0:].astype(jnp.bfloat16)
    H = p["w2"].shape[0]
    CP = ((cls_dim + lane_pad - 1) // lane_pad) * lane_pad
    w2p = jnp.zeros((H, CP), jnp.float32).at[:, :cls_dim].set(p["w2"]).astype(jnp.bfloat16)
    b2p = jnp.zeros((1, CP), jnp.float32).at[:, :cls_dim].set(p["b2"])
    return dict(w0s=w0s, sh0=sh0[None, :].astype(jnp.float32),
                w1m=w1m, w1a=w1a, sh1=sh1[None, :].astype(jnp.float32),
                w2p=w2p, b2p=b2p)


# ----------------------------------------------------------------------------
# Pure-JAX reference mirroring the exact kernel math (same folded/cast params).
# ----------------------------------------------------------------------------
def reference_forward(l4_points_ncw, p, cls_dim):
    x = jnp.transpose(l4_points_ncw, (0, 2, 1)).astype(jnp.bfloat16)       # [B, N, 512]
    y = jnp.einsum("bnc,cd->bnd", x, p["w0s"],
                   preferred_element_type=jnp.float32)
    y = jnp.maximum(y + p["sh0"], 0.0)                                     # [B, N, 1024]
    x_max = jnp.max(y, axis=1).astype(jnp.bfloat16)                        # [B, 1024]
    x_avg = jnp.mean(y, axis=1).astype(jnp.bfloat16)                       # [B, 1024]
    h = (jnp.dot(x_max, p["w1m"], preferred_element_type=jnp.float32)
         + jnp.dot(x_avg, p["w1a"], preferred_element_type=jnp.float32))
    h = jnp.maximum(h + p["sh1"], 0.0)                                     # [B, 512]
    o = jnp.dot(h.astype(jnp.bfloat16), p["w2p"],
                preferred_element_type=jnp.float32) + p["b2p"]             # [B, 128]
    return o[:, :cls_dim]


if __name__ == "__main__":
    key = jax.random.PRNGKey(0)
    k_in, k_par = jax.random.split(key)

    B, C_IN, NPTS, CLS = 2, 512, 64, 40   # l4_points: cic42 output (npoint=64, 512 ch)
    l4_points = jax.random.normal(k_in, (B, C_IN, NPTS), jnp.float32)
    raw = make_params(k_par, cls_dim=CLS)
    params = prep_params(raw, cls_dim=CLS)

    fwd = jax.jit(lambda x: curvenet_head_forward(x, params, CLS))
    out = jax.block_until_ready(fwd(l4_points))

    ref = jax.block_until_ready(reference_forward(l4_points, params, CLS))
    assert out.shape == (B, CLS), out.shape
    assert jnp.allclose(out, ref, atol=3e-3, rtol=2e-2), \
        float(jnp.max(jnp.abs(out - ref)))

    print("KERNEL_OK")
</pallas_src>

<mosaic_0001>
module attributes {stable_mosaic.version = 11 : i64} {
  func.func @fused_head_kernel(%arg0: i32, %arg1: memref<2x64x512xbf16, #tpu.memory_space<vmem>>, %arg2: memref<512x1024xbf16, #tpu.memory_space<vmem>>, %arg3: memref<1x1024xf32, #tpu.memory_space<vmem>>, %arg4: memref<1024x512xbf16, #tpu.memory_space<vmem>>, %arg5: memref<1024x512xbf16, #tpu.memory_space<vmem>>, %arg6: memref<1x512xf32, #tpu.memory_space<vmem>>, %arg7: memref<512x128xbf16, #tpu.memory_space<vmem>>, %arg8: memref<1x128xf32, #tpu.memory_space<vmem>>, %arg9: memref<2x128xf32, #tpu.memory_space<vmem>>) attributes {dimension_semantics = [#tpu.dimension_semantics<arbitrary>], iteration_bounds = array<i64: 1>, scalar_prefetch = 0 : i64, scratch_operands = 0 : i64, tpu.core_type = #tpu.core_type<tc>, window_params = [{pipeline_mode = #tpu.pipeline_mode<synchronous>, transform_indices = @transform_0, window_bounds = array<i64: 2, 64, 512>}, {pipeline_mode = #tpu.pipeline_mode<synchronous>, transform_indices = @transform_1, window_bounds = array<i64: 512, 1024>}, {pipeline_mode = #tpu.pipeline_mode<synchronous>, transform_indices = @transform_2, window_bounds = array<i64: 1, 1024>}, {pipeline_mode = #tpu.pipeline_mode<synchronous>, transform_indices = @transform_3, window_bounds = array<i64: 1024, 512>}, {pipeline_mode = #tpu.pipeline_mode<synchronous>, transform_indices = @transform_4, window_bounds = array<i64: 1024, 512>}, {pipeline_mode = #tpu.pipeline_mode<synchronous>, transform_indices = @transform_5, window_bounds = array<i64: 1, 512>}, {pipeline_mode = #tpu.pipeline_mode<synchronous>, transform_indices = @transform_6, window_bounds = array<i64: 512, 128>}, {pipeline_mode = #tpu.pipeline_mode<synchronous>, transform_indices = @transform_7, window_bounds = array<i64: 1, 128>}, {pipeline_mode = #tpu.pipeline_mode<synchronous>, transform_indices = @transform_8, window_bounds = array<i64: 2, 128>}]} {
    %c0 = arith.constant 0 : index
    %c0_0 = arith.constant 0 : index
    %c0_1 = arith.constant 0 : index
    %0 = vector.load %arg1[%c0, %c0_0, %c0_1] : memref<2x64x512xbf16, #tpu.memory_space<vmem>>, vector<2x64x512xbf16>
    %1 = vector.shape_cast %0 : vector<2x64x512xbf16> to vector<128x512xbf16>
    %c0_2 = arith.constant 0 : index
    %c0_3 = arith.constant 0 : index
    %2 = vector.load %arg2[%c0_2, %c0_3] : memref<512x1024xbf16, #tpu.memory_space<vmem>>, vector<512x1024xbf16>
    %cst = arith.constant dense<0.000000e+00> : vector<128x1024xf32>
    %3 = tpu.matmul %1, %2, %cst {dimension_numbers = #tpu.dot_dimension_numbers<[1], [0], [0], [1], [0, 0, 1, 1], [], []>} : vector<128x512xbf16>, vector<512x1024xbf16>, vector<128x1024xf32> -> vector<128x1024xf32>
    %c0_4 = arith.constant 0 : index
    %c0_5 = arith.constant 0 : index
    %4 = vector.load %arg3[%c0_4, %c0_5] : memref<1x1024xf32, #tpu.memory_space<vmem>>, vector<1x1024xf32>
    %5 = vector.broadcast %4 : vector<1x1024xf32> to vector<128x1024xf32>
    %6 = arith.addf %3, %5 : vector<128x1024xf32>
    %cst_6 = arith.constant 0.000000e+00 : f32
    %7 = vector.broadcast %cst_6 : f32 to vector<128x1024xf32>
    %8 = arith.maximumf %6, %7 : vector<128x1024xf32>
    %9 = vector.extract_strided_slice %8 {offsets = [0, 0], sizes = [64, 1024], strides = [1, 1]} : vector<128x1024xf32> to vector<64x1024xf32>
    %cst_7 = arith.constant dense<0xFF800000> : vector<1024xf32>
    %10 = vector.multi_reduction <maximumf>, %9, %cst_7 [0] : vector<64x1024xf32> to vector<1024xf32>
    %11 = vector.shape_cast %10 : vector<1024xf32> to vector<1x1024xf32>
    %cst_8 = arith.constant dense<0.000000e+00> : vector<1024xf32>
    %12 = vector.multi_reduction <add>, %9, %cst_8 [0] : vector<64x1024xf32> to vector<1024xf32>
    %13 = vector.shape_cast %12 : vector<1024xf32> to vector<1x1024xf32>
    %cst_9 = arith.constant 6.400000e+01 : f32
    %14 = vector.broadcast %cst_9 : f32 to vector<1x1024xf32>
    %15 = arith.divf %13, %14 : vector<1x1024xf32>
    %16 = vector.extract_strided_slice %8 {offsets = [64, 0], sizes = [64, 1024], strides = [1, 1]} : vector<128x1024xf32> to vector<64x1024xf32>
    %cst_10 = arith.constant dense<0xFF800000> : vector<1024xf32>
    %17 = vector.multi_reduction <maximumf>, %16, %cst_10 [0] : vector<64x1024xf32> to vector<1024xf32>
    %18 = vector.shape_cast %17 : vector<1024xf32> to vector<1x1024xf32>
    %cst_11 = arith.constant dense<0.000000e+00> : vector<1024xf32>
    %19 = vector.multi_reduction <add>, %16, %cst_11 [0] : vector<64x1024xf32> to vector<1024xf32>
    %20 = vector.shape_cast %19 : vector<1024xf32> to vector<1x1024xf32>
    %cst_12 = arith.constant 6.400000e+01 : f32
    %21 = vector.broadcast %cst_12 : f32 to vector<1x1024xf32>
    %22 = arith.divf %20, %21 : vector<1x1024xf32>
    %23 = tpu.concatenate %11, %18 in 0 : vector<1x1024xf32>, vector<1x1024xf32> -> vector<2x1024xf32>
    %24 = arith.truncf %23 : vector<2x1024xf32> to vector<2x1024xbf16>
    %25 = tpu.concatenate %15, %22 in 0 : vector<1x1024xf32>, vector<1x1024xf32> -> vector<2x1024xf32>
    %26 = arith.truncf %25 : vector<2x1024xf32> to vector<2x1024xbf16>
    %c0_13 = arith.constant 0 : index
    %c0_14 = arith.constant 0 : index
    %27 = vector.load %arg4[%c0_13, %c0_14] : memref<1024x512xbf16, #tpu.memory_space<vmem>>, vector<1024x512xbf16>
    %cst_15 = arith.constant dense<0.000000e+00> : vector<2x512xf32>
    %28 = tpu.matmul %24, %27, %cst_15 {dimension_numbers = #tpu.dot_dimension_numbers<[1], [0], [0], [1], [0, 0, 1, 1], [], []>} : vector<2x1024xbf16>, vector<1024x512xbf16>, vector<2x512xf32> -> vector<2x512xf32>
    %c0_16 = arith.constant 0 : index
    %c0_17 = arith.constant 0 : index
    %29 = vector.load %arg5[%c0_16, %c0_17] : memref<1024x512xbf16, #tpu.memory_space<vmem>>, vector<1024x512xbf16>
    %cst_18 = arith.constant dense<0.000000e+00> : vector<2x512xf32>
    %30 = tpu.matmul %26, %29, %cst_18 {dimension_numbers = #tpu.dot_dimension_numbers<[1], [0], [0], [1], [0, 0, 1, 1], [], []>} : vector<2x1024xbf16>, vector<1024x512xbf16>, vector<2x512xf32> -> vector<2x512xf32>
    %31 = arith.addf %28, %30 : vector<2x512xf32>
    %c0_19 = arith.constant 0 : index
    %c0_20 = arith.constant 0 : index
    %32 = vector.load %arg6[%c0_19, %c0_20] : memref<1x512xf32, #tpu.memory_space<vmem>>, vector<1x512xf32>
    %33 = vector.broadcast %32 : vector<1x512xf32> to vector<2x512xf32>
    %34 = arith.addf %31, %33 : vector<2x512xf32>
    %cst_21 = arith.constant 0.000000e+00 : f32
    %35 = vector.broadcast %cst_21 : f32 to vector<2x512xf32>
    %36 = arith.maximumf %34, %35 : vector<2x512xf32>
    %37 = arith.truncf %36 : vector<2x512xf32> to vector<2x512xbf16>
    %c0_22 = arith.constant 0 : index
    %c0_23 = arith.constant 0 : index
    %38 = vector.load %arg7[%c0_22, %c0_23] : memref<512x128xbf16, #tpu.memory_space<vmem>>, vector<512x128xbf16>
    %cst_24 = arith.constant dense<0.000000e+00> : vector<2x128xf32>
    %39 = tpu.matmul %37, %38, %cst_24 {dimension_numbers = #tpu.dot_dimension_numbers<[1], [0], [0], [1], [0, 0, 1, 1], [], []>} : vector<2x512xbf16>, vector<512x128xbf16>, vector<2x128xf32> -> vector<2x128xf32>
    %c0_25 = arith.constant 0 : index
    %c0_26 = arith.constant 0 : index
    %40 = vector.load %arg8[%c0_25, %c0_26] : memref<1x128xf32, #tpu.memory_space<vmem>>, vector<1x128xf32>
    %41 = vector.broadcast %40 : vector<1x128xf32> to vector<2x128xf32>
    %42 = arith.addf %39, %41 : vector<2x128xf32>
    %c0_27 = arith.constant 0 : index
    %c0_28 = arith.constant 0 : index
    %43 = vector.load %arg9[%c0_27, %c0_28] : memref<2x128xf32, #tpu.memory_space<vmem>>, vector<2x128xf32>
    tpu.vector_store %arg9[%c0_27, %c0_28], %42 {strides = array<i32>} : memref<2x128xf32, #tpu.memory_space<vmem>>, vector<2x128xf32>,
    return
  }
  func.func @transform_0(%arg0: i32) -> (i32, i32, i32) {
    %c0_i32 = arith.constant 0 : i32
    %c0_i32_0 = arith.constant 0 : i32
    %c0_i32_1 = arith.constant 0 : i32
    %c0_i32_2 = arith.constant 0 : i32
    return %c0_i32, %c0_i32_0, %c0_i32_1 : i32, i32, i32
  }
  func.func @transform_1(%arg0: i32) -> (i32, i32) {
    %c0_i32 = arith.constant 0 : i32
    %c0_i32_0 = arith.constant 0 : i32
    %c0_i32_1 = arith.constant 0 : i32
    return %c0_i32, %c0_i32_0 : i32, i32
  }
  func.func @transform_2(%arg0: i32) -> (i32, i32) {
    %c0_i32 = arith.constant 0 : i32
    %c0_i32_0 = arith.constant 0 : i32
    %c0_i32_1 = arith.constant 0 : i32
    return %c0_i32, %c0_i32_0 : i32, i32
  }
  func.func @transform_3(%arg0: i32) -> (i32, i32) {
    %c0_i32 = arith.constant 0 : i32
    %c0_i32_0 = arith.constant 0 : i32
    %c0_i32_1 = arith.constant 0 : i32
    return %c0_i32, %c0_i32_0 : i32, i32
  }
  func.func @transform_4(%arg0: i32) -> (i32, i32) {
    %c0_i32 = arith.constant 0 : i32
    %c0_i32_0 = arith.constant 0 : i32
    %c0_i32_1 = arith.constant 0 : i32
    return %c0_i32, %c0_i32_0 : i32, i32
  }
  func.func @transform_5(%arg0: i32) -> (i32, i32) {
    %c0_i32 = arith.constant 0 : i32
    %c0_i32_0 = arith.constant 0 : i32
    %c0_i32_1 = arith.constant 0 : i32
    return %c0_i32, %c0_i32_0 : i32, i32
  }
  func.func @transform_6(%arg0: i32) -> (i32, i32) {
    %c0_i32 = arith.constant 0 : i32
    %c0_i32_0 = arith.constant 0 : i32
    %c0_i32_1 = arith.constant 0 : i32
    return %c0_i32, %c0_i32_0 : i32, i32
  }
  func.func @transform_7(%arg0: i32) -> (i32, i32) {
    %c0_i32 = arith.constant 0 : i32
    %c0_i32_0 = arith.constant 0 : i32
    %c0_i32_1 = arith.constant 0 : i32
    return %c0_i32, %c0_i32_0 : i32, i32
  }
  func.func @transform_8(%arg0: i32) -> (i32, i32) {
    %c0_i32 = arith.constant 0 : i32
    %c0_i32_0 = arith.constant 0 : i32
    %c0_i32_1 = arith.constant 0 : i32
    return %c0_i32, %c0_i32_0 : i32, i32
  }
}

</mosaic_0001>

<llo_original>
// kernel: _lambda_.1
$region0: #{_lambda_.1}
  #allocation0 [shape = 'u32[]', space=smem, size = 0x4, offset = 0x4, fixed_abs, tag = 'smem constant byte address 0x4 - core index']
  #allocation1 [shape = 'u32[144,128]{1,0:T(1,128)}', space=vmem, size = 0x12000, scoped, tag = 'internal scratch']
  %s0 = inlined_call_operand.vmem [shape: bf16[2,64,512], index: 0, kind: input, shape index: {}]
  %s1 = inlined_call_operand.hbm [shape: bf16[512,1024], index: 1, kind: input, shape index: {}]
  %s2 = inlined_call_operand.vmem [shape: f32[1,1024], index: 2, kind: input, shape index: {}]
  %s3 = inlined_call_operand.hbm [shape: bf16[1024,512], index: 3, kind: input, shape index: {}]
  %s4 = inlined_call_operand.hbm [shape: bf16[1024,512], index: 4, kind: input, shape index: {}]
  %s5 = inlined_call_operand.vmem [shape: f32[1,512], index: 5, kind: input, shape index: {}]
  %s6 = inlined_call_operand.vmem [shape: bf16[512,128], index: 6, kind: input, shape index: {}]
  %s7 = inlined_call_operand.vmem [shape: f32[1,128], index: 7, kind: input, shape index: {}]
  %s8 = inlined_call_operand.hbm [shape: f32[2,128], index: 8, kind: output, shape index: {}]
  %s9 = sld [smem:[#allocation0]]
  $region54: #{_lambda_.1} parent=0
    _
  %s11 = ssub.s32 1, %s9
  %s12 = scalar_select 0, %s11, %s9
  $region1: #{_lambda_.1} parent=0
    #allocation2 [shape = 'u8[1048576]{0}', space=vmem, size = 0x100000, scoped, tag = 'input window, operand 1, single buffered']
    #allocation3 [shape = 's32[1]{0}', space=sflag, size = 0x4, scoped, tag = 'scoped memory for _lambda_.1']
    #allocation4 [shape = 's32[1]{0}', space=sflag, size = 0x4, scoped, tag = 'scoped memory for _lambda_.1']
    #allocation5 [shape = 'u8[1048576]{0}', space=vmem, size = 0x100000, scoped, tag = 'input window, operand 3, single buffered']
    #allocation6 [shape = 's32[1]{0}', space=sflag, size = 0x4, scoped, tag = 'scoped memory for _lambda_.1']
    #allocation7 [shape = 'u8[1048576]{0}', space=vmem, size = 0x100000, scoped, tag = 'input window, operand 4, single buffered']
    #allocation8 [shape = 'u8[1024]{0}', space=vmem, size = 0x400, scoped, tag = 'output window, operand 0, single buffered']
    %13 = vsyncpa [#allocation3], 0
    %14 = vsyncpa [#allocation6], 0
    %15 = vsyncpa [#allocation4], 0
    // Predicated region
    $region2: #{_lambda_.1} parent=1 // pred_check
      _
    $region3: #{_lambda_.1} parent=1 // pred_check_branch
      %17 = sbr.rel (0) target = $region5
    $region4: #{_lambda_.1} parent=1 // pred_region
      _
    $region5: #{_lambda_.1} parent=1 // pred_fallthru
      _
    // Predicated region
    $region6: #{_lambda_.1} parent=1 // pred_check
      _
    $region7: #{_lambda_.1} parent=1 // pred_check_branch
      %19 = sbr.rel (0) target = $region9
    $region8: #{_lambda_.1} parent=1 // pred_region
      %s21 = ssub.s32 32768, 32768
      %22 = vsyncadd [#allocation3], %s21
      %s23 = sshll.u32 [#allocation2], 4
      %s24 = int_to_ptr.vmem [resolvable:$true] %s23
      %29 = dma.hbm_to_vmem [thread:$0]  %s1, 32768, %s24, [#allocation3], 512, 512, 32
    $region9: #{_lambda_.1} parent=1 // pred_fallthru
      _
    // Predicated region
    $region10: #{_lambda_.1} parent=1 // pred_check
      _
    $region11: #{_lambda_.1} parent=1 // pred_check_branch
      %31 = sbr.rel (0) target = $region13
    $region12: #{_lambda_.1} parent=1 // pred_region
      _
    $region13: #{_lambda_.1} parent=1 // pred_fallthru
      _
    // Predicated region
    $region14: #{_lambda_.1} parent=1 // pred_check
      _
    $region15: #{_lambda_.1} parent=1 // pred_check_branch
      %33 = sbr.rel (0) target = $region17
    $region16: #{_lambda_.1} parent=1 // pred_region
      %s35 = ssub.s32 32768, 32768
      %36 = vsyncadd [#allocation6], %s35
      %s37 = sshll.u32 [#allocation5], 4
      %s38 = int_to_ptr.vmem [resolvable:$true] %s37
      %43 = dma.hbm_to_vmem [thread:$0]  %s3, 32768, %s38, [#allocation6], 256, 256, 16
    $region17: #{_lambda_.1} parent=1 // pred_fallthru
      _
    // Predicated region
    $region18: #{_lambda_.1} parent=1 // pred_check
      _
    $region19: #{_lambda_.1} parent=1 // pred_check_branch
      %45 = sbr.rel (0) target = $region21
    $region20: #{_lambda_.1} parent=1 // pred_region
      %s47 = ssub.s32 32768, 32768
      %48 = vsyncadd [#allocation6], %s47
      %s49 = sshll.u32 [#allocation7], 4
      %s50 = int_to_ptr.vmem [resolvable:$true] %s49
      %55 = dma.hbm_to_vmem [thread:$0]  %s4, 32768, %s50, [#allocation6], 256, 256, 16
    $region21: #{_lambda_.1} parent=1 // pred_fallthru
      _
    // Predicated region
    $region22: #{_lambda_.1} parent=1 // pred_check
      _
    $region23: #{_lambda_.1} parent=1 // pred_check_branch
      %57 = sbr.rel (0) target = $region25
    $region24: #{_lambda_.1} parent=1 // pred_region
      _
    $region25: #{_lambda_.1} parent=1 // pred_fallthru
      _
    // Predicated region
    $region26: #{_lambda_.1} parent=1 // pred_check
      _
    $region27: #{_lambda_.1} parent=1 // pred_check_branch
      %59 = sbr.rel (0) target = $region29
    $region28: #{_lambda_.1} parent=1 // pred_region
      _
    $region29: #{_lambda_.1} parent=1 // pred_fallthru
      _
    // Predicated region
    $region30: #{_lambda_.1} parent=1 // pred_check
      _
    $region31: #{_lambda_.1} parent=1 // pred_check_branch
      %61 = sbr.rel (0) target = $region33
    $region32: #{_lambda_.1} parent=1 // pred_region
      _
    $region33: #{_lambda_.1} parent=1 // pred_fallthru
      _
    // Predicated region
    $region34: #{_lambda_.1} parent=1 // pred_check
      _
    $region35: #{_lambda_.1} parent=1 // pred_check_branch
      %63 = sbr.rel (0) target = $region37
    $region36: #{_lambda_.1} parent=1 // pred_region
      %64 = dma.done [#allocation3], 32768
    $region37: #{_lambda_.1} parent=1 // pred_fallthru
      _
    // Predicated region
    $region38: #{_lambda_.1} parent=1 // pred_check
      _
    $region39: #{_lambda_.1} parent=1 // pred_check_branch
      %66 = sbr.rel (0) target = $region41
    $region40: #{_lambda_.1} parent=1 // pred_region
      %67 = dma.done [#allocation6], 32768
    $region41: #{_lambda_.1} parent=1 // pred_fallthru
      _
    // Predicated region
    $region42: #{_lambda_.1} parent=1 // pred_check
      _
    $region43: #{_lambda_.1} parent=1 // pred_check_branch
      %69 = sbr.rel (0) target = $region45
    $region44: #{_lambda_.1} parent=1 // pred_region
      %70 = dma.done [#allocation6], 32768
    $region45: #{_lambda_.1} parent=1 // pred_fallthru
      _
    %v72 = vld [vmem:[%s0] sm:$0xff]
    %v73 = vld [vmem:[%s0 + $0x8] sm:$0xff]
    %v74 = vld [vmem:[%s0 + $0x10] sm:$0xff]
    %v75 = vld [vmem:[%s0 + $0x18] sm:$0xff]
    %v76 = vld [vmem:[%s0 + $0x20] sm:$0xff]
    %v77 = vld [vmem:[%s0 + $0x28] sm:$0xff]
    %v78 = vld [vmem:[%s0 + $0x30] sm:$0xff]
    %v79 = vld [vmem:[%s0 + $0x38] sm:$0xff]
    %v80 = vld [vmem:[%s0 + $0x40] sm:$0xff]
    %v81 = vld [vmem:[%s0 + $0x48] sm:$0xff]
    %v82 = vld [vmem:[%s0 + $0x50] sm:$0xff]
    %v83 = vld [vmem:[%s0 + $0x58] sm:$0xff]
    %v84 = vld [vmem:[%s0 + $0x60] sm:$0xff]
    %v85 = vld [vmem:[%s0 + $0x68] sm:$0xff]
    %v86 = vld [vmem:[%s0 + $0x70] sm:$0xff]
    %v87 = vld [vmem:[%s0 + $0x78] sm:$0xff]
    %v88 = vld [vmem:[%s0 + $0x80] sm:$0xff]
    %v89 = vld [vmem:[%s0 + $0x88] sm:$0xff]
    %v90 = vld [vmem:[%s0 + $0x90] sm:$0xff]
    %v91 = vld [vmem:[%s0 + $0x98] sm:$0xff]
    %v92 = vld [vmem:[%s0 + $0xa0] sm:$0xff]
    %v93 = vld [vmem:[%s0 + $0xa8] sm:$0xff]
    %v94 = vld [vmem:[%s0 + $0xb0] sm:$0xff]
    %v95 = vld [vmem:[%s0 + $0xb8] sm:$0xff]
    %v96 = vld [vmem:[%s0 + $0xc0] sm:$0xff]
    %v97 = vld [vmem:[%s0 + $0xc8] sm:$0xff]
    %v98 = vld [vmem:[%s0 + $0xd0] sm:$0xff]
    %v99 = vld [vmem:[%s0 + $0xd8] sm:$0xff]
    %v100 = vld [vmem:[%s0 + $0xe0] sm:$0xff]
    %v101 = vld [vmem:[%s0 + $0xe8] sm:$0xff]
    %v102 = vld [vmem:[%s0 + $0xf0] sm:$0xff]
    %v103 = vld [vmem:[%s0 + $0xf8] sm:$0xff]
    %v104 = vld [vmem:[#allocation2] sm:$0xff]
    %v105 = vld [vmem:[#allocation2 + $0x8] sm:$0xff]
    %v106 = vld [vmem:[#allocation2 + $0x10] sm:$0xff]
    %v107 = vld [vmem:[#allocation2 + $0x18] sm:$0xff]
    %v108 = vld [vmem:[#allocation2 + $0x20] sm:$0xff]
    %v109 = vld [vmem:[#allocation2 + $0x28] sm:$0xff]
    %v110 = vld [vmem:[#allocation2 + $0x30] sm:$0xff]
    %v111 = vld [vmem:[#allocation2 + $0x38] sm:$0xff]
    %v112 = vld [vmem:[#allocation2 + $0x40] sm:$0xff]
    %v113 = vld [vmem:[#allocation2 + $0x48] sm:$0xff]
    %v114 = vld [vmem:[#allocation2 + $0x50] sm:$0xff]
    %v115 = vld [vmem:[#allocation2 + $0x58] sm:$0xff]
    %v116 = vld [vmem:[#allocation2 + $0x60] sm:$0xff]
    %v117 = vld [vmem:[#allocation2 + $0x68] sm:$0xff]
    %v118 = vld [vmem:[#allocation2 + $0x70] sm:$0xff]
    %v119 = vld [vmem:[#allocation2 + $0x78] sm:$0xff]
    %v120 = vld [vmem:[#allocation2 + $0x80] sm:$0xff]
    %v121 = vld [vmem:[#allocation2 + $0x88] sm:$0xff]
    %v122 = vld [vmem:[#allocation2 + $0x90] sm:$0xff]
    %v123 = vld [vmem:[#allocation2 + $0x98] sm:$0xff]
    %v124 = vld [vmem:[#allocation2 + $0xa0] sm:$0xff]
    %v125 = vld [vmem:[#allocation2 + $0xa8] sm:$0xff]
    %v126 = vld [vmem:[#allocation2 + $0xb0] sm:$0xff]
    %v127 = vld [vmem:[#allocation2 + $0xb8] sm:$0xff]
    %v128 = vld [vmem:[#allocation2 + $0xc0] sm:$0xff]
    %v129 = vld [vmem:[#allocation2 + $0xc8] sm:$0xff]
    %v130 = vld [vmem:[#allocation2 + $0xd0] sm:$0xff]
    %v131 = vld [vmem:[#allocation2 + $0xd8] sm:$0xff]
    %v132 = vld [vmem:[#allocation2 + $0xe0] sm:$0xff]
    %v133 = vld [vmem:[#allocation2 + $0xe8] sm:$0xff]
    %v134 = vld [vmem:[#allocation2 + $0xf0] sm:$0xff]
    %v135 = vld [vmem:[#allocation2 + $0xf8] sm:$0xff]
    %v136 = vld [vmem:[#allocation2 + $0x100] sm:$0xff]
    %v137 = vld [vmem:[#allocation2 + $0x108] sm:$0xff]
    %v138 = vld [vmem:[#allocation2 + $0x110] sm:$0xff]
    %v139 = vld [vmem:[#allocation2 + $0x118] sm:$0xff]
    %v140 = vld [vmem:[#allocation2 + $0x120] sm:$0xff]
    %v141 = vld [vmem:[#allocation2 + $0x128] sm:$0xff]
    %v142 = vld [vmem:[#allocation2 + $0x130] sm:$0xff]
    %v143 = vld [vmem:[#allocation2 + $0x138] sm:$0xff]
    %v144 = vld [vmem:[#allocation2 + $0x140] sm:$0xff]
    %v145 = vld [vmem:[#allocation2 + $0x148] sm:$0xff]
    %v146 = vld [vmem:[#allocation2 + $0x150] sm:$0xff]
    %v147 = vld [vmem:[#allocation2 + $0x158] sm:$0xff]
    %v148 = vld [vmem:[#allocation2 + $0x160] sm:$0xff]
    %v149 = vld [vmem:[#allocation2 + $0x168] sm:$0xff]
    %v150 = vld [vmem:[#allocation2 + $0x170] sm:$0xff]
    %v151 = vld [vmem:[#allocation2 + $0x178] sm:$0xff]
    %v152 = vld [vmem:[#allocation2 + $0x180] sm:$0xff]
    %v153 = vld [vmem:[#allocation2 + $0x188] sm:$0xff]
    %v154 = vld [vmem:[#allocation2 + $0x190] sm:$0xff]
    %v155 = vld [vmem:[#allocation2 + $0x198] sm:$0xff]
    %v156 = vld [vmem:[#allocation2 + $0x1a0] sm:$0xff]
    %v157 = vld [vmem:[#allocation2 + $0x1a8] sm:$0xff]
    %v158 = vld [vmem:[#allocation2 + $0x1b0] sm:$0xff]
    %v159 = vld [vmem:[#allocation2 + $0x1b8] sm:$0xff]
    %v160 = vld [vmem:[#allocation2 + $0x1c0] sm:$0xff]
    %v161 = vld [vmem:[#allocation2 + $0x1c8] sm:$0xff]
    %v162 = vld [vmem:[#allocation2 + $0x1d0] sm:$0xff]
    %v163 = vld [vmem:[#allocation2 + $0x1d8] sm:$0xff]
    %v164 = vld [vmem:[#allocation2 + $0x1e0] sm:$0xff]
    %v165 = vld [vmem:[#allocation2 + $0x1e8] sm:$0xff]
    %v166 = vld [vmem:[#allocation2 + $0x1f0] sm:$0xff]
    %v167 = vld [vmem:[#allocation2 + $0x1f8] sm:$0xff]
    %v168 = vld [vmem:[#allocation2 + $0x200] sm:$0xff]
    %v169 = vld [vmem:[#allocation2 + $0x208] sm:$0xff]
    %v170 = vld [vmem:[#allocation2 + $0x210] sm:$0xff]
    %v171 = vld [vmem:[#allocation2 + $0x218] sm:$0xff]
    %v172 = vld [vmem:[#allocation2 + $0x220] sm:$0xff]
    %v173 = vld [vmem:[#allocation2 + $0x228] sm:$0xff]
    %v174 = vld [vmem:[#allocation2 + $0x230] sm:$0xff]
    %v175 = vld [vmem:[#allocation2 + $0x238] sm:$0xff]
    %v176 = vld [vmem:[#allocation2 + $0x240] sm:$0xff]
    %v177 = vld [vmem:[#allocation2 + $0x248] sm:$0xff]
    %v178 = vld [vmem:[#allocation2 + $0x250] sm:$0xff]
    %v179 = vld [vmem:[#allocation2 + $0x258] sm:$0xff]
    %v180 = vld [vmem:[#allocation2 + $0x260] sm:$0xff]
    %v181 = vld [vmem:[#allocation2 + $0x268] sm:$0xff]
    %v182 = vld [vmem:[#allocation2 + $0x270] sm:$0xff]
    %v183 = vld [vmem:[#allocation2 + $0x278] sm:$0xff]
    %v184 = vld [vmem:[#allocation2 + $0x280] sm:$0xff]
    %v185 = vld [vmem:[#allocation2 + $0x288] sm:$0xff]
    %v186 = vld [vmem:[#allocation2 + $0x290] sm:$0xff]
    %v187 = vld [vmem:[#allocation2 + $0x298] sm:$0xff]
    %v188 = vld [vmem:[#allocation2 + $0x2a0] sm:$0xff]
    %v189 = vld [vmem:[#allocation2 + $0x2a8] sm:$0xff]
    %v190 = vld [vmem:[#allocation2 + $0x2b0] sm:$0xff]
    %v191 = vld [vmem:[#allocation2 + $0x2b8] sm:$0xff]
    %v192 = vld [vmem:[#allocation2 + $0x2c0] sm:$0xff]
    %v193 = vld [vmem:[#allocation2 + $0x2c8] sm:$0xff]
    %v194 = vld [vmem:[#allocation2 + $0x2d0] sm:$0xff]
    %v195 = vld [vmem:[#allocation2 + $0x2d8] sm:$0xff]
    %v196 = vld [vmem:[#allocation2 + $0x2e0] sm:$0xff]
    %v197 = vld [vmem:[#allocation2 + $0x2e8] sm:$0xff]
    %v198 = vld [vmem:[#allocation2 + $0x2f0] sm:$0xff]
    %v199 = vld [vmem:[#allocation2 + $0x2f8] sm:$0xff]
    %v200 = vld [vmem:[#allocation2 + $0x300] sm:$0xff]
    %v201 = vld [vmem:[#allocation2 + $0x308] sm:$0xff]
    %v202 = vld [vmem:[#allocation2 + $0x310] sm:$0xff]
    %v203 = vld [vmem:[#allocation2 + $0x318] sm:$0xff]
    %v204 = vld [vmem:[#allocation2 + $0x320] sm:$0xff]
    %v205 = vld [vmem:[#allocation2 + $0x328] sm:$0xff]
    %v206 = vld [vmem:[#allocation2 + $0x330] sm:$0xff]
    %v207 = vld [vmem:[#allocation2 + $0x338] sm:$0xff]
    %v208 = vld [vmem:[#allocation2 + $0x340] sm:$0xff]
    %v209 = vld [vmem:[#allocation2 + $0x348] sm:$0xff]
    %v210 = vld [vmem:[#allocation2 + $0x350] sm:$0xff]
    %v211 = vld [vmem:[#allocation2 + $0x358] sm:$0xff]
    %v212 = vld [vmem:[#allocation2 + $0x360] sm:$0xff]
    %v213 = vld [vmem:[#allocation2 + $0x368] sm:$0xff]
    %v214 = vld [vmem:[#allocation2 + $0x370] sm:$0xff]
    %v215 = vld [vmem:[#allocation2 + $0x378] sm:$0xff]
    %v216 = vld [vmem:[#allocation2 + $0x380] sm:$0xff]
    %v217 = vld [vmem:[#allocation2 + $0x388] sm:$0xff]
    %v218 = vld [vmem:[#allocation2 + $0x390] sm:$0xff]
    %v219 = vld [vmem:[#allocation2 + $0x398] sm:$0xff]
    %v220 = vld [vmem:[#allocation2 + $0x3a0] sm:$0xff]
    %v221 = vld [vmem:[#allocation2 + $0x3a8] sm:$0xff]
    %v222 = vld [vmem:[#allocation2 + $0x3b0] sm:$0xff]
    %v223 = vld [vmem:[#allocation2 + $0x3b8] sm:$0xff]
    %v224 = vld [vmem:[#allocation2 + $0x3c0] sm:$0xff]
    %v225 = vld [vmem:[#allocation2 + $0x3c8] sm:$0xff]
    %v226 = vld [vmem:[#allocation2 + $0x3d0] sm:$0xff]
    %v227 = vld [vmem:[#allocation2 + $0x3d8] sm:$0xff]
    %v228 = vld [vmem:[#allocation2 + $0x3e0] sm:$0xff]
    %v229 = vld [vmem:[#allocation2 + $0x3e8] sm:$0xff]
    %v230 = vld [vmem:[#allocation2 + $0x3f0] sm:$0xff]
    %v231 = vld [vmem:[#allocation2 + $0x3f8] sm:$0xff]
    %v232 = vld [vmem:[#allocation2 + $0x400] sm:$0xff]
    %v233 = vld [vmem:[#allocation2 + $0x408] sm:$0xff]
    %v234 = vld [vmem:[#allocation2 + $0x410] sm:$0xff]
    %v235 = vld [vmem:[#allocation2 + $0x418] sm:$0xff]
    %v236 = vld [vmem:[#allocation2 + $0x420] sm:$0xff]
    %v237 = vld [vmem:[#allocation2 + $0x428] sm:$0xff]
    %v238 = vld [vmem:[#allocation2 + $0x430] sm:$0xff]
    %v239 = vld [vmem:[#allocation2 + $0x438] sm:$0xff]
    %v240 = vld [vmem:[#allocation2 + $0x440] sm:$0xff]
    %v241 = vld [vmem:[#allocation2 + $0x448] sm:$0xff]
    %v242 = vld [vmem:[#allocation2 + $0x450] sm:$0xff]
    %v243 = vld [vmem:[#allocation2 + $0x458] sm:$0xff]
    %v244 = vld [vmem:[#allocation2 + $0x460] sm:$0xff]
    %v245 = vld [vmem:[#allocation2 + $0x468] sm:$0xff]
    %v246 = vld [vmem:[#allocation2 + $0x470] sm:$0xff]
    %v247 = vld [vmem:[#allocation2 + $0x478] sm:$0xff]
    %v248 = vld [vmem:[#allocation2 + $0x480] sm:$0xff]
    %v249 = vld [vmem:[#allocation2 + $0x488] sm:$0xff]
    %v250 = vld [vmem:[#allocation2 + $0x490] sm:$0xff]
    %v251 = vld [vmem:[#allocation2 + $0x498] sm:$0xff]
    %v252 = vld [vmem:[#allocation2 + $0x4a0] sm:$0xff]
    %v253 = vld [vmem:[#allocation2 + $0x4a8] sm:$0xff]
    %v254 = vld [vmem:[#allocation2 + $0x4b0] sm:$0xff]
    %v255 = vld [vmem:[#allocation2 + $0x4b8] sm:$0xff]
    %v256 = vld [vmem:[#allocation2 + $0x4c0] sm:$0xff]
    %v257 = vld [vmem:[#allocation2 + $0x4c8] sm:$0xff]
    %v258 = vld [vmem:[#allocation2 + $0x4d0] sm:$0xff]
    %v259 = vld [vmem:[#allocation2 + $0x4d8] sm:$0xff]
    %v260 = vld [vmem:[#allocation2 + $0x4e0] sm:$0xff]
    %v261 = vld [vmem:[#allocation2 + $0x4e8] sm:$0xff]
    %v262 = vld [vmem:[#allocation2 + $0x4f0] sm:$0xff]
    %v263 = vld [vmem:[#allocation2 + $0x4f8] sm:$0xff]
    %v264 = vld [vmem:[#allocation2 + $0x500] sm:$0xff]
    %v265 = vld [vmem:[#allocation2 + $0x508] sm:$0xff]
    %v266 = vld [vmem:[#allocation2 + $0x510] sm:$0xff]
    %v267 = vld [vmem:[#allocation2 + $0x518] sm:$0xff]
    %v268 = vld [vmem:[#allocation2 + $0x520] sm:$0xff]
    %v269 = vld [vmem:[#allocation2 + $0x528] sm:$0xff]
    %v270 = vld [vmem:[#allocation2 + $0x530] sm:$0xff]
    %v271 = vld [vmem:[#allocation2 + $0x538] sm:$0xff]
    %v272 = vld [vmem:[#allocation2 + $0x540] sm:$0xff]
    %v273 = vld [vmem:[#allocation2 + $0x548] sm:$0xff]
    %v274 = vld [vmem:[#allocation2 + $0x550] sm:$0xff]
    %v275 = vld [vmem:[#allocation2 + $0x558] sm:$0xff]
    %v276 = vld [vmem:[#allocation2 + $0x560] sm:$0xff]
    %v277 = vld [vmem:[#allocation2 + $0x568] sm:$0xff]
    %v278 = vld [vmem:[#allocation2 + $0x570] sm:$0xff]
    %v279 = vld [vmem:[#allocation2 + $0x578] sm:$0xff]
    %v280 = vld [vmem:[#allocation2 + $0x580] sm:$0xff]
    %v281 = vld [vmem:[#allocation2 + $0x588] sm:$0xff]
    %v282 = vld [vmem:[#allocation2 + $0x590] sm:$0xff]
    %v283 = vld [vmem:[#allocation2 + $0x598] sm:$0xff]
    %v284 = vld [vmem:[#allocation2 + $0x5a0] sm:$0xff]
    %v285 = vld [vmem:[#allocation2 + $0x5a8] sm:$0xff]
    %v286 = vld [vmem:[#allocation2 + $0x5b0] sm:$0xff]
    %v287 = vld [vmem:[#allocation2 + $0x5b8] sm:$0xff]
    %v288 = vld [vmem:[#allocation2 + $0x5c0] sm:$0xff]
    %v289 = vld [vmem:[#allocation2 + $0x5c8] sm:$0xff]
    %v290 = vld [vmem:[#allocation2 + $0x5d0] sm:$0xff]
    %v291 = vld [vmem:[#allocation2 + $0x5d8] sm:$0xff]
    %v292 = vld [vmem:[#allocation2 + $0x5e0] sm:$0xff]
    %v293 = vld [vmem:[#allocation2 + $0x5e8] sm:$0xff]
    %v294 = vld [vmem:[#allocation2 + $0x5f0] sm:$0xff]
    %v295 = vld [vmem:[#allocation2 + $0x5f8] sm:$0xff]
    %v296 = vld [vmem:[#allocation2 + $0x600] sm:$0xff]
    %v297 = vld [vmem:[#allocation2 + $0x608] sm:$0xff]
    %v298 = vld [vmem:[#allocation2 + $0x610] sm:$0xff]
    %v299 = vld [vmem:[#allocation2 + $0x618] sm:$0xff]
    %v300 = vld [vmem:[#allocation2 + $0x620] sm:$0xff]
    %v301 = vld [vmem:[#allocation2 + $0x628] sm:$0xff]
    %v302 = vld [vmem:[#allocation2 + $0x630] sm:$0xff]
    %v303 = vld [vmem:[#allocation2 + $0x638] sm:$0xff]
    %v304 = vld [vmem:[#allocation2 + $0x640] sm:$0xff]
    %v305 = vld [vmem:[#allocation2 + $0x648] sm:$0xff]
    %v306 = vld [vmem:[#allocation2 + $0x650] sm:$0xff]
    %v307 = vld [vmem:[#allocation2 + $0x658] sm:$0xff]
    %v308 = vld [vmem:[#allocation2 + $0x660] sm:$0xff]
    %v309 = vld [vmem:[#allocation2 + $0x668] sm:$0xff]
    %v310 = vld [vmem:[#allocation2 + $0x670] sm:$0xff]
    %v311 = vld [vmem:[#allocation2 + $0x678] sm:$0xff]
    %v312 = vld [vmem:[#allocation2 + $0x680] sm:$0xff]
    %v313 = vld [vmem:[#allocation2 + $0x688] sm:$0xff]
    %v314 = vld [vmem:[#allocation2 + $0x690] sm:$0xff]
    %v315 = vld [vmem:[#allocation2 + $0x698] sm:$0xff]
    %v316 = vld [vmem:[#allocation2 + $0x6a0] sm:$0xff]
    %v317 = vld [vmem:[#allocation2 + $0x6a8] sm:$0xff]
    %v318 = vld [vmem:[#allocation2 + $0x6b0] sm:$0xff]
    %v319 = vld [vmem:[#allocation2 + $0x6b8] sm:$0xff]
    %v320 = vld [vmem:[#allocation2 + $0x6c0] sm:$0xff]
    %v321 = vld [vmem:[#allocation2 + $0x6c8] sm:$0xff]
    %v322 = vld [vmem:[#allocation2 + $0x6d0] sm:$0xff]
    %v323 = vld [vmem:[#allocation2 + $0x6d8] sm:$0xff]
    %v324 = vld [vmem:[#allocation2 + $0x6e0] sm:$0xff]
    %v325 = vld [vmem:[#allocation2 + $0x6e8] sm:$0xff]
    %v326 = vld [vmem:[#allocation2 + $0x6f0] sm:$0xff]
    %v327 = vld [vmem:[#allocation2 + $0x6f8] sm:$0xff]
    %v328 = vld [vmem:[#allocation2 + $0x700] sm:$0xff]
    %v329 = vld [vmem:[#allocation2 + $0x708] sm:$0xff]
    %v330 = vld [vmem:[#allocation2 + $0x710] sm:$0xff]
    %v331 = vld [vmem:[#allocation2 + $0x718] sm:$0xff]
    %v332 = vld [vmem:[#allocation2 + $0x720] sm:$0xff]
    %v333 = vld [vmem:[#allocation2 + $0x728] sm:$0xff]
    %v334 = vld [vmem:[#allocation2 + $0x730] sm:$0xff]
    %v335 = vld [vmem:[#allocation2 + $0x738] sm:$0xff]
    %v336 = vld [vmem:[#allocation2 + $0x740] sm:$0xff]
    %v337 = vld [vmem:[#allocation2 + $0x748] sm:$0xff]
    %v338 = vld [vmem:[#allocation2 + $0x750] sm:$0xff]
    %v339 = vld [vmem:[#allocation2 + $0x758] sm:$0xff]
    %v340 = vld [vmem:[#allocation2 + $0x760] sm:$0xff]
    %v341 = vld [vmem:[#allocation2 + $0x768] sm:$0xff]
    %v342 = vld [vmem:[#allocation2 + $0x770] sm:$0xff]
    %v343 = vld [vmem:[#allocation2 + $0x778] sm:$0xff]
    %v344 = vld [vmem:[#allocation2 + $0x780] sm:$0xff]
    %v345 = vld [vmem:[#allocation2 + $0x788] sm:$0xff]
    %v346 = vld [vmem:[#allocation2 + $0x790] sm:$0xff]
    %v347 = vld [vmem:[#allocation2 + $0x798] sm:$0xff]
    %v348 = vld [vmem:[#allocation2 + $0x7a0] sm:$0xff]
    %v349 = vld [vmem:[#allocation2 + $0x7a8] sm:$0xff]
    %v350 = vld [vmem:[#allocation2 + $0x7b0] sm:$0xff]
    %v351 = vld [vmem:[#allocation2 + $0x7b8] sm:$0xff]
    %v352 = vld [vmem:[#allocation2 + $0x7c0] sm:$0xff]
    %v353 = vld [vmem:[#allocation2 + $0x7c8] sm:$0xff]
    %v354 = vld [vmem:[#allocation2 + $0x7d0] sm:$0xff]
    %v355 = vld [vmem:[#allocation2 + $0x7d8] sm:$0xff]
    %v356 = vld [vmem:[#allocation2 + $0x7e0] sm:$0xff]
    %v357 = vld [vmem:[#allocation2 + $0x7e8] sm:$0xff]
    %v358 = vld [vmem:[#allocation2 + $0x7f0] sm:$0xff]
    %v359 = vld [vmem:[#allocation2 + $0x7f8] sm:$0xff]
    %v360 = vld [vmem:[%s2] sm:$0xff]
    %v362 = vlaneseq
    %v363 = vshrl.u32 %v362, 7
    %v364 = vsub.s32 0, %v363
    %v365 = vrot.slane %v360, %v364
    %v366 = vlaneseq
    %v367 = vshrl.u32 %v366, 7
    %v368 = vsub.s32 1, %v367
    %v369 = vrot.slane %v360, %v368
    %v370 = vlaneseq
    %v371 = vshrl.u32 %v370, 7
    %v372 = vsub.s32 2, %v371
    %v373 = vrot.slane %v360, %v372
    %v374 = vlaneseq
    %v375 = vshrl.u32 %v374, 7
    %v376 = vsub.s32 3, %v375
    %v377 = vrot.slane %v360, %v376
    %v378 = vlaneseq
    %v379 = vshrl.u32 %v378, 7
    %v380 = vsub.s32 4, %v379
    %v381 = vrot.slane %v360, %v380
    %v382 = vlaneseq
    %v383 = vshrl.u32 %v382, 7
    %v384 = vsub.s32 5, %v383
    %v385 = vrot.slane %v360, %v384
    %v386 = vlaneseq
    %v387 = vshrl.u32 %v386, 7
    %v388 = vsub.s32 6, %v387
    %v389 = vrot.slane %v360, %v388
    %v390 = vlaneseq
    %v391 = vshrl.u32 %v390, 7
    %v392 = vsub.s32 7, %v391
    %v393 = vrot.slane %v360, %v392
    %v434 = vunpack.c.l.b16 %v72
    %v435 = vunpack.c.h.b16 %v72
    %v436 = vunpack.c.l.b16 %v73
    %v437 = vunpack.c.h.b16 %v73
    %v438 = vunpack.c.l.b16 %v74
    %v439 = vunpack.c.h.b16 %v74
    %v440 = vunpack.c.l.b16 %v75
    %v441 = vunpack.c.h.b16 %v75
    %v442 = vunpack.c.l.b16 %v76
    %v443 = vunpack.c.h.b16 %v76
    %v444 = vunpack.c.l.b16 %v77
    %v445 = vunpack.c.h.b16 %v77
    %v446 = vunpack.c.l.b16 %v78
    %v447 = vunpack.c.h.b16 %v78
    %v448 = vunpack.c.l.b16 %v79
    %v449 = vunpack.c.h.b16 %v79
    %v450 = vunpack.c.l.b16 %v80
    %v451 = vunpack.c.h.b16 %v80
    %v452 = vunpack.c.l.b16 %v81
    %v453 = vunpack.c.h.b16 %v81
    %v454 = vunpack.c.l.b16 %v82
    %v455 = vunpack.c.h.b16 %v82
    %v456 = vunpack.c.l.b16 %v83
    %v457 = vunpack.c.h.b16 %v83
    %v458 = vunpack.c.l.b16 %v84
    %v459 = vunpack.c.h.b16 %v84
    %v460 = vunpack.c.l.b16 %v85
    %v461 = vunpack.c.h.b16 %v85
    %v462 = vunpack.c.l.b16 %v86
    %v463 = vunpack.c.h.b16 %v86
    %v464 = vunpack.c.l.b16 %v87
    %v465 = vunpack.c.h.b16 %v87
    %v466 = vunpack.c.l.b16 %v88
    %v467 = vunpack.c.h.b16 %v88
    %v468 = vunpack.c.l.b16 %v89
    %v469 = vunpack.c.h.b16 %v89
    %v470 = vunpack.c.l.b16 %v90
    %v471 = vunpack.c.h.b16 %v90
    %v472 = vunpack.c.l.b16 %v91
    %v473 = vunpack.c.h.b16 %v91
    %v474 = vunpack.c.l.b16 %v92
    %v475 = vunpack.c.h.b16 %v92
    %v476 = vunpack.c.l.b16 %v93
    %v477 = vunpack.c.h.b16 %v93
    %v478 = vunpack.c.l.b16 %v94
    %v479 = vunpack.c.h.b16 %v94
    %v480 = vunpack.c.l.b16 %v95
    %v481 = vunpack.c.h.b16 %v95
    %v482 = vunpack.c.l.b16 %v96
    %v483 = vunpack.c.h.b16 %v96
    %v484 = vunpack.c.l.b16 %v97
    %v485 = vunpack.c.h.b16 %v97
    %v486 = vunpack.c.l.b16 %v98
    %v487 = vunpack.c.h.b16 %v98
    %v488 = vunpack.c.l.b16 %v99
    %v489 = vunpack.c.h.b16 %v99
    %v490 = vunpack.c.l.b16 %v100
    %v491 = vunpack.c.h.b16 %v100
    %v492 = vunpack.c.l.b16 %v101
    %v493 = vunpack.c.h.b16 %v101
    %v494 = vunpack.c.l.b16 %v102
    %v495 = vunpack.c.h.b16 %v102
    %v496 = vunpack.c.l.b16 %v103
    %v497 = vunpack.c.h.b16 %v103
    %v498 = vpack.c.b16 %v438, %v434
    %v499 = vpack.c.b16 %v439, %v435
    %v500 = vpack.c.b16 %v440, %v436
    %v501 = vpack.c.b16 %v441, %v437
    %v502 = vpack.c.b16 %v446, %v442
    %v503 = vpack.c.b16 %v447, %v443
    %v504 = vpack.c.b16 %v448, %v444
    %v505 = vpack.c.b16 %v449, %v445
    %v506 = vpack.c.b16 %v454, %v450
    %v507 = vpack.c.b16 %v455, %v451
    %v508 = vpack.c.b16 %v456, %v452
    %v509 = vpack.c.b16 %v457, %v453
    %v510 = vpack.c.b16 %v462, %v458
    %v511 = vpack.c.b16 %v463, %v459
    %v512 = vpack.c.b16 %v464, %v460
    %v513 = vpack.c.b16 %v465, %v461
    %v514 = vpack.c.b16 %v470, %v466
    %v515 = vpack.c.b16 %v471, %v467
    %v516 = vpack.c.b16 %v472, %v468
    %v517 = vpack.c.b16 %v473, %v469
    %v518 = vpack.c.b16 %v478, %v474
    %v519 = vpack.c.b16 %v479, %v475
    %v520 = vpack.c.b16 %v480, %v476
    %v521 = vpack.c.b16 %v481, %v477
    %v522 = vpack.c.b16 %v486, %v482
    %v523 = vpack.c.b16 %v487, %v483
    %v524 = vpack.c.b16 %v488, %v484
    %v525 = vpack.c.b16 %v489, %v485
    %v526 = vpack.c.b16 %v494, %v490
    %v527 = vpack.c.b16 %v495, %v491
    %v528 = vpack.c.b16 %v496, %v492
    %v529 = vpack.c.b16 %v497, %v493
    %v818 = vunpack.c.l.b16 %v104
    %v819 = vunpack.c.h.b16 %v104
    %v820 = vunpack.c.l.b16 %v105
    %v821 = vunpack.c.h.b16 %v105
    %v822 = vunpack.c.l.b16 %v106
    %v823 = vunpack.c.h.b16 %v106
    %v824 = vunpack.c.l.b16 %v107
    %v825 = vunpack.c.h.b16 %v107
    %v826 = vunpack.c.l.b16 %v108
    %v827 = vunpack.c.h.b16 %v108
    %v828 = vunpack.c.l.b16 %v109
    %v829 = vunpack.c.h.b16 %v109
    %v830 = vunpack.c.l.b16 %v110
    %v831 = vunpack.c.h.b16 %v110
    %v832 = vunpack.c.l.b16 %v111
    %v833 = vunpack.c.h.b16 %v111
    %v834 = vunpack.c.l.b16 %v112
    %v835 = vunpack.c.h.b16 %v112
    %v836 = vunpack.c.l.b16 %v113
    %v837 = vunpack.c.h.b16 %v113
    %v838 = vunpack.c.l.b16 %v114
    %v839 = vunpack.c.h.b16 %v114
    %v840 = vunpack.c.l.b16 %v115
    %v841 = vunpack.c.h.b16 %v115
    %v842 = vunpack.c.l.b16 %v116
    %v843 = vunpack.c.h.b16 %v116
    %v844 = vunpack.c.l.b16 %v117
    %v845 = vunpack.c.h.b16 %v117
    %v846 = vunpack.c.l.b16 %v118
    %v847 = vunpack.c.h.b16 %v118
    %v848 = vunpack.c.l.b16 %v119
    %v849 = vunpack.c.h.b16 %v119
    %v850 = vunpack.c.l.b16 %v120
    %v851 = vunpack.c.h.b16 %v120
    %v852 = vunpack.c.l.b16 %v121
    %v853 = vunpack.c.h.b16 %v121
    %v854 = vunpack.c.l.b16 %v122
    %v855 = vunpack.c.h.b16 %v122
    %v856 = vunpack.c.l.b16 %v123
    %v857 = vunpack.c.h.b16 %v123
    %v858 = vunpack.c.l.b16 %v124
    %v859 = vunpack.c.h.b16 %v124
    %v860 = vunpack.c.l.b16 %v125
    %v861 = vunpack.c.h.b16 %v125
    %v862 = vunpack.c.l.b16 %v126
    %v863 = vunpack.c.h.b16 %v126
    %v864 = vunpack.c.l.b16 %v127
    %v865 = vunpack.c.h.b16 %v127
    %v866 = vunpack.c.l.b16 %v128
    %v867 = vunpack.c.h.b16 %v128
    %v868 = vunpack.c.l.b16 %v129
    %v869 = vunpack.c.h.b16 %v129
    %v870 = vunpack.c.l.b16 %v130
    %v871 = vunpack.c.h.b16 %v130
    %v872 = vunpack.c.l.b16 %v131
    %v873 = vunpack.c.h.b16 %v131
    %v874 = vunpack.c.l.b16 %v132
    %v875 = vunpack.c.h.b16 %v132
    %v876 = vunpack.c.l.b16 %v133
    %v877 = vunpack.c.h.b16 %v133
    %v878 = vunpack.c.l.b16 %v134
    %v879 = vunpack.c.h.b16 %v134
    %v880 = vunpack.c.l.b16 %v135
    %v881 = vunpack.c.h.b16 %v135
    %v882 = vunpack.c.l.b16 %v136
    %v883 = vunpack.c.h.b16 %v136
    %v884 = vunpack.c.l.b16 %v137
    %v885 = vunpack.c.h.b16 %v137
    %v886 = vunpack.c.l.b16 %v138
    %v887 = vunpack.c.h.b16 %v138
    %v888 = vunpack.c.l.b16 %v139
    %v889 = vunpack.c.h.b16 %v139
    %v890 = vunpack.c.l.b16 %v140
    %v891 = vunpack.c.h.b16 %v140
    %v892 = vunpack.c.l.b16 %v141
    %v893 = vunpack.c.h.b16 %v141
    %v894 = vunpack.c.l.b16 %v142
    %v895 = vunpack.c.h.b16 %v142
    %v896 = vunpack.c.l.b16 %v143
    %v897 = vunpack.c.h.b16 %v143
    %v898 = vunpack.c.l.b16 %v144
    %v899 = vunpack.c.h.b16 %v144
    %v900 = vunpack.c.l.b16 %v145
    %v901 = vunpack.c.h.b16 %v145
    %v902 = vunpack.c.l.b16 %v146
    %v903 = vunpack.c.h.b16 %v146
    %v904 = vunpack.c.l.b16 %v147
    %v905 = vunpack.c.h.b16 %v147
    %v906 = vunpack.c.l.b16 %v148
    %v907 = vunpack.c.h.b16 %v148
    %v908 = vunpack.c.l.b16 %v149
    %v909 = vunpack.c.h.b16 %v149
    %v910 = vunpack.c.l.b16 %v150
    %v911 = vunpack.c.h.b16 %v150
    %v912 = vunpack.c.l.b16 %v151
    %v913 = vunpack.c.h.b16 %v151
    %v914 = vunpack.c.l.b16 %v152
    %v915 = vunpack.c.h.b16 %v152
    %v916 = vunpack.c.l.b16 %v153
    %v917 = vunpack.c.h.b16 %v153
    %v918 = vunpack.c.l.b16 %v154
    %v919 = vunpack.c.h.b16 %v154
    %v920 = vunpack.c.l.b16 %v155
    %v921 = vunpack.c.h.b16 %v155
    %v922 = vunpack.c.l.b16 %v156
    %v923 = vunpack.c.h.b16 %v156
    %v924 = vunpack.c.l.b16 %v157
    %v925 = vunpack.c.h.b16 %v157
    %v926 = vunpack.c.l.b16 %v158
    %v927 = vunpack.c.h.b16 %v158
    %v928 = vunpack.c.l.b16 %v159
    %v929 = vunpack.c.h.b16 %v159
    %v930 = vunpack.c.l.b16 %v160
    %v931 = vunpack.c.h.b16 %v160
    %v932 = vunpack.c.l.b16 %v161
    %v933 = vunpack.c.h.b16 %v161
    %v934 = vunpack.c.l.b16 %v162
    %v935 = vunpack.c.h.b16 %v162
    %v936 = vunpack.c.l.b16 %v163
    %v937 = vunpack.c.h.b16 %v163
    %v938 = vunpack.c.l.b16 %v164
    %v939 = vunpack.c.h.b16 %v164
    %v940 = vunpack.c.l.b16 %v165
    %v941 = vunpack.c.h.b16 %v165
    %v942 = vunpack.c.l.b16 %v166
    %v943 = vunpack.c.h.b16 %v166
    %v944 = vunpack.c.l.b16 %v167
    %v945 = vunpack.c.h.b16 %v167
    %v946 = vunpack.c.l.b16 %v168
    %v947 = vunpack.c.h.b16 %v168
    %v948 = vunpack.c.l.b16 %v169
    %v949 = vunpack.c.h.b16 %v169
    %v950 = vunpack.c.l.b16 %v170
    %v951 = vunpack.c.h.b16 %v170
    %v952 = vunpack.c.l.b16 %v171
    %v953 = vunpack.c.h.b16 %v171
    %v954 = vunpack.c.l.b16 %v172
    %v955 = vunpack.c.h.b16 %v172
    %v956 = vunpack.c.l.b16 %v173
    %v957 = vunpack.c.h.b16 %v173
    %v958 = vunpack.c.l.b16 %v174
    %v959 = vunpack.c.h.b16 %v174
    %v960 = vunpack.c.l.b16 %v175
    %v961 = vunpack.c.h.b16 %v175
    %v962 = vunpack.c.l.b16 %v176
    %v963 = vunpack.c.h.b16 %v176
    %v964 = vunpack.c.l.b16 %v177
    %v965 = vunpack.c.h.b16 %v177
    %v966 = vunpack.c.l.b16 %v178
    %v967 = vunpack.c.h.b16 %v178
    %v968 = vunpack.c.l.b16 %v179
    %v969 = vunpack.c.h.b16 %v179
    %v970 = vunpack.c.l.b16 %v180
    %v971 = vunpack.c.h.b16 %v180
    %v972 = vunpack.c.l.b16 %v181
    %v973 = vunpack.c.h.b16 %v181
    %v974 = vunpack.c.l.b16 %v182
    %v975 = vunpack.c.h.b16 %v182
    %v976 = vunpack.c.l.b16 %v183
    %v977 = vunpack.c.h.b16 %v183
    %v978 = vunpack.c.l.b16 %v184
    %v979 = vunpack.c.h.b16 %v184
    %v980 = vunpack.c.l.b16 %v185
    %v981 = vunpack.c.h.b16 %v185
    %v982 = vunpack.c.l.b16 %v186
    %v983 = vunpack.c.h.b16 %v186
    %v984 = vunpack.c.l.b16 %v187
    %v985 = vunpack.c.h.b16 %v187
    %v986 = vunpack.c.l.b16 %v188
    %v987 = vunpack.c.h.b16 %v188
    %v988 = vunpack.c.l.b16 %v189
    %v989 = vunpack.c.h.b16 %v189
    %v990 = vunpack.c.l.b16 %v190
    %v991 = vunpack.c.h.b16 %v190
    %v992 = vunpack.c.l.b16 %v191
    %v993 = vunpack.c.h.b16 %v191
    %v994 = vunpack.c.l.b16 %v192
    %v995 = vunpack.c.h.b16 %v192
    %v996 = vunpack.c.l.b16 %v193
    %v997 = vunpack.c.h.b16 %v193
    %v998 = vunpack.c.l.b16 %v194
    %v999 = vunpack.c.h.b16 %v194
    %v1000 = vunpack.c.l.b16 %v195
    %v1001 = vunpack.c.h.b16 %v195
    %v1002 = vunpack.c.l.b16 %v196
    %v1003 = vunpack.c.h.b16 %v196
    %v1004 = vunpack.c.l.b16 %v197
    %v1005 = vunpack.c.h.b16 %v197
    %v1006 = vunpack.c.l.b16 %v198
    %v1007 = vunpack.c.h.b16 %v198
    %v1008 = vunpack.c.l.b16 %v199
    %v1009 = vunpack.c.h.b16 %v199
    %v1010 = vunpack.c.l.b16 %v200
    %v1011 = vunpack.c.h.b16 %v200
    %v1012 = vunpack.c.l.b16 %v201
    %v1013 = vunpack.c.h.b16 %v201
    %v1014 = vunpack.c.l.b16 %v202
    %v1015 = vunpack.c.h.b16 %v202
    %v1016 = vunpack.c.l.b16 %v203
    %v1017 = vunpack.c.h.b16 %v203
    %v1018 = vunpack.c.l.b16 %v204
    %v1019 = vunpack.c.h.b16 %v204
    %v1020 = vunpack.c.l.b16 %v205
    %v1021 = vunpack.c.h.b16 %v205
    %v1022 = vunpack.c.l.b16 %v206
    %v1023 = vunpack.c.h.b16 %v206
    %v1024 = vunpack.c.l.b16 %v207
    %v1025 = vunpack.c.h.b16 %v207
    %v1026 = vunpack.c.l.b16 %v208
    %v1027 = vunpack.c.h.b16 %v208
    %v1028 = vunpack.c.l.b16 %v209
    %v1029 = vunpack.c.h.b16 %v209
    %v1030 = vunpack.c.l.b16 %v210
    %v1031 = vunpack.c.h.b16 %v210
    %v1032 = vunpack.c.l.b16 %v211
    %v1033 = vunpack.c.h.b16 %v211
    %v1034 = vunpack.c.l.b16 %v212
    %v1035 = vunpack.c.h.b16 %v212
    %v1036 = vunpack.c.l.b16 %v213
    %v1037 = vunpack.c.h.b16 %v213
    %v1038 = vunpack.c.l.b16 %v214
    %v1039 = vunpack.c.h.b16 %v214
    %v1040 = vunpack.c.l.b16 %v215
    %v1041 = vunpack.c.h.b16 %v215
    %v1042 = vunpack.c.l.b16 %v216
    %v1043 = vunpack.c.h.b16 %v216
    %v1044 = vunpack.c.l.b16 %v217
    %v1045 = vunpack.c.h.b16 %v217
    %v1046 = vunpack.c.l.b16 %v218
    %v1047 = vunpack.c.h.b16 %v218
    %v1048 = vunpack.c.l.b16 %v219
    %v1049 = vunpack.c.h.b16 %v219
    %v1050 = vunpack.c.l.b16 %v220
    %v1051 = vunpack.c.h.b16 %v220
    %v1052 = vunpack.c.l.b16 %v221
    %v1053 = vunpack.c.h.b16 %v221
    %v1054 = vunpack.c.l.b16 %v222
    %v1055 = vunpack.c.h.b16 %v222
    %v1056 = vunpack.c.l.b16 %v223
    %v1057 = vunpack.c.h.b16 %v223
    %v1058 = vunpack.c.l.b16 %v224
    %v1059 = vunpack.c.h.b16 %v224
    %v1060 = vunpack.c.l.b16 %v225
    %v1061 = vunpack.c.h.b16 %v225
    %v1062 = vunpack.c.l.b16 %v226
    %v1063 = vunpack.c.h.b16 %v226
    %v1064 = vunpack.c.l.b16 %v227
    %v1065 = vunpack.c.h.b16 %v227
    %v1066 = vunpack.c.l.b16 %v228
    %v1067 = vunpack.c.h.b16 %v228
    %v1068 = vunpack.c.l.b16 %v229
    %v1069 = vunpack.c.h.b16 %v229
    %v1070 = vunpack.c.l.b16 %v230
    %v1071 = vunpack.c.h.b16 %v230
    %v1072 = vunpack.c.l.b16 %v231
    %v1073 = vunpack.c.h.b16 %v231
    %v1074 = vunpack.c.l.b16 %v232
    %v1075 = vunpack.c.h.b16 %v232
    %v1076 = vunpack.c.l.b16 %v233
    %v1077 = vunpack.c.h.b16 %v233
    %v1078 = vunpack.c.l.b16 %v234
    %v1079 = vunpack.c.h.b16 %v234
    %v1080 = vunpack.c.l.b16 %v235
    %v1081 = vunpack.c.h.b16 %v235
    %v1082 = vunpack.c.l.b16 %v236
    %v1083 = vunpack.c.h.b16 %v236
    %v1084 = vunpack.c.l.b16 %v237
    %v1085 = vunpack.c.h.b16 %v237
    %v1086 = vunpack.c.l.b16 %v238
    %v1087 = vunpack.c.h.b16 %v238
    %v1088 = vunpack.c.l.b16 %v239
    %v1089 = vunpack.c.h.b16 %v239
    %v1090 = vunpack.c.l.b16 %v240
    %v1091 = vunpack.c.h.b16 %v240
    %v1092 = vunpack.c.l.b16 %v241
    %v1093 = vunpack.c.h.b16 %v241
    %v1094 = vunpack.c.l.b16 %v242
    %v1095 = vunpack.c.h.b16 %v242
    %v1096 = vunpack.c.l.b16 %v243
    %v1097 = vunpack.c.h.b16 %v243
    %v1098 = vunpack.c.l.b16 %v244
    %v1099 = vunpack.c.h.b16 %v244
    %v1100 = vunpack.c.l.b16 %v245
    %v1101 = vunpack.c.h.b16 %v245
    %v1102 = vunpack.c.l.b16 %v246
    %v1103 = vunpack.c.h.b16 %v246
    %v1104 = vunpack.c.l.b16 %v247
    %v1105 = vunpack.c.h.b16 %v247
    %v1106 = vunpack.c.l.b16 %v248
    %v1107 = vunpack.c.h.b16 %v248
    %v1108 = vunpack.c.l.b16 %v249
    %v1109 = vunpack.c.h.b16 %v249
    %v1110 = vunpack.c.l.b16 %v250
    %v1111 = vunpack.c.h.b16 %v250
    %v1112 = vunpack.c.l.b16 %v251
    %v1113 = vunpack.c.h.b16 %v251
    %v1114 = vunpack.c.l.b16 %v252
    %v1115 = vunpack.c.h.b16 %v252
    %v1116 = vunpack.c.l.b16 %v253
    %v1117 = vunpack.c.h.b16 %v253
    %v1118 = vunpack.c.l.b16 %v254
    %v1119 = vunpack.c.h.b16 %v254
    %v1120 = vunpack.c.l.b16 %v255
    %v1121 = vunpack.c.h.b16 %v255
    %v1122 = vunpack.c.l.b16 %v256
    %v1123 = vunpack.c.h.b16 %v256
    %v1124 = vunpack.c.l.b16 %v257
    %v1125 = vunpack.c.h.b16 %v257
    %v1126 = vunpack.c.l.b16 %v258
    %v1127 = vunpack.c.h.b16 %v258
    %v1128 = vunpack.c.l.b16 %v259
    %v1129 = vunpack.c.h.b16 %v259
    %v1130 = vunpack.c.l.b16 %v260
    %v1131 = vunpack.c.h.b16 %v260
    %v1132 = vunpack.c.l.b16 %v261
    %v1133 = vunpack.c.h.b16 %v261
    %v1134 = vunpack.c.l.b16 %v262
    %v1135 = vunpack.c.h.b16 %v262
    %v1136 = vunpack.c.l.b16 %v263
    %v1137 = vunpack.c.h.b16 %v263
    %v1138 = vunpack.c.l.b16 %v264
    %v1139 = vunpack.c.h.b16 %v264
    %v1140 = vunpack.c.l.b16 %v265
    %v1141 = vunpack.c.h.b16 %v265
    %v1142 = vunpack.c.l.b16 %v266
    %v1143 = vunpack.c.h.b16 %v266
    %v1144 = vunpack.c.l.b16 %v267
    %v1145 = vunpack.c.h.b16 %v267
    %v1146 = vunpack.c.l.b16 %v268
    %v1147 = vunpack.c.h.b16 %v268
    %v1148 = vunpack.c.l.b16 %v269
    %v1149 = vunpack.c.h.b16 %v269
    %v1150 = vunpack.c.l.b16 %v270
    %v1151 = vunpack.c.h.b16 %v270
    %v1152 = vunpack.c.l.b16 %v271
    %v1153 = vunpack.c.h.b16 %v271
    %v1154 = vunpack.c.l.b16 %v272
    %v1155 = vunpack.c.h.b16 %v272
    %v1156 = vunpack.c.l.b16 %v273
    %v1157 = vunpack.c.h.b16 %v273
    %v1158 = vunpack.c.l.b16 %v274
    %v1159 = vunpack.c.h.b16 %v274
    %v1160 = vunpack.c.l.b16 %v275
    %v1161 = vunpack.c.h.b16 %v275
    %v1162 = vunpack.c.l.b16 %v276
    %v1163 = vunpack.c.h.b16 %v276
    %v1164 = vunpack.c.l.b16 %v277
    %v1165 = vunpack.c.h.b16 %v277
    %v1166 = vunpack.c.l.b16 %v278
    %v1167 = vunpack.c.h.b16 %v278
    %v1168 = vunpack.c.l.b16 %v279
    %v1169 = vunpack.c.h.b16 %v279
    %v1170 = vunpack.c.l.b16 %v280
    %v1171 = vunpack.c.h.b16 %v280
    %v1172 = vunpack.c.l.b16 %v281
    %v1173 = vunpack.c.h.b16 %v281
    %v1174 = vunpack.c.l.b16 %v282
    %v1175 = vunpack.c.h.b16 %v282
    %v1176 = vunpack.c.l.b16 %v283
    %v1177 = vunpack.c.h.b16 %v283
    %v1178 = vunpack.c.l.b16 %v284
    %v1179 = vunpack.c.h.b16 %v284
    %v1180 = vunpack.c.l.b16 %v285
    %v1181 = vunpack.c.h.b16 %v285
    %v1182 = vunpack.c.l.b16 %v286
    %v1183 = vunpack.c.h.b16 %v286
    %v1184 = vunpack.c.l.b16 %v287
    %v1185 = vunpack.c.h.b16 %v287
    %v1186 = vunpack.c.l.b16 %v288
    %v1187 = vunpack.c.h.b16 %v288
    %v1188 = vunpack.c.l.b16 %v289
    %v1189 = vunpack.c.h.b16 %v289
    %v1190 = vunpack.c.l.b16 %v290
    %v1191 = vunpack.c.h.b16 %v290
    %v1192 = vunpack.c.l.b16 %v291
    %v1193 = vunpack.c.h.b16 %v291
    %v1194 = vunpack.c.l.b16 %v292
    %v1195 = vunpack.c.h.b16 %v292
    %v1196 = vunpack.c.l.b16 %v293
    %v1197 = vunpack.c.h.b16 %v293
    %v1198 = vunpack.c.l.b16 %v294
    %v1199 = vunpack.c.h.b16 %v294
    %v1200 = vunpack.c.l.b16 %v295
    %v1201 = vunpack.c.h.b16 %v295
    %v1202 = vunpack.c.l.b16 %v296
    %v1203 = vunpack.c.h.b16 %v296
    %v1204 = vunpack.c.l.b16 %v297
    %v1205 = vunpack.c.h.b16 %v297
    %v1206 = vunpack.c.l.b16 %v298
    %v1207 = vunpack.c.h.b16 %v298
    %v1208 = vunpack.c.l.b16 %v299
    %v1209 = vunpack.c.h.b16 %v299
    %v1210 = vunpack.c.l.b16 %v300
    %v1211 = vunpack.c.h.b16 %v300
    %v1212 = vunpack.c.l.b16 %v301
    %v1213 = vunpack.c.h.b16 %v301
    %v1214 = vunpack.c.l.b16 %v302
    %v1215 = vunpack.c.h.b16 %v302
    %v1216 = vunpack.c.l.b16 %v303
    %v1217 = vunpack.c.h.b16 %v303
    %v1218 = vunpack.c.l.b16 %v304
    %v1219 = vunpack.c.h.b16 %v304
    %v1220 = vunpack.c.l.b16 %v305
    %v1221 = vunpack.c.h.b16 %v305
    %v1222 = vunpack.c.l.b16 %v306
    %v1223 = vunpack.c.h.b16 %v306
    %v1224 = vunpack.c.l.b16 %v307
    %v1225 = vunpack.c.h.b16 %v307
    %v1226 = vunpack.c.l.b16 %v308
    %v1227 = vunpack.c.h.b16 %v308
    %v1228 = vunpack.c.l.b16 %v309
    %v1229 = vunpack.c.h.b16 %v309
    %v1230 = vunpack.c.l.b16 %v310
    %v1231 = vunpack.c.h.b16 %v310
    %v1232 = vunpack.c.l.b16 %v311
    %v1233 = vunpack.c.h.b16 %v311
    %v1234 = vunpack.c.l.b16 %v312
    %v1235 = vunpack.c.h.b16 %v312
    %v1236 = vunpack.c.l.b16 %v313
    %v1237 = vunpack.c.h.b16 %v313
    %v1238 = vunpack.c.l.b16 %v314
    %v1239 = vunpack.c.h.b16 %v314
    %v1240 = vunpack.c.l.b16 %v315
    %v1241 = vunpack.c.h.b16 %v315
    %v1242 = vunpack.c.l.b16 %v316
    %v1243 = vunpack.c.h.b16 %v316
    %v1244 = vunpack.c.l.b16 %v317
    %v1245 = vunpack.c.h.b16 %v317
    %v1246 = vunpack.c.l.b16 %v318
    %v1247 = vunpack.c.h.b16 %v318
    %v1248 = vunpack.c.l.b16 %v319
    %v1249 = vunpack.c.h.b16 %v319
    %v1250 = vunpack.c.l.b16 %v320
    %v1251 = vunpack.c.h.b16 %v320
    %v1252 = vunpack.c.l.b16 %v321
    %v1253 = vunpack.c.h.b16 %v321
    %v1254 = vunpack.c.l.b16 %v322
    %v1255 = vunpack.c.h.b16 %v322
    %v1256 = vunpack.c.l.b16 %v323
    %v1257 = vunpack.c.h.b16 %v323
    %v1258 = vunpack.c.l.b16 %v324
    %v1259 = vunpack.c.h.b16 %v324
    %v1260 = vunpack.c.l.b16 %v325
    %v1261 = vunpack.c.h.b16 %v325
    %v1262 = vunpack.c.l.b16 %v326
    %v1263 = vunpack.c.h.b16 %v326
    %v1264 = vunpack.c.l.b16 %v327
    %v1265 = vunpack.c.h.b16 %v327
    %v1266 = vunpack.c.l.b16 %v328
    %v1267 = vunpack.c.h.b16 %v328
    %v1268 = vunpack.c.l.b16 %v329
    %v1269 = vunpack.c.h.b16 %v329
    %v1270 = vunpack.c.l.b16 %v330
    %v1271 = vunpack.c.h.b16 %v330
    %v1272 = vunpack.c.l.b16 %v331
    %v1273 = vunpack.c.h.b16 %v331
    %v1274 = vunpack.c.l.b16 %v332
    %v1275 = vunpack.c.h.b16 %v332
    %v1276 = vunpack.c.l.b16 %v333
    %v1277 = vunpack.c.h.b16 %v333
    %v1278 = vunpack.c.l.b16 %v334
    %v1279 = vunpack.c.h.b16 %v334
    %v1280 = vunpack.c.l.b16 %v335
    %v1281 = vunpack.c.h.b16 %v335
    %v1282 = vunpack.c.l.b16 %v336
    %v1283 = vunpack.c.h.b16 %v336
    %v1284 = vunpack.c.l.b16 %v337
    %v1285 = vunpack.c.h.b16 %v337
    %v1286 = vunpack.c.l.b16 %v338
    %v1287 = vunpack.c.h.b16 %v338
    %v1288 = vunpack.c.l.b16 %v339
    %v1289 = vunpack.c.h.b16 %v339
    %v1290 = vunpack.c.l.b16 %v340
    %v1291 = vunpack.c.h.b16 %v340
    %v1292 = vunpack.c.l.b16 %v341
    %v1293 = vunpack.c.h.b16 %v341
    %v1294 = vunpack.c.l.b16 %v342
    %v1295 = vunpack.c.h.b16 %v342
    %v1296 = vunpack.c.l.b16 %v343
    %v1297 = vunpack.c.h.b16 %v343
    %v1298 = vunpack.c.l.b16 %v344
    %v1299 = vunpack.c.h.b16 %v344
    %v1300 = vunpack.c.l.b16 %v345
    %v1301 = vunpack.c.h.b16 %v345
    %v1302 = vunpack.c.l.b16 %v346
    %v1303 = vunpack.c.h.b16 %v346
    %v1304 = vunpack.c.l.b16 %v347
    %v1305 = vunpack.c.h.b16 %v347
    %v1306 = vunpack.c.l.b16 %v348
    %v1307 = vunpack.c.h.b16 %v348
    %v1308 = vunpack.c.l.b16 %v349
    %v1309 = vunpack.c.h.b16 %v349
    %v1310 = vunpack.c.l.b16 %v350
    %v1311 = vunpack.c.h.b16 %v350
    %v1312 = vunpack.c.l.b16 %v351
    %v1313 = vunpack.c.h.b16 %v351
    %v1314 = vunpack.c.l.b16 %v352
    %v1315 = vunpack.c.h.b16 %v352
    %v1316 = vunpack.c.l.b16 %v353
    %v1317 = vunpack.c.h.b16 %v353
    %v1318 = vunpack.c.l.b16 %v354
    %v1319 = vunpack.c.h.b16 %v354
    %v1320 = vunpack.c.l.b16 %v355
    %v1321 = vunpack.c.h.b16 %v355
    %v1322 = vunpack.c.l.b16 %v356
    %v1323 = vunpack.c.h.b16 %v356
    %v1324 = vunpack.c.l.b16 %v357
    %v1325 = vunpack.c.h.b16 %v357
    %v1326 = vunpack.c.l.b16 %v358
    %v1327 = vunpack.c.h.b16 %v358
    %v1328 = vunpack.c.l.b16 %v359
    %v1329 = vunpack.c.h.b16 %v359
    %v1330 = vpack.c.b16 %v826, %v818
    %v1331 = vpack.c.b16 %v827, %v819
    %v1332 = vpack.c.b16 %v828, %v820
    %v1333 = vpack.c.b16 %v829, %v821
    %v1334 = vpack.c.b16 %v830, %v822
    %v1335 = vpack.c.b16 %v831, %v823
    %v1336 = vpack.c.b16 %v832, %v824
    %v1337 = vpack.c.b16 %v833, %v825
    %v1338 = vpack.c.b16 %v842, %v834
    %v1339 = vpack.c.b16 %v843, %v835
    %v1340 = vpack.c.b16 %v844, %v836
    %v1341 = vpack.c.b16 %v845, %v837
    %v1342 = vpack.c.b16 %v846, %v838
    %v1343 = vpack.c.b16 %v847, %v839
    %v1344 = vpack.c.b16 %v848, %v840
    %v1345 = vpack.c.b16 %v849, %v841
    %v1346 = vpack.c.b16 %v858, %v850
    %v1347 = vpack.c.b16 %v859, %v851
    %v1348 = vpack.c.b16 %v860, %v852
    %v1349 = vpack.c.b16 %v861, %v853
    %v1350 = vpack.c.b16 %v862, %v854
    %v1351 = vpack.c.b16 %v863, %v855
    %v1352 = vpack.c.b16 %v864, %v856
    %v1353 = vpack.c.b16 %v865, %v857
    %v1354 = vpack.c.b16 %v874, %v866
    %v1355 = vpack.c.b16 %v875, %v867
    %v1356 = vpack.c.b16 %v876, %v868
    %v1357 = vpack.c.b16 %v877, %v869
    %v1358 = vpack.c.b16 %v878, %v870
    %v1359 = vpack.c.b16 %v879, %v871
    %v1360 = vpack.c.b16 %v880, %v872
    %v1361 = vpack.c.b16 %v881, %v873
    %v1362 = vpack.c.b16 %v890, %v882
    %v1363 = vpack.c.b16 %v891, %v883
    %v1364 = vpack.c.b16 %v892, %v884
    %v1365 = vpack.c.b16 %v893, %v885
    %v1366 = vpack.c.b16 %v894, %v886
    %v1367 = vpack.c.b16 %v895, %v887
    %v1368 = vpack.c.b16 %v896, %v888
    %v1369 = vpack.c.b16 %v897, %v889
    %v1370 = vpack.c.b16 %v906, %v898
    %v1371 = vpack.c.b16 %v907, %v899
    %v1372 = vpack.c.b16 %v908, %v900
    %v1373 = vpack.c.b16 %v909, %v901
    %v1374 = vpack.c.b16 %v910, %v902
    %v1375 = vpack.c.b16 %v911, %v903
    %v1376 = vpack.c.b16 %v912, %v904
    %v1377 = vpack.c.b16 %v913, %v905
    %v1378 = vpack.c.b16 %v922, %v914
    %v1379 = vpack.c.b16 %v923, %v915
    %v1380 = vpack.c.b16 %v924, %v916
    %v1381 = vpack.c.b16 %v925, %v917
    %v1382 = vpack.c.b16 %v926, %v918
    %v1383 = vpack.c.b16 %v927, %v919
    %v1384 = vpack.c.b16 %v928, %v920
    %v1385 = vpack.c.b16 %v929, %v921
    %v1386 = vpack.c.b16 %v938, %v930
    %v1387 = vpack.c.b16 %v939, %v931
    %v1388 = vpack.c.b16 %v940, %v932
    %v1389 = vpack.c.b16 %v941, %v933
    %v1390 = vpack.c.b16 %v942, %v934
    %v1391 = vpack.c.b16 %v943, %v935
    %v1392 = vpack.c.b16 %v944, %v936
    %v1393 = vpack.c.b16 %v945, %v937
    %v1394 = vpack.c.b16 %v954, %v946
    %v1395 = vpack.c.b16 %v955, %v947
    %v1396 = vpack.c.b16 %v956, %v948
    %v1397 = vpack.c.b16 %v957, %v949
    %v1398 = vpack.c.b16 %v958, %v950
    %v1399 = vpack.c.b16 %v959, %v951
    %v1400 = vpack.c.b16 %v960, %v952
    %v1401 = vpack.c.b16 %v961, %v953
    %v1402 = vpack.c.b16 %v970, %v962
    %v1403 = vpack.c.b16 %v971, %v963
    %v1404 = vpack.c.b16 %v972, %v964
    %v1405 = vpack.c.b16 %v973, %v965
    %v1406 = vpack.c.b16 %v974, %v966
    %v1407 = vpack.c.b16 %v975, %v967
    %v1408 = vpack.c.b16 %v976, %v968
    %v1409 = vpack.c.b16 %v977, %v969
    %v1410 = vpack.c.b16 %v986, %v978
    %v1411 = vpack.c.b16 %v987, %v979
    %v1412 = vpack.c.b16 %v988, %v980
    %v1413 = vpack.c.b16 %v989, %v981
    %v1414 = vpack.c.b16 %v990, %v982
    %v1415 = vpack.c.b16 %v991, %v983
    %v1416 = vpack.c.b16 %v992, %v984
    %v1417 = vpack.c.b16 %v993, %v985
    %v1418 = vpack.c.b16 %v1002, %v994
    %v1419 = vpack.c.b16 %v1003, %v995
    %v1420 = vpack.c.b16 %v1004, %v996
    %v1421 = vpack.c.b16 %v1005, %v997
    %v1422 = vpack.c.b16 %v1006, %v998
    %v1423 = vpack.c.b16 %v1007, %v999
    %v1424 = vpack.c.b16 %v1008, %v1000
    %v1425 = vpack.c.b16 %v1009, %v1001
    %v1426 = vpack.c.b16 %v1018, %v1010
    %v1427 = vpack.c.b16 %v1019, %v1011
    %v1428 = vpack.c.b16 %v1020, %v1012
    %v1429 = vpack.c.b16 %v1021, %v1013
    %v1430 = vpack.c.b16 %v1022, %v1014
    %v1431 = vpack.c.b16 %v1023, %v1015
    %v1432 = vpack.c.b16 %v1024, %v1016
    %v1433 = vpack.c.b16 %v1025, %v1017
    %v1434 = vpack.c.b16 %v1034, %v1026
    %v1435 = vpack.c.b16 %v1035, %v1027
    %v1436 = vpack.c.b16 %v1036, %v1028
    %v1437 = vpack.c.b16 %v1037, %v1029
    %v1438 = vpack.c.b16 %v1038, %v1030
    %v1439 = vpack.c.b16 %v1039, %v1031
    %v1440 = vpack.c.b16 %v1040, %v1032
    %v1441 = vpack.c.b16 %v1041, %v1033
    %v1442 = vpack.c.b16 %v1050, %v1042
    %v1443 = vpack.c.b16 %v1051, %v1043
    %v1444 = vpack.c.b16 %v1052, %v1044
    %v1445 = vpack.c.b16 %v1053, %v1045
    %v1446 = vpack.c.b16 %v1054, %v1046
    %v1447 = vpack.c.b16 %v1055, %v1047
    %v1448 = vpack.c.b16 %v1056, %v1048
    %v1449 = vpack.c.b16 %v1057, %v1049
    %v1450 = vpack.c.b16 %v1066, %v1058
    %v1451 = vpack.c.b16 %v1067, %v1059
    %v1452 = vpack.c.b16 %v1068, %v1060
    %v1453 = vpack.c.b16 %v1069, %v1061
    %v1454 = vpack.c.b16 %v1070, %v1062
    %v1455 = vpack.c.b16 %v1071, %v1063
    %v1456 = vpack.c.b16 %v1072, %v1064
    %v1457 = vpack.c.b16 %v1073, %v1065
    %v1458 = vpack.c.b16 %v1082, %v1074
    %v1459 = vpack.c.b16 %v1083, %v1075
    %v1460 = vpack.c.b16 %v1084, %v1076
    %v1461 = vpack.c.b16 %v1085, %v1077
    %v1462 = vpack.c.b16 %v1086, %v1078
    %v1463 = vpack.c.b16 %v1087, %v1079
    %v1464 = vpack.c.b16 %v1088, %v1080
    %v1465 = vpack.c.b16 %v1089, %v1081
    %v1466 = vpack.c.b16 %v1098, %v1090
    %v1467 = vpack.c.b16 %v1099, %v1091
    %v1468 = vpack.c.b16 %v1100, %v1092
    %v1469 = vpack.c.b16 %v1101, %v1093
    %v1470 = vpack.c.b16 %v1102, %v1094
    %v1471 = vpack.c.b16 %v1103, %v1095
    %v1472 = vpack.c.b16 %v1104, %v1096
    %v1473 = vpack.c.b16 %v1105, %v1097
    %v1474 = vpack.c.b16 %v1114, %v1106
    %v1475 = vpack.c.b16 %v1115, %v1107
    %v1476 = vpack.c.b16 %v1116, %v1108
    %v1477 = vpack.c.b16 %v1117, %v1109
    %v1478 = vpack.c.b16 %v1118, %v1110
    %v1479 = vpack.c.b16 %v1119, %v1111
    %v1480 = vpack.c.b16 %v1120, %v1112
    %v1481 = vpack.c.b16 %v1121, %v1113
    %v1482 = vpack.c.b16 %v1130, %v1122
    %v1483 = vpack.c.b16 %v1131, %v1123
    %v1484 = vpack.c.b16 %v1132, %v1124
    %v1485 = vpack.c.b16 %v1133, %v1125
    %v1486 = vpack.c.b16 %v1134, %v1126
    %v1487 = vpack.c.b16 %v1135, %v1127
    %v1488 = vpack.c.b16 %v1136, %v1128
    %v1489 = vpack.c.b16 %v1137, %v1129
    %v1490 = vpack.c.b16 %v1146, %v1138
    %v1491 = vpack.c.b16 %v1147, %v1139
    %v1492 = vpack.c.b16 %v1148, %v1140
    %v1493 = vpack.c.b16 %v1149, %v1141
    %v1494 = vpack.c.b16 %v1150, %v1142
    %v1495 = vpack.c.b16 %v1151, %v1143
    %v1496 = vpack.c.b16 %v1152, %v1144
    %v1497 = vpack.c.b16 %v1153, %v1145
    %v1498 = vpack.c.b16 %v1162, %v1154
    %v1499 = vpack.c.b16 %v1163, %v1155
    %v1500 = vpack.c.b16 %v1164, %v1156
    %v1501 = vpack.c.b16 %v1165, %v1157
    %v1502 = vpack.c.b16 %v1166, %v1158
    %v1503 = vpack.c.b16 %v1167, %v1159
    %v1504 = vpack.c.b16 %v1168, %v1160
    %v1505 = vpack.c.b16 %v1169, %v1161
    %v1506 = vpack.c.b16 %v1178, %v1170
    %v1507 = vpack.c.b16 %v1179, %v1171
    %v1508 = vpack.c.b16 %v1180, %v1172
    %v1509 = vpack.c.b16 %v1181, %v1173
    %v1510 = vpack.c.b16 %v1182, %v1174
    %v1511 = vpack.c.b16 %v1183, %v1175
    %v1512 = vpack.c.b16 %v1184, %v1176
    %v1513 = vpack.c.b16 %v1185, %v1177
    %v1514 = vpack.c.b16 %v1194, %v1186
    %v1515 = vpack.c.b16 %v1195, %v1187
    %v1516 = vpack.c.b16 %v1196, %v1188
    %v1517 = vpack.c.b16 %v1197, %v1189
    %v1518 = vpack.c.b16 %v1198, %v1190
    %v1519 = vpack.c.b16 %v1199, %v1191
    %v1520 = vpack.c.b16 %v1200, %v1192
    %v1521 = vpack.c.b16 %v1201, %v1193
    %v1522 = vpack.c.b16 %v1210, %v1202
    %v1523 = vpack.c.b16 %v1211, %v1203
    %v1524 = vpack.c.b16 %v1212, %v1204
    %v1525 = vpack.c.b16 %v1213, %v1205
    %v1526 = vpack.c.b16 %v1214, %v1206
    %v1527 = vpack.c.b16 %v1215, %v1207
    %v1528 = vpack.c.b16 %v1216, %v1208
    %v1529 = vpack.c.b16 %v1217, %v1209
    %v1530 = vpack.c.b16 %v1226, %v1218
    %v1531 = vpack.c.b16 %v1227, %v1219
    %v1532 = vpack.c.b16 %v1228, %v1220
    %v1533 = vpack.c.b16 %v1229, %v1221
    %v1534 = vpack.c.b16 %v1230, %v1222
    %v1535 = vpack.c.b16 %v1231, %v1223
    %v1536 = vpack.c.b16 %v1232, %v1224
    %v1537 = vpack.c.b16 %v1233, %v1225
    %v1538 = vpack.c.b16 %v1242, %v1234
    %v1539 = vpack.c.b16 %v1243, %v1235
    %v1540 = vpack.c.b16 %v1244, %v1236
    %v1541 = vpack.c.b16 %v1245, %v1237
    %v1542 = vpack.c.b16 %v1246, %v1238
    %v1543 = vpack.c.b16 %v1247, %v1239
    %v1544 = vpack.c.b16 %v1248, %v1240
    %v1545 = vpack.c.b16 %v1249, %v1241
    %v1546 = vpack.c.b16 %v1258, %v1250
    %v1547 = vpack.c.b16 %v1259, %v1251
    %v1548 = vpack.c.b16 %v1260, %v1252
    %v1549 = vpack.c.b16 %v1261, %v1253
    %v1550 = vpack.c.b16 %v1262, %v1254
    %v1551 = vpack.c.b16 %v1263, %v1255
    %v1552 = vpack.c.b16 %v1264, %v1256
    %v1553 = vpack.c.b16 %v1265, %v1257
    %v1554 = vpack.c.b16 %v1274, %v1266
    %v1555 = vpack.c.b16 %v1275, %v1267
    %v1556 = vpack.c.b16 %v1276, %v1268
    %v1557 = vpack.c.b16 %v1277, %v1269
    %v1558 = vpack.c.b16 %v1278, %v1270
    %v1559 = vpack.c.b16 %v1279, %v1271
    %v1560 = vpack.c.b16 %v1280, %v1272
    %v1561 = vpack.c.b16 %v1281, %v1273
    %v1562 = vpack.c.b16 %v1290, %v1282
    %v1563 = vpack.c.b16 %v1291, %v1283
    %v1564 = vpack.c.b16 %v1292, %v1284
    %v1565 = vpack.c.b16 %v1293, %v1285
    %v1566 = vpack.c.b16 %v1294, %v1286
    %v1567 = vpack.c.b16 %v1295, %v1287
    %v1568 = vpack.c.b16 %v1296, %v1288
    %v1569 = vpack.c.b16 %v1297, %v1289
    %v1570 = vpack.c.b16 %v1306, %v1298
    %v1571 = vpack.c.b16 %v1307, %v1299
    %v1572 = vpack.c.b16 %v1308, %v1300
    %v1573 = vpack.c.b16 %v1309, %v1301
    %v1574 = vpack.c.b16 %v1310, %v1302
    %v1575 = vpack.c.b16 %v1311, %v1303
    %v1576 = vpack.c.b16 %v1312, %v1304
    %v1577 = vpack.c.b16 %v1313, %v1305
    %v1578 = vpack.c.b16 %v1322, %v1314
    %v1579 = vpack.c.b16 %v1323, %v1315
    %v1580 = vpack.c.b16 %v1324, %v1316
    %v1581 = vpack.c.b16 %v1325, %v1317
    %v1582 = vpack.c.b16 %v1326, %v1318
    %v1583 = vpack.c.b16 %v1327, %v1319
    %v1584 = vpack.c.b16 %v1328, %v1320
    %v1585 = vpack.c.b16 %v1329, %v1321
    %1842 = vmatprep.subr.bf16.mxu0 %v1387
    %1843 = vmatpush1.bf16.msra.mxu0 %v1386
    %1844 = vmatprep.subr.bf16.mxu0 %v1379
    %1845 = vmatpush1.bf16.msra.mxu0 %v1378
    %1846 = vmatprep.subr.bf16.mxu0 %v1371
    %1847 = vmatpush1.bf16.msra.mxu0 %v1370
    %1848 = vmatprep.subr.bf16.mxu0 %v1363
    %1849 = vmatpush1.bf16.msra.mxu0 %v1362
    %1850 = vmatprep.subr.bf16.mxu0 %v1355
    %1851 = vmatpush1.bf16.msra.mxu0 %v1354
    %1852 = vmatprep.subr.bf16.mxu0 %v1347
    %1853 = vmatpush1.bf16.msra.mxu0 %v1346
    %1854 = vmatprep.subr.bf16.mxu0 %v1339
    %1855 = vmatpush1.bf16.msra.mxu0 %v1338
    %1856 = vmatprep.subr.bf16.mxu0 %v1331
    %1857 = vmatpush1.bf16.msra.mxu0 %v1330
    %1858 = vmatprep.subr.bf16.mxu0 %v1451
    %1859 = vmatpush2.bf16.msra.mxu0 %v1450
    %1860 = vmatprep.subr.bf16.mxu0 %v1443
    %1861 = vmatpush2.bf16.msra.mxu0 %v1442
    %1862 = vmatprep.subr.bf16.mxu0 %v1435
    %1863 = vmatpush2.bf16.msra.mxu0 %v1434
    %1864 = vmatprep.subr.bf16.mxu0 %v1427
    %1865 = vmatpush2.bf16.msra.mxu0 %v1426
    %1866 = vmatprep.subr.bf16.mxu0 %v1419
    %1867 = vmatpush2.bf16.msra.mxu0 %v1418
    %1868 = vmatprep.subr.bf16.mxu0 %v1411
    %1869 = vmatpush2.bf16.msra.mxu0 %v1410
    %1870 = vmatprep.subr.bf16.mxu0 %v1403
    %1871 = vmatpush2.bf16.msra.mxu0 %v1402
    %1872 = vmatprep.subr.bf16.mxu0 %v1395
    %1873 = vmatpush2.bf16.msra.mxu0 %v1394
    %1874 = vmatprep.mubr.bf16.mxu0 %v499
    %1875 = vmatmul.mubr.bf16.gmra.mxu0 %v498
    %v1876 = vpop.f32.mrf.mxu0
    %v1877 = vadd.f32 %v365, %v1876
    %v1878 = vpop.f32.mrf.mxu0
    %v1879 = vadd.f32 %v369, %v1878
    %v1880 = vpop.f32.mrf.mxu0
    %v1881 = vadd.f32 %v365, %v1880
    %v1882 = vpop.f32.mrf.mxu0
    %v1883 = vadd.f32 %v369, %v1882
    %1884 = vmatprep.mubr.bf16.mxu0 %v503
    %1885 = vmatmul.mubr.bf16.gmra.mxu0 %v502
    %v1886 = vpop.f32.mrf.mxu0
    %v1887 = vadd.f32 %v365, %v1886
    %v1888 = vpop.f32.mrf.mxu0
    %v1889 = vadd.f32 %v369, %v1888
    %v1890 = vpop.f32.mrf.mxu0
    %v1891 = vadd.f32 %v365, %v1890
    %v1892 = vpop.f32.mrf.mxu0
    %v1893 = vadd.f32 %v369, %v1892
    %1894 = vmatprep.mubr.bf16.mxu0 %v507
    %1895 = vmatmul.mubr.bf16.gmra.mxu0 %v506
    %v1896 = vpop.f32.mrf.mxu0
    %v1897 = vadd.f32 %v365, %v1896
    %v1898 = vpop.f32.mrf.mxu0
    %v1899 = vadd.f32 %v369, %v1898
    %v1900 = vpop.f32.mrf.mxu0
    %v1901 = vadd.f32 %v365, %v1900
    %v1902 = vpop.f32.mrf.mxu0
    %v1903 = vadd.f32 %v369, %v1902
    %1904 = vmatprep.mubr.bf16.mxu0 %v511
    %1905 = vmatmul.mubr.bf16.gmra.mxu0 %v510
    %v1906 = vpop.f32.mrf.mxu0
    %v1907 = vadd.f32 %v365, %v1906
    %v1908 = vpop.f32.mrf.mxu0
    %v1909 = vadd.f32 %v369, %v1908
    %v1910 = vpop.f32.mrf.mxu0
    %v1911 = vadd.f32 %v365, %v1910
    %v1912 = vpop.f32.mrf.mxu0
    %v1913 = vadd.f32 %v369, %v1912
    %1914 = vmatprep.mubr.bf16.mxu0 %v515
    %1915 = vmatmul.mubr.bf16.gmra.mxu0 %v514
    %v1916 = vpop.f32.mrf.mxu0
    %v1917 = vadd.f32 %v365, %v1916
    %v1918 = vpop.f32.mrf.mxu0
    %v1919 = vadd.f32 %v369, %v1918
    %v1920 = vpop.f32.mrf.mxu0
    %v1921 = vadd.f32 %v365, %v1920
    %v1922 = vpop.f32.mrf.mxu0
    %v1923 = vadd.f32 %v369, %v1922
    %1924 = vmatprep.mubr.bf16.mxu0 %v519
    %1925 = vmatmul.mubr.bf16.gmra.mxu0 %v518
    %v1926 = vpop.f32.mrf.mxu0
    %v1927 = vadd.f32 %v365, %v1926
    %v1928 = vpop.f32.mrf.mxu0
    %v1929 = vadd.f32 %v369, %v1928
    %v1930 = vpop.f32.mrf.mxu0
    %v1931 = vadd.f32 %v365, %v1930
    %v1932 = vpop.f32.mrf.mxu0
    %v1933 = vadd.f32 %v369, %v1932
    %1934 = vmatprep.mubr.bf16.mxu0 %v523
    %1935 = vmatmul.mubr.bf16.gmra.mxu0 %v522
    %v1936 = vpop.f32.mrf.mxu0
    %v1937 = vadd.f32 %v365, %v1936
    %v1938 = vpop.f32.mrf.mxu0
    %v1939 = vadd.f32 %v369, %v1938
    %v1940 = vpop.f32.mrf.mxu0
    %v1941 = vadd.f32 %v365, %v1940
    %v1942 = vpop.f32.mrf.mxu0
    %v1943 = vadd.f32 %v369, %v1942
    %1944 = vmatprep.mubr.bf16.mxu0 %v527
    %1945 = vmatmul.mubr.bf16.gmra.mxu0 %v526
    %v1946 = vpop.f32.mrf.mxu0
    %v1947 = vadd.f32 %v365, %v1946
    %v1948 = vpop.f32.mrf.mxu0
    %v1949 = vadd.f32 %v369, %v1948
    %v1950 = vpop.f32.mrf.mxu0
    %v1951 = vadd.f32 %v365, %v1950
    %v1952 = vpop.f32.mrf.mxu0
    %v1953 = vadd.f32 %v369, %v1952
    %1954 = vdwg.mxu0
    %1955 = vmatprep.subr.bf16.mxu0 %v1515
    %1956 = vmatpush1.bf16.msra.mxu0 %v1514
    %1957 = vmatprep.subr.bf16.mxu0 %v1507
    %1958 = vmatpush1.bf16.msra.mxu0 %v1506
    %1959 = vmatprep.subr.bf16.mxu0 %v1499
    %1960 = vmatpush1.bf16.msra.mxu0 %v1498
    %1961 = vmatprep.subr.bf16.mxu0 %v1491
    %1962 = vmatpush1.bf16.msra.mxu0 %v1490
    %1963 = vmatprep.subr.bf16.mxu0 %v1483
    %1964 = vmatpush1.bf16.msra.mxu0 %v1482
    %1965 = vmatprep.subr.bf16.mxu0 %v1475
    %1966 = vmatpush1.bf16.msra.mxu0 %v1474
    %1967 = vmatprep.subr.bf16.mxu0 %v1467
    %1968 = vmatpush1.bf16.msra.mxu0 %v1466
    %1969 = vmatprep.subr.bf16.mxu0 %v1459
    %1970 = vmatpush1.bf16.msra.mxu0 %v1458
    %1971 = vmatprep.subr.bf16.mxu0 %v1579
    %1972 = vmatpush2.bf16.msra.mxu0 %v1578
    %1973 = vmatprep.subr.bf16.mxu0 %v1571
    %1974 = vmatpush2.bf16.msra.mxu0 %v1570
    %1975 = vmatprep.subr.bf16.mxu0 %v1563
    %1976 = vmatpush2.bf16.msra.mxu0 %v1562
    %1977 = vmatprep.subr.bf16.mxu0 %v1555
    %1978 = vmatpush2.bf16.msra.mxu0 %v1554
    %1979 = vmatprep.subr.bf16.mxu0 %v1547
    %1980 = vmatpush2.bf16.msra.mxu0 %v1546
    %1981 = vmatprep.subr.bf16.mxu0 %v1539
    %1982 = vmatpush2.bf16.msra.mxu0 %v1538
    %1983 = vmatprep.subr.bf16.mxu0 %v1531
    %1984 = vmatpush2.bf16.msra.mxu0 %v1530
    %1985 = vmatprep.subr.bf16.mxu0 %v1523
    %1986 = vmatpush2.bf16.msra.mxu0 %v1522
    %1987 = vmatprep.mubr.bf16.mxu0 %v501
    %1988 = vmatmul.mubr.bf16.gmra.mxu0 %v500
    %v1989 = vpop.f32.mrf.mxu0
    %v1990 = vadd.f32 %v1877, %v1989
    %v1991 = vpop.f32.mrf.mxu0
    %v1992 = vadd.f32 %v1879, %v1991
    %v1993 = vpop.f32.mrf.mxu0
    %v1994 = vadd.f32 %v1881, %v1993
    %v1995 = vpop.f32.mrf.mxu0
    %v1996 = vadd.f32 %v1883, %v1995
    %1997 = vmatprep.mubr.bf16.mxu0 %v505
    %1998 = vmatmul.mubr.bf16.gmra.mxu0 %v504
    %v1999 = vpop.f32.mrf.mxu0
    %v2000 = vadd.f32 %v1887, %v1999
    %v2001 = vpop.f32.mrf.mxu0
    %v2002 = vadd.f32 %v1889, %v2001
    %v2003 = vpop.f32.mrf.mxu0
    %v2004 = vadd.f32 %v1891, %v2003
    %v2005 = vpop.f32.mrf.mxu0
    %v2006 = vadd.f32 %v1893, %v2005
    %2007 = vmatprep.mubr.bf16.mxu0 %v509
    %2008 = vmatmul.mubr.bf16.gmra.mxu0 %v508
    %v2009 = vpop.f32.mrf.mxu0
    %v2010 = vadd.f32 %v1897, %v2009
    %v2011 = vpop.f32.mrf.mxu0
    %v2012 = vadd.f32 %v1899, %v2011
    %v2013 = vpop.f32.mrf.mxu0
    %v2014 = vadd.f32 %v1901, %v2013
    %v2015 = vpop.f32.mrf.mxu0
    %v2016 = vadd.f32 %v1903, %v2015
    %2017 = vmatprep.mubr.bf16.mxu0 %v513
    %2018 = vmatmul.mubr.bf16.gmra.mxu0 %v512
    %v2019 = vpop.f32.mrf.mxu0
    %v2020 = vadd.f32 %v1907, %v2019
    %v2021 = vpop.f32.mrf.mxu0
    %v2022 = vadd.f32 %v1909, %v2021
    %v2023 = vpop.f32.mrf.mxu0
    %v2024 = vadd.f32 %v1911, %v2023
    %v2025 = vpop.f32.mrf.mxu0
    %v2026 = vadd.f32 %v1913, %v2025
    %2027 = vmatprep.mubr.bf16.mxu0 %v517
    %2028 = vmatmul.mubr.bf16.gmra.mxu0 %v516
    %v2029 = vpop.f32.mrf.mxu0
    %v2030 = vadd.f32 %v1917, %v2029
    %v2031 = vpop.f32.mrf.mxu0
    %v2032 = vadd.f32 %v1919, %v2031
    %v2033 = vpop.f32.mrf.mxu0
    %v2034 = vadd.f32 %v1921, %v2033
    %v2035 = vpop.f32.mrf.mxu0
    %v2036 = vadd.f32 %v1923, %v2035
    %2037 = vmatprep.mubr.bf16.mxu0 %v521
    %2038 = vmatmul.mubr.bf16.gmra.mxu0 %v520
    %v2039 = vpop.f32.mrf.mxu0
    %v2040 = vadd.f32 %v1927, %v2039
    %v2041 = vpop.f32.mrf.mxu0
    %v2042 = vadd.f32 %v1929, %v2041
    %v2043 = vpop.f32.mrf.mxu0
    %v2044 = vadd.f32 %v1931, %v2043
    %v2045 = vpop.f32.mrf.mxu0
    %v2046 = vadd.f32 %v1933, %v2045
    %2047 = vmatprep.mubr.bf16.mxu0 %v525
    %2048 = vmatmul.mubr.bf16.gmra.mxu0 %v524
    %v2049 = vpop.f32.mrf.mxu0
    %v2050 = vadd.f32 %v1937, %v2049
    %v2051 = vpop.f32.mrf.mxu0
    %v2052 = vadd.f32 %v1939, %v2051
    %v2053 = vpop.f32.mrf.mxu0
    %v2054 = vadd.f32 %v1941, %v2053
    %v2055 = vpop.f32.mrf.mxu0
    %v2056 = vadd.f32 %v1943, %v2055
    %2057 = vmatprep.mubr.bf16.mxu0 %v529
    %2058 = vmatmul.mubr.bf16.gmra.mxu0 %v528
    %v2059 = vpop.f32.mrf.mxu0
    %v2060 = vadd.f32 %v1947, %v2059
    %v2061 = vpop.f32.mrf.mxu0
    %v2062 = vadd.f32 %v1949, %v2061
    %v2063 = vpop.f32.mrf.mxu0
    %v2064 = vadd.f32 %v1951, %v2063
    %v2065 = vpop.f32.mrf.mxu0
    %v2066 = vadd.f32 %v1953, %v2065
    %2067 = vdwg.mxu0
    %2068 = vmatprep.subr.bf16.mxu0 %v1389
    %2069 = vmatpush1.bf16.msra.mxu0 %v1388
    %2070 = vmatprep.subr.bf16.mxu0 %v1381
    %2071 = vmatpush1.bf16.msra.mxu0 %v1380
    %2072 = vmatprep.subr.bf16.mxu0 %v1373
    %2073 = vmatpush1.bf16.msra.mxu0 %v1372
    %2074 = vmatprep.subr.bf16.mxu0 %v1365
    %2075 = vmatpush1.bf16.msra.mxu0 %v1364
    %2076 = vmatprep.subr.bf16.mxu0 %v1357
    %2077 = vmatpush1.bf16.msra.mxu0 %v1356
    %2078 = vmatprep.subr.bf16.mxu0 %v1349
    %2079 = vmatpush1.bf16.msra.mxu0 %v1348
    %2080 = vmatprep.subr.bf16.mxu0 %v1341
    %2081 = vmatpush1.bf16.msra.mxu0 %v1340
    %2082 = vmatprep.subr.bf16.mxu0 %v1333
    %2083 = vmatpush1.bf16.msra.mxu0 %v1332
    %2084 = vmatprep.subr.bf16.mxu0 %v1453
    %2085 = vmatpush2.bf16.msra.mxu0 %v1452
    %2086 = vmatprep.subr.bf16.mxu0 %v1445
    %2087 = vmatpush2.bf16.msra.mxu0 %v1444
    %2088 = vmatprep.subr.bf16.mxu0 %v1437
    %2089 = vmatpush2.bf16.msra.mxu0 %v1436
    %2090 = vmatprep.subr.bf16.mxu0 %v1429
    %2091 = vmatpush2.bf16.msra.mxu0 %v1428
    %2092 = vmatprep.subr.bf16.mxu0 %v1421
    %2093 = vmatpush2.bf16.msra.mxu0 %v1420
    %2094 = vmatprep.subr.bf16.mxu0 %v1413
    %2095 = vmatpush2.bf16.msra.mxu0 %v1412
    %2096 = vmatprep.subr.bf16.mxu0 %v1405
    %2097 = vmatpush2.bf16.msra.mxu0 %v1404
    %2098 = vmatprep.subr.bf16.mxu0 %v1397
    %2099 = vmatpush2.bf16.msra.mxu0 %v1396
    %2100 = vmatprep.mubr.bf16.mxu0 %v499
    %2101 = vmatmul.mubr.bf16.gmra.mxu0 %v498
    %v2102 = vpop.f32.mrf.mxu0
    %v2103 = vadd.f32 %v373, %v2102
    %v2104 = vpop.f32.mrf.mxu0
    %v2105 = vadd.f32 %v377, %v2104
    %v2106 = vpop.f32.mrf.mxu0
    %v2107 = vadd.f32 %v373, %v2106
    %v2108 = vpop.f32.mrf.mxu0
    %v2109 = vadd.f32 %v377, %v2108
    %2110 = vmatprep.mubr.bf16.mxu0 %v503
    %2111 = vmatmul.mubr.bf16.gmra.mxu0 %v502
    %v2112 = vpop.f32.mrf.mxu0
    %v2113 = vadd.f32 %v373, %v2112
    %v2114 = vpop.f32.mrf.mxu0
    %v2115 = vadd.f32 %v377, %v2114
    %v2116 = vpop.f32.mrf.mxu0
    %v2117 = vadd.f32 %v373, %v2116
    %v2118 = vpop.f32.mrf.mxu0
    %v2119 = vadd.f32 %v377, %v2118
    %2120 = vmatprep.mubr.bf16.mxu0 %v507
    %2121 = vmatmul.mubr.bf16.gmra.mxu0 %v506
    %v2122 = vpop.f32.mrf.mxu0
    %v2123 = vadd.f32 %v373, %v2122
    %v2124 = vpop.f32.mrf.mxu0
    %v2125 = vadd.f32 %v377, %v2124
    %v2126 = vpop.f32.mrf.mxu0
    %v2127 = vadd.f32 %v373, %v2126
    %v2128 = vpop.f32.mrf.mxu0
    %v2129 = vadd.f32 %v377, %v2128
    %2130 = vmatprep.mubr.bf16.mxu0 %v511
    %2131 = vmatmul.mubr.bf16.gmra.mxu0 %v510
    %v2132 = vpop.f32.mrf.mxu0
    %v2133 = vadd.f32 %v373, %v2132
    %v2134 = vpop.f32.mrf.mxu0
    %v2135 = vadd.f32 %v377, %v2134
    %v2136 = vpop.f32.mrf.mxu0
    %v2137 = vadd.f32 %v373, %v2136
    %v2138 = vpop.f32.mrf.mxu0
    %v2139 = vadd.f32 %v377, %v2138
    %2140 = vmatprep.mubr.bf16.mxu0 %v515
    %2141 = vmatmul.mubr.bf16.gmra.mxu0 %v514
    %v2142 = vpop.f32.mrf.mxu0
    %v2143 = vadd.f32 %v373, %v2142
    %v2144 = vpop.f32.mrf.mxu0
    %v2145 = vadd.f32 %v377, %v2144
    %v2146 = vpop.f32.mrf.mxu0
    %v2147 = vadd.f32 %v373, %v2146
    %v2148 = vpop.f32.mrf.mxu0
    %v2149 = vadd.f32 %v377, %v2148
    %2150 = vmatprep.mubr.bf16.mxu0 %v519
    %2151 = vmatmul.mubr.bf16.gmra.mxu0 %v518
    %v2152 = vpop.f32.mrf.mxu0
    %v2153 = vadd.f32 %v373, %v2152
    %v2154 = vpop.f32.mrf.mxu0
    %v2155 = vadd.f32 %v377, %v2154
    %v2156 = vpop.f32.mrf.mxu0
    %v2157 = vadd.f32 %v373, %v2156
    %v2158 = vpop.f32.mrf.mxu0
    %v2159 = vadd.f32 %v377, %v2158
    %2160 = vmatprep.mubr.bf16.mxu0 %v523
    %2161 = vmatmul.mubr.bf16.gmra.mxu0 %v522
    %v2162 = vpop.f32.mrf.mxu0
    %v2163 = vadd.f32 %v373, %v2162
    %v2164 = vpop.f32.mrf.mxu0
    %v2165 = vadd.f32 %v377, %v2164
    %v2166 = vpop.f32.mrf.mxu0
    %v2167 = vadd.f32 %v373, %v2166
    %v2168 = vpop.f32.mrf.mxu0
    %v2169 = vadd.f32 %v377, %v2168
    %2170 = vmatprep.mubr.bf16.mxu0 %v527
    %2171 = vmatmul.mubr.bf16.gmra.mxu0 %v526
    %v2172 = vpop.f32.mrf.mxu0
    %v2173 = vadd.f32 %v373, %v2172
    %v2174 = vpop.f32.mrf.mxu0
    %v2175 = vadd.f32 %v377, %v2174
    %v2176 = vpop.f32.mrf.mxu0
    %v2177 = vadd.f32 %v373, %v2176
    %v2178 = vpop.f32.mrf.mxu0
    %v2179 = vadd.f32 %v377, %v2178
    %2180 = vdwg.mxu0
    %2181 = vmatprep.subr.bf16.mxu0 %v1517
    %2182 = vmatpush1.bf16.msra.mxu0 %v1516
    %2183 = vmatprep.subr.bf16.mxu0 %v1509
    %2184 = vmatpush1.bf16.msra.mxu0 %v1508
    %2185 = vmatprep.subr.bf16.mxu0 %v1501
    %2186 = vmatpush1.bf16.msra.mxu0 %v1500
    %2187 = vmatprep.subr.bf16.mxu0 %v1493
    %2188 = vmatpush1.bf16.msra.mxu0 %v1492
    %2189 = vmatprep.subr.bf16.mxu0 %v1485
    %2190 = vmatpush1.bf16.msra.mxu0 %v1484
    %2191 = vmatprep.subr.bf16.mxu0 %v1477
    %2192 = vmatpush1.bf16.msra.mxu0 %v1476
    %2193 = vmatprep.subr.bf16.mxu0 %v1469
    %2194 = vmatpush1.bf16.msra.mxu0 %v1468
    %2195 = vmatprep.subr.bf16.mxu0 %v1461
    %2196 = vmatpush1.bf16.msra.mxu0 %v1460
    %2197 = vmatprep.subr.bf16.mxu0 %v1581
    %2198 = vmatpush2.bf16.msra.mxu0 %v1580
    %2199 = vmatprep.subr.bf16.mxu0 %v1573
    %2200 = vmatpush2.bf16.msra.mxu0 %v1572
    %2201 = vmatprep.subr.bf16.mxu0 %v1565
    %2202 = vmatpush2.bf16.msra.mxu0 %v1564
    %2203 = vmatprep.subr.bf16.mxu0 %v1557
    %2204 = vmatpush2.bf16.msra.mxu0 %v1556
    %2205 = vmatprep.subr.bf16.mxu0 %v1549
    %2206 = vmatpush2.bf16.msra.mxu0 %v1548
    %2207 = vmatprep.subr.bf16.mxu0 %v1541
    %2208 = vmatpush2.bf16.msra.mxu0 %v1540
    %2209 = vmatprep.subr.bf16.mxu0 %v1533
    %2210 = vmatpush2.bf16.msra.mxu0 %v1532
    %2211 = vmatprep.subr.bf16.mxu0 %v1525
    %2212 = vmatpush2.bf16.msra.mxu0 %v1524
    %2213 = vmatprep.mubr.bf16.mxu0 %v501
    %2214 = vmatmul.mubr.bf16.gmra.mxu0 %v500
    %v2215 = vpop.f32.mrf.mxu0
    %v2216 = vadd.f32 %v2103, %v2215
    %v2217 = vpop.f32.mrf.mxu0
    %v2218 = vadd.f32 %v2105, %v2217
    %v2219 = vpop.f32.mrf.mxu0
    %v2220 = vadd.f32 %v2107, %v2219
    %v2221 = vpop.f32.mrf.mxu0
    %v2222 = vadd.f32 %v2109, %v2221
    %2223 = vmatprep.mubr.bf16.mxu0 %v505
    %2224 = vmatmul.mubr.bf16.gmra.mxu0 %v504
    %v2225 = vpop.f32.mrf.mxu0
    %v2226 = vadd.f32 %v2113, %v2225
    %v2227 = vpop.f32.mrf.mxu0
    %v2228 = vadd.f32 %v2115, %v2227
    %v2229 = vpop.f32.mrf.mxu0
    %v2230 = vadd.f32 %v2117, %v2229
    %v2231 = vpop.f32.mrf.mxu0
    %v2232 = vadd.f32 %v2119, %v2231
    %2233 = vmatprep.mubr.bf16.mxu0 %v509
    %2234 = vmatmul.mubr.bf16.gmra.mxu0 %v508
    %v2235 = vpop.f32.mrf.mxu0
    %v2236 = vadd.f32 %v2123, %v2235
    %v2237 = vpop.f32.mrf.mxu0
    %v2238 = vadd.f32 %v2125, %v2237
    %v2239 = vpop.f32.mrf.mxu0
    %v2240 = vadd.f32 %v2127, %v2239
    %v2241 = vpop.f32.mrf.mxu0
    %v2242 = vadd.f32 %v2129, %v2241
    %2243 = vmatprep.mubr.bf16.mxu0 %v513
    %2244 = vmatmul.mubr.bf16.gmra.mxu0 %v512
    %v2245 = vpop.f32.mrf.mxu0
    %v2246 = vadd.f32 %v2133, %v2245
    %v2247 = vpop.f32.mrf.mxu0
    %v2248 = vadd.f32 %v2135, %v2247
    %v2249 = vpop.f32.mrf.mxu0
    %v2250 = vadd.f32 %v2137, %v2249
    %v2251 = vpop.f32.mrf.mxu0
    %v2252 = vadd.f32 %v2139, %v2251
    %2253 = vmatprep.mubr.bf16.mxu0 %v517
    %2254 = vmatmul.mubr.bf16.gmra.mxu0 %v516
    %v2255 = vpop.f32.mrf.mxu0
    %v2256 = vadd.f32 %v2143, %v2255
    %v2257 = vpop.f32.mrf.mxu0
    %v2258 = vadd.f32 %v2145, %v2257
    %v2259 = vpop.f32.mrf.mxu0
    %v2260 = vadd.f32 %v2147, %v2259
    %v2261 = vpop.f32.mrf.mxu0
    %v2262 = vadd.f32 %v2149, %v2261
    %2263 = vmatprep.mubr.bf16.mxu0 %v521
    %2264 = vmatmul.mubr.bf16.gmra.mxu0 %v520
    %v2265 = vpop.f32.mrf.mxu0
    %v2266 = vadd.f32 %v2153, %v2265
    %v2267 = vpop.f32.mrf.mxu0
    %v2268 = vadd.f32 %v2155, %v2267
    %v2269 = vpop.f32.mrf.mxu0
    %v2270 = vadd.f32 %v2157, %v2269
    %v2271 = vpop.f32.mrf.mxu0
    %v2272 = vadd.f32 %v2159, %v2271
    %2273 = vmatprep.mubr.bf16.mxu0 %v525
    %2274 = vmatmul.mubr.bf16.gmra.mxu0 %v524
    %v2275 = vpop.f32.mrf.mxu0
    %v2276 = vadd.f32 %v2163, %v2275
    %v2277 = vpop.f32.mrf.mxu0
    %v2278 = vadd.f32 %v2165, %v2277
    %v2279 = vpop.f32.mrf.mxu0
    %v2280 = vadd.f32 %v2167, %v2279
    %v2281 = vpop.f32.mrf.mxu0
    %v2282 = vadd.f32 %v2169, %v2281
    %2283 = vmatprep.mubr.bf16.mxu0 %v529
    %2284 = vmatmul.mubr.bf16.gmra.mxu0 %v528
    %v2285 = vpop.f32.mrf.mxu0
    %v2286 = vadd.f32 %v2173, %v2285
    %v2287 = vpop.f32.mrf.mxu0
    %v2288 = vadd.f32 %v2175, %v2287
    %v2289 = vpop.f32.mrf.mxu0
    %v2290 = vadd.f32 %v2177, %v2289
    %v2291 = vpop.f32.mrf.mxu0
    %v2292 = vadd.f32 %v2179, %v2291
    %2293 = vdwg.mxu0
    %2294 = vmatprep.subr.bf16.mxu0 %v1391
    %2295 = vmatpush1.bf16.msra.mxu0 %v1390
    %2296 = vmatprep.subr.bf16.mxu0 %v1383
    %2297 = vmatpush1.bf16.msra.mxu0 %v1382
    %2298 = vmatprep.subr.bf16.mxu0 %v1375
    %2299 = vmatpush1.bf16.msra.mxu0 %v1374
    %2300 = vmatprep.subr.bf16.mxu0 %v1367
    %2301 = vmatpush1.bf16.msra.mxu0 %v1366
    %2302 = vmatprep.subr.bf16.mxu0 %v1359
    %2303 = vmatpush1.bf16.msra.mxu0 %v1358
    %2304 = vmatprep.subr.bf16.mxu0 %v1351
    %2305 = vmatpush1.bf16.msra.mxu0 %v1350
    %2306 = vmatprep.subr.bf16.mxu0 %v1343
    %2307 = vmatpush1.bf16.msra.mxu0 %v1342
    %2308 = vmatprep.subr.bf16.mxu0 %v1335
    %2309 = vmatpush1.bf16.msra.mxu0 %v1334
    %2310 = vmatprep.subr.bf16.mxu0 %v1455
    %2311 = vmatpush2.bf16.msra.mxu0 %v1454
    %2312 = vmatprep.subr.bf16.mxu0 %v1447
    %2313 = vmatpush2.bf16.msra.mxu0 %v1446
    %2314 = vmatprep.subr.bf16.mxu0 %v1439
    %2315 = vmatpush2.bf16.msra.mxu0 %v1438
    %2316 = vmatprep.subr.bf16.mxu0 %v1431
    %2317 = vmatpush2.bf16.msra.mxu0 %v1430
    %2318 = vmatprep.subr.bf16.mxu0 %v1423
    %2319 = vmatpush2.bf16.msra.mxu0 %v1422
    %2320 = vmatprep.subr.bf16.mxu0 %v1415
    %2321 = vmatpush2.bf16.msra.mxu0 %v1414
    %2322 = vmatprep.subr.bf16.mxu0 %v1407
    %2323 = vmatpush2.bf16.msra.mxu0 %v1406
    %2324 = vmatprep.subr.bf16.mxu0 %v1399
    %2325 = vmatpush2.bf16.msra.mxu0 %v1398
    %2326 = vmatprep.mubr.bf16.mxu0 %v499
    %2327 = vmatmul.mubr.bf16.gmra.mxu0 %v498
    %v2328 = vpop.f32.mrf.mxu0
    %v2329 = vadd.f32 %v381, %v2328
    %v2330 = vpop.f32.mrf.mxu0
    %v2331 = vadd.f32 %v385, %v2330
    %v2332 = vpop.f32.mrf.mxu0
    %v2333 = vadd.f32 %v381, %v2332
    %v2334 = vpop.f32.mrf.mxu0
    %v2335 = vadd.f32 %v385, %v2334
    %2336 = vmatprep.mubr.bf16.mxu0 %v503
    %2337 = vmatmul.mubr.bf16.gmra.mxu0 %v502
    %v2338 = vpop.f32.mrf.mxu0
    %v2339 = vadd.f32 %v381, %v2338
    %v2340 = vpop.f32.mrf.mxu0
    %v2341 = vadd.f32 %v385, %v2340
    %v2342 = vpop.f32.mrf.mxu0
    %v2343 = vadd.f32 %v381, %v2342
    %v2344 = vpop.f32.mrf.mxu0
    %v2345 = vadd.f32 %v385, %v2344
    %2346 = vmatprep.mubr.bf16.mxu0 %v507
    %2347 = vmatmul.mubr.bf16.gmra.mxu0 %v506
    %v2348 = vpop.f32.mrf.mxu0
    %v2349 = vadd.f32 %v381, %v2348
    %v2350 = vpop.f32.mrf.mxu0
    %v2351 = vadd.f32 %v385, %v2350
    %v2352 = vpop.f32.mrf.mxu0
    %v2353 = vadd.f32 %v381, %v2352
    %v2354 = vpop.f32.mrf.mxu0
    %v2355 = vadd.f32 %v385, %v2354
    %2356 = vmatprep.mubr.bf16.mxu0 %v511
    %2357 = vmatmul.mubr.bf16.gmra.mxu0 %v510
    %v2358 = vpop.f32.mrf.mxu0
    %v2359 = vadd.f32 %v381, %v2358
    %v2360 = vpop.f32.mrf.mxu0
    %v2361 = vadd.f32 %v385, %v2360
    %v2362 = vpop.f32.mrf.mxu0
    %v2363 = vadd.f32 %v381, %v2362
    %v2364 = vpop.f32.mrf.mxu0
    %v2365 = vadd.f32 %v385, %v2364
    %2366 = vmatprep.mubr.bf16.mxu0 %v515
    %2367 = vmatmul.mubr.bf16.gmra.mxu0 %v514
    %v2368 = vpop.f32.mrf.mxu0
    %v2369 = vadd.f32 %v381, %v2368
    %v2370 = vpop.f32.mrf.mxu0
    %v2371 = vadd.f32 %v385, %v2370
    %v2372 = vpop.f32.mrf.mxu0
    %v2373 = vadd.f32 %v381, %v2372
    %v2374 = vpop.f32.mrf.mxu0
    %v2375 = vadd.f32 %v385, %v2374
    %2376 = vmatprep.mubr.bf16.mxu0 %v519
    %2377 = vmatmul.mubr.bf16.gmra.mxu0 %v518
    %v2378 = vpop.f32.mrf.mxu0
    %v2379 = vadd.f32 %v381, %v2378
    %v2380 = vpop.f32.mrf.mxu0
    %v2381 = vadd.f32 %v385, %v2380
    %v2382 = vpop.f32.mrf.mxu0
    %v2383 = vadd.f32 %v381, %v2382
    %v2384 = vpop.f32.mrf.mxu0
    %v2385 = vadd.f32 %v385, %v2384
    %2386 = vmatprep.mubr.bf16.mxu0 %v523
    %2387 = vmatmul.mubr.bf16.gmra.mxu0 %v522
    %v2388 = vpop.f32.mrf.mxu0
    %v2389 = vadd.f32 %v381, %v2388
    %v2390 = vpop.f32.mrf.mxu0
    %v2391 = vadd.f32 %v385, %v2390
    %v2392 = vpop.f32.mrf.mxu0
    %v2393 = vadd.f32 %v381, %v2392
    %v2394 = vpop.f32.mrf.mxu0
    %v2395 = vadd.f32 %v385, %v2394
    %2396 = vmatprep.mubr.bf16.mxu0 %v527
    %2397 = vmatmul.mubr.bf16.gmra.mxu0 %v526
    %v2398 = vpop.f32.mrf.mxu0
    %v2399 = vadd.f32 %v381, %v2398
    %v2400 = vpop.f32.mrf.mxu0
    %v2401 = vadd.f32 %v385, %v2400
    %v2402 = vpop.f32.mrf.mxu0
    %v2403 = vadd.f32 %v381, %v2402
    %v2404 = vpop.f32.mrf.mxu0
    %v2405 = vadd.f32 %v385, %v2404
    %2406 = vdwg.mxu0
    %2407 = vmatprep.subr.bf16.mxu0 %v1519
    %2408 = vmatpush1.bf16.msra.mxu0 %v1518
    %2409 = vmatprep.subr.bf16.mxu0 %v1511
    %2410 = vmatpush1.bf16.msra.mxu0 %v1510
    %2411 = vmatprep.subr.bf16.mxu0 %v1503
    %2412 = vmatpush1.bf16.msra.mxu0 %v1502
    %2413 = vmatprep.subr.bf16.mxu0 %v1495
    %2414 = vmatpush1.bf16.msra.mxu0 %v1494
    %2415 = vmatprep.subr.bf16.mxu0 %v1487
    %2416 = vmatpush1.bf16.msra.mxu0 %v1486
    %2417 = vmatprep.subr.bf16.mxu0 %v1479
    %2418 = vmatpush1.bf16.msra.mxu0 %v1478
    %2419 = vmatprep.subr.bf16.mxu0 %v1471
    %2420 = vmatpush1.bf16.msra.mxu0 %v1470
    %2421 = vmatprep.subr.bf16.mxu0 %v1463
    %2422 = vmatpush1.bf16.msra.mxu0 %v1462
    %2423 = vmatprep.subr.bf16.mxu0 %v1583
    %2424 = vmatpush2.bf16.msra.mxu0 %v1582
    %2425 = vmatprep.subr.bf16.mxu0 %v1575
    %2426 = vmatpush2.bf16.msra.mxu0 %v1574
    %2427 = vmatprep.subr.bf16.mxu0 %v1567
    %2428 = vmatpush2.bf16.msra.mxu0 %v1566
    %2429 = vmatprep.subr.bf16.mxu0 %v1559
    %2430 = vmatpush2.bf16.msra.mxu0 %v1558
    %2431 = vmatprep.subr.bf16.mxu0 %v1551
    %2432 = vmatpush2.bf16.msra.mxu0 %v1550
    %2433 = vmatprep.subr.bf16.mxu0 %v1543
    %2434 = vmatpush2.bf16.msra.mxu0 %v1542
    %2435 = vmatprep.subr.bf16.mxu0 %v1535
    %2436 = vmatpush2.bf16.msra.mxu0 %v1534
    %2437 = vmatprep.subr.bf16.mxu0 %v1527
    %2438 = vmatpush2.bf16.msra.mxu0 %v1526
    %2439 = vmatprep.mubr.bf16.mxu0 %v501
    %2440 = vmatmul.mubr.bf16.gmra.mxu0 %v500
    %v2441 = vpop.f32.mrf.mxu0
    %v2442 = vadd.f32 %v2329, %v2441
    %v2443 = vpop.f32.mrf.mxu0
    %v2444 = vadd.f32 %v2331, %v2443
    %v2445 = vpop.f32.mrf.mxu0
    %v2446 = vadd.f32 %v2333, %v2445
    %v2447 = vpop.f32.mrf.mxu0
    %v2448 = vadd.f32 %v2335, %v2447
    %2449 = vmatprep.mubr.bf16.mxu0 %v505
    %2450 = vmatmul.mubr.bf16.gmra.mxu0 %v504
    %v2451 = vpop.f32.mrf.mxu0
    %v2452 = vadd.f32 %v2339, %v2451
    %v2453 = vpop.f32.mrf.mxu0
    %v2454 = vadd.f32 %v2341, %v2453
    %v2455 = vpop.f32.mrf.mxu0
    %v2456 = vadd.f32 %v2343, %v2455
    %v2457 = vpop.f32.mrf.mxu0
    %v2458 = vadd.f32 %v2345, %v2457
    %2459 = vmatprep.mubr.bf16.mxu0 %v509
    %2460 = vmatmul.mubr.bf16.gmra.mxu0 %v508
    %v2461 = vpop.f32.mrf.mxu0
    %v2462 = vadd.f32 %v2349, %v2461
    %v2463 = vpop.f32.mrf.mxu0
    %v2464 = vadd.f32 %v2351, %v2463
    %v2465 = vpop.f32.mrf.mxu0
    %v2466 = vadd.f32 %v2353, %v2465
    %v2467 = vpop.f32.mrf.mxu0
    %v2468 = vadd.f32 %v2355, %v2467
    %2469 = vmatprep.mubr.bf16.mxu0 %v513
    %2470 = vmatmul.mubr.bf16.gmra.mxu0 %v512
    %v2471 = vpop.f32.mrf.mxu0
    %v2472 = vadd.f32 %v2359, %v2471
    %v2473 = vpop.f32.mrf.mxu0
    %v2474 = vadd.f32 %v2361, %v2473
    %v2475 = vpop.f32.mrf.mxu0
    %v2476 = vadd.f32 %v2363, %v2475
    %v2477 = vpop.f32.mrf.mxu0
    %v2478 = vadd.f32 %v2365, %v2477
    %2479 = vmatprep.mubr.bf16.mxu0 %v517
    %2480 = vmatmul.mubr.bf16.gmra.mxu0 %v516
    %v2481 = vpop.f32.mrf.mxu0
    %v2482 = vadd.f32 %v2369, %v2481
    %v2483 = vpop.f32.mrf.mxu0
    %v2484 = vadd.f32 %v2371, %v2483
    %v2485 = vpop.f32.mrf.mxu0
    %v2486 = vadd.f32 %v2373, %v2485
    %v2487 = vpop.f32.mrf.mxu0
    %v2488 = vadd.f32 %v2375, %v2487
    %2489 = vmatprep.mubr.bf16.mxu0 %v521
    %2490 = vmatmul.mubr.bf16.gmra.mxu0 %v520
    %v2491 = vpop.f32.mrf.mxu0
    %v2492 = vadd.f32 %v2379, %v2491
    %v2493 = vpop.f32.mrf.mxu0
    %v2494 = vadd.f32 %v2381, %v2493
    %v2495 = vpop.f32.mrf.mxu0
    %v2496 = vadd.f32 %v2383, %v2495
    %v2497 = vpop.f32.mrf.mxu0
    %v2498 = vadd.f32 %v2385, %v2497
    %2499 = vmatprep.mubr.bf16.mxu0 %v525
    %2500 = vmatmul.mubr.bf16.gmra.mxu0 %v524
    %v2501 = vpop.f32.mrf.mxu0
    %v2502 = vadd.f32 %v2389, %v2501
    %v2503 = vpop.f32.mrf.mxu0
    %v2504 = vadd.f32 %v2391, %v2503
    %v2505 = vpop.f32.mrf.mxu0
    %v2506 = vadd.f32 %v2393, %v2505
    %v2507 = vpop.f32.mrf.mxu0
    %v2508 = vadd.f32 %v2395, %v2507
    %2509 = vmatprep.mubr.bf16.mxu0 %v529
    %2510 = vmatmul.mubr.bf16.gmra.mxu0 %v528
    %v2511 = vpop.f32.mrf.mxu0
    %v2512 = vadd.f32 %v2399, %v2511
    %v2513 = vpop.f32.mrf.mxu0
    %v2514 = vadd.f32 %v2401, %v2513
    %v2515 = vpop.f32.mrf.mxu0
    %v2516 = vadd.f32 %v2403, %v2515
    %v2517 = vpop.f32.mrf.mxu0
    %v2518 = vadd.f32 %v2405, %v2517
    %2519 = vdwg.mxu0
    %2520 = vmatprep.subr.bf16.mxu0 %v1393
    %2521 = vmatpush1.bf16.msra.mxu0 %v1392
    %2522 = vmatprep.subr.bf16.mxu0 %v1385
    %2523 = vmatpush1.bf16.msra.mxu0 %v1384
    %2524 = vmatprep.subr.bf16.mxu0 %v1377
    %2525 = vmatpush1.bf16.msra.mxu0 %v1376
    %2526 = vmatprep.subr.bf16.mxu0 %v1369
    %2527 = vmatpush1.bf16.msra.mxu0 %v1368
    %2528 = vmatprep.subr.bf16.mxu0 %v1361
    %2529 = vmatpush1.bf16.msra.mxu0 %v1360
    %2530 = vmatprep.subr.bf16.mxu0 %v1353
    %2531 = vmatpush1.bf16.msra.mxu0 %v1352
    %2532 = vmatprep.subr.bf16.mxu0 %v1345
    %2533 = vmatpush1.bf16.msra.mxu0 %v1344
    %2534 = vmatprep.subr.bf16.mxu0 %v1337
    %2535 = vmatpush1.bf16.msra.mxu0 %v1336
    %2536 = vmatprep.subr.bf16.mxu0 %v1457
    %2537 = vmatpush2.bf16.msra.mxu0 %v1456
    %2538 = vmatprep.subr.bf16.mxu0 %v1449
    %2539 = vmatpush2.bf16.msra.mxu0 %v1448
    %2540 = vmatprep.subr.bf16.mxu0 %v1441
    %2541 = vmatpush2.bf16.msra.mxu0 %v1440
    %2542 = vmatprep.subr.bf16.mxu0 %v1433
    %2543 = vmatpush2.bf16.msra.mxu0 %v1432
    %2544 = vmatprep.subr.bf16.mxu0 %v1425
    %2545 = vmatpush2.bf16.msra.mxu0 %v1424
    %2546 = vmatprep.subr.bf16.mxu0 %v1417
    %2547 = vmatpush2.bf16.msra.mxu0 %v1416
    %2548 = vmatprep.subr.bf16.mxu0 %v1409
    %2549 = vmatpush2.bf16.msra.mxu0 %v1408
    %2550 = vmatprep.subr.bf16.mxu0 %v1401
    %2551 = vmatpush2.bf16.msra.mxu0 %v1400
    %2552 = vmatprep.mubr.bf16.mxu0 %v499
    %2553 = vmatmul.mubr.bf16.gmra.mxu0 %v498
    %v2554 = vpop.f32.mrf.mxu0
    %v2555 = vadd.f32 %v389, %v2554
    %v2556 = vpop.f32.mrf.mxu0
    %v2557 = vadd.f32 %v393, %v2556
    %v2558 = vpop.f32.mrf.mxu0
    %v2559 = vadd.f32 %v389, %v2558
    %v2560 = vpop.f32.mrf.mxu0
    %v2561 = vadd.f32 %v393, %v2560
    %2562 = vmatprep.mubr.bf16.mxu0 %v503
    %2563 = vmatmul.mubr.bf16.gmra.mxu0 %v502
    %v2564 = vpop.f32.mrf.mxu0
    %v2565 = vadd.f32 %v389, %v2564
    %v2566 = vpop.f32.mrf.mxu0
    %v2567 = vadd.f32 %v393, %v2566
    %v2568 = vpop.f32.mrf.mxu0
    %v2569 = vadd.f32 %v389, %v2568
    %v2570 = vpop.f32.mrf.mxu0
    %v2571 = vadd.f32 %v393, %v2570
    %2572 = vmatprep.mubr.bf16.mxu0 %v507
    %2573 = vmatmul.mubr.bf16.gmra.mxu0 %v506
    %v2574 = vpop.f32.mrf.mxu0
    %v2575 = vadd.f32 %v389, %v2574
    %v2576 = vpop.f32.mrf.mxu0
    %v2577 = vadd.f32 %v393, %v2576
    %v2578 = vpop.f32.mrf.mxu0
    %v2579 = vadd.f32 %v389, %v2578
    %v2580 = vpop.f32.mrf.mxu0
    %v2581 = vadd.f32 %v393, %v2580
    %2582 = vmatprep.mubr.bf16.mxu0 %v511
    %2583 = vmatmul.mubr.bf16.gmra.mxu0 %v510
    %v2584 = vpop.f32.mrf.mxu0
    %v2585 = vadd.f32 %v389, %v2584
    %v2586 = vpop.f32.mrf.mxu0
    %v2587 = vadd.f32 %v393, %v2586
    %v2588 = vpop.f32.mrf.mxu0
    %v2589 = vadd.f32 %v389, %v2588
    %v2590 = vpop.f32.mrf.mxu0
    %v2591 = vadd.f32 %v393, %v2590
    %2592 = vmatprep.mubr.bf16.mxu0 %v515
    %2593 = vmatmul.mubr.bf16.gmra.mxu0 %v514
    %v2594 = vpop.f32.mrf.mxu0
    %v2595 = vadd.f32 %v389, %v2594
    %v2596 = vpop.f32.mrf.mxu0
    %v2597 = vadd.f32 %v393, %v2596
    %v2598 = vpop.f32.mrf.mxu0
    %v2599 = vadd.f32 %v389, %v2598
    %v2600 = vpop.f32.mrf.mxu0
    %v2601 = vadd.f32 %v393, %v2600
    %2602 = vmatprep.mubr.bf16.mxu0 %v519
    %2603 = vmatmul.mubr.bf16.gmra.mxu0 %v518
    %v2604 = vpop.f32.mrf.mxu0
    %v2605 = vadd.f32 %v389, %v2604
    %v2606 = vpop.f32.mrf.mxu0
    %v2607 = vadd.f32 %v393, %v2606
    %v2608 = vpop.f32.mrf.mxu0
    %v2609 = vadd.f32 %v389, %v2608
    %v2610 = vpop.f32.mrf.mxu0
    %v2611 = vadd.f32 %v393, %v2610
    %2612 = vmatprep.mubr.bf16.mxu0 %v523
    %2613 = vmatmul.mubr.bf16.gmra.mxu0 %v522
    %v2614 = vpop.f32.mrf.mxu0
    %v2615 = vadd.f32 %v389, %v2614
    %v2616 = vpop.f32.mrf.mxu0
    %v2617 = vadd.f32 %v393, %v2616
    %v2618 = vpop.f32.mrf.mxu0
    %v2619 = vadd.f32 %v389, %v2618
    %v2620 = vpop.f32.mrf.mxu0
    %v2621 = vadd.f32 %v393, %v2620
    %2622 = vmatprep.mubr.bf16.mxu0 %v527
    %2623 = vmatmul.mubr.bf16.gmra.mxu0 %v526
    %v2624 = vpop.f32.mrf.mxu0
    %v2625 = vadd.f32 %v389, %v2624
    %v2626 = vpop.f32.mrf.mxu0
    %v2627 = vadd.f32 %v393, %v2626
    %v2628 = vpop.f32.mrf.mxu0
    %v2629 = vadd.f32 %v389, %v2628
    %v2630 = vpop.f32.mrf.mxu0
    %v2631 = vadd.f32 %v393, %v2630
    %2632 = vdwg.mxu0
    %2633 = vmatprep.subr.bf16.mxu0 %v1521
    %2634 = vmatpush1.bf16.msra.mxu0 %v1520
    %2635 = vmatprep.subr.bf16.mxu0 %v1513
    %2636 = vmatpush1.bf16.msra.mxu0 %v1512
    %2637 = vmatprep.subr.bf16.mxu0 %v1505
    %2638 = vmatpush1.bf16.msra.mxu0 %v1504
    %2639 = vmatprep.subr.bf16.mxu0 %v1497
    %2640 = vmatpush1.bf16.msra.mxu0 %v1496
    %2641 = vmatprep.subr.bf16.mxu0 %v1489
    %2642 = vmatpush1.bf16.msra.mxu0 %v1488
    %2643 = vmatprep.subr.bf16.mxu0 %v1481
    %2644 = vmatpush1.bf16.msra.mxu0 %v1480
    %2645 = vmatprep.subr.bf16.mxu0 %v1473
    %2646 = vmatpush1.bf16.msra.mxu0 %v1472
    %2647 = vmatprep.subr.bf16.mxu0 %v1465
    %2648 = vmatpush1.bf16.msra.mxu0 %v1464
    %2649 = vmatprep.subr.bf16.mxu0 %v1585
    %2650 = vmatpush2.bf16.msra.mxu0 %v1584
    %2651 = vmatprep.subr.bf16.mxu0 %v1577
    %2652 = vmatpush2.bf16.msra.mxu0 %v1576
    %2653 = vmatprep.subr.bf16.mxu0 %v1569
    %2654 = vmatpush2.bf16.msra.mxu0 %v1568
    %2655 = vmatprep.subr.bf16.mxu0 %v1561
    %2656 = vmatpush2.bf16.msra.mxu0 %v1560
    %2657 = vmatprep.subr.bf16.mxu0 %v1553
    %2658 = vmatpush2.bf16.msra.mxu0 %v1552
    %2659 = vmatprep.subr.bf16.mxu0 %v1545
    %2660 = vmatpush2.bf16.msra.mxu0 %v1544
    %2661 = vmatprep.subr.bf16.mxu0 %v1537
    %2662 = vmatpush2.bf16.msra.mxu0 %v1536
    %2663 = vmatprep.subr.bf16.mxu0 %v1529
    %2664 = vmatpush2.bf16.msra.mxu0 %v1528
    %2665 = vmatprep.mubr.bf16.mxu0 %v501
    %2666 = vmatmul.mubr.bf16.gmra.mxu0 %v500
    %v2667 = vpop.f32.mrf.mxu0
    %v2668 = vadd.f32 %v2555, %v2667
    %v2669 = vpop.f32.mrf.mxu0
    %v2670 = vadd.f32 %v2557, %v2669
    %v2671 = vpop.f32.mrf.mxu0
    %v2672 = vadd.f32 %v2559, %v2671
    %v2673 = vpop.f32.mrf.mxu0
    %v2674 = vadd.f32 %v2561, %v2673
    %2675 = vmatprep.mubr.bf16.mxu0 %v505
    %2676 = vmatmul.mubr.bf16.gmra.mxu0 %v504
    %v2677 = vpop.f32.mrf.mxu0
    %v2678 = vadd.f32 %v2565, %v2677
    %v2679 = vpop.f32.mrf.mxu0
    %v2680 = vadd.f32 %v2567, %v2679
    %v2681 = vpop.f32.mrf.mxu0
    %v2682 = vadd.f32 %v2569, %v2681
    %v2683 = vpop.f32.mrf.mxu0
    %v2684 = vadd.f32 %v2571, %v2683
    %2685 = vmatprep.mubr.bf16.mxu0 %v509
    %2686 = vmatmul.mubr.bf16.gmra.mxu0 %v508
    %v2687 = vpop.f32.mrf.mxu0
    %v2688 = vadd.f32 %v2575, %v2687
    %v2689 = vpop.f32.mrf.mxu0
    %v2690 = vadd.f32 %v2577, %v2689
    %v2691 = vpop.f32.mrf.mxu0
    %v2692 = vadd.f32 %v2579, %v2691
    %v2693 = vpop.f32.mrf.mxu0
    %v2694 = vadd.f32 %v2581, %v2693
    %2695 = vmatprep.mubr.bf16.mxu0 %v513
    %2696 = vmatmul.mubr.bf16.gmra.mxu0 %v512
    %v2697 = vpop.f32.mrf.mxu0
    %v2698 = vadd.f32 %v2585, %v2697
    %v2699 = vpop.f32.mrf.mxu0
    %v2700 = vadd.f32 %v2587, %v2699
    %v2701 = vpop.f32.mrf.mxu0
    %v2702 = vadd.f32 %v2589, %v2701
    %v2703 = vpop.f32.mrf.mxu0
    %v2704 = vadd.f32 %v2591, %v2703
    %2705 = vmatprep.mubr.bf16.mxu0 %v517
    %2706 = vmatmul.mubr.bf16.gmra.mxu0 %v516
    %v2707 = vpop.f32.mrf.mxu0
    %v2708 = vadd.f32 %v2595, %v2707
    %v2709 = vpop.f32.mrf.mxu0
    %v2710 = vadd.f32 %v2597, %v2709
    %v2711 = vpop.f32.mrf.mxu0
    %v2712 = vadd.f32 %v2599, %v2711
    %v2713 = vpop.f32.mrf.mxu0
    %v2714 = vadd.f32 %v2601, %v2713
    %2715 = vmatprep.mubr.bf16.mxu0 %v521
    %2716 = vmatmul.mubr.bf16.gmra.mxu0 %v520
    %v2717 = vpop.f32.mrf.mxu0
    %v2718 = vadd.f32 %v2605, %v2717
    %v2719 = vpop.f32.mrf.mxu0
    %v2720 = vadd.f32 %v2607, %v2719
    %v2721 = vpop.f32.mrf.mxu0
    %v2722 = vadd.f32 %v2609, %v2721
    %v2723 = vpop.f32.mrf.mxu0
    %v2724 = vadd.f32 %v2611, %v2723
    %2725 = vmatprep.mubr.bf16.mxu0 %v525
    %2726 = vmatmul.mubr.bf16.gmra.mxu0 %v524
    %v2727 = vpop.f32.mrf.mxu0
    %v2728 = vadd.f32 %v2615, %v2727
    %v2729 = vpop.f32.mrf.mxu0
    %v2730 = vadd.f32 %v2617, %v2729
    %v2731 = vpop.f32.mrf.mxu0
    %v2732 = vadd.f32 %v2619, %v2731
    %v2733 = vpop.f32.mrf.mxu0
    %v2734 = vadd.f32 %v2621, %v2733
    %2735 = vmatprep.mubr.bf16.mxu0 %v529
    %2736 = vmatmul.mubr.bf16.gmra.mxu0 %v528
    %v2737 = vpop.f32.mrf.mxu0
    %v2738 = vadd.f32 %v2625, %v2737
    %v2739 = vpop.f32.mrf.mxu0
    %v2740 = vadd.f32 %v2627, %v2739
    %v2741 = vpop.f32.mrf.mxu0
    %v2742 = vadd.f32 %v2629, %v2741
    %v2743 = vpop.f32.mrf.mxu0
    %v2744 = vadd.f32 %v2631, %v2743
    %2745 = vdwg.mxu0
    %v2746 = vmax.f32 %v1990, 0.0
    %v2747 = vmax.f32 %v1992, 0.0
    %v2748 = vmax.f32 %v2216, 0.0
    %v2749 = vmax.f32 %v2218, 0.0
    %v2750 = vmax.f32 %v2442, 0.0
    %v2751 = vmax.f32 %v2444, 0.0
    %v2752 = vmax.f32 %v2668, 0.0
    %v2753 = vmax.f32 %v2670, 0.0
    %v2754 = vmax.f32 %v1994, 0.0
    %v2755 = vmax.f32 %v1996, 0.0
    %v2756 = vmax.f32 %v2220, 0.0
    %v2757 = vmax.f32 %v2222, 0.0
    %v2758 = vmax.f32 %v2446, 0.0
    %v2759 = vmax.f32 %v2448, 0.0
    %v2760 = vmax.f32 %v2672, 0.0
    %v2761 = vmax.f32 %v2674, 0.0
    %v2762 = vmax.f32 %v2000, 0.0
    %v2763 = vmax.f32 %v2002, 0.0
    %v2764 = vmax.f32 %v2226, 0.0
    %v2765 = vmax.f32 %v2228, 0.0
    %v2766 = vmax.f32 %v2452, 0.0
    %v2767 = vmax.f32 %v2454, 0.0
    %v2768 = vmax.f32 %v2678, 0.0
    %v2769 = vmax.f32 %v2680, 0.0
    %v2770 = vmax.f32 %v2004, 0.0
    %v2771 = vmax.f32 %v2006, 0.0
    %v2772 = vmax.f32 %v2230, 0.0
    %v2773 = vmax.f32 %v2232, 0.0
    %v2774 = vmax.f32 %v2456, 0.0
    %v2775 = vmax.f32 %v2458, 0.0
    %v2776 = vmax.f32 %v2682, 0.0
    %v2777 = vmax.f32 %v2684, 0.0
    %v2778 = vmax.f32 %v2010, 0.0
    %v2779 = vmax.f32 %v2012, 0.0
    %v2780 = vmax.f32 %v2236, 0.0
    %v2781 = vmax.f32 %v2238, 0.0
    %v2782 = vmax.f32 %v2462, 0.0
    %v2783 = vmax.f32 %v2464, 0.0
    %v2784 = vmax.f32 %v2688, 0.0
    %v2785 = vmax.f32 %v2690, 0.0
    %v2786 = vmax.f32 %v2014, 0.0
    %v2787 = vmax.f32 %v2016, 0.0
    %v2788 = vmax.f32 %v2240, 0.0
    %v2789 = vmax.f32 %v2242, 0.0
    %v2790 = vmax.f32 %v2466, 0.0
    %v2791 = vmax.f32 %v2468, 0.0
    %v2792 = vmax.f32 %v2692, 0.0
    %v2793 = vmax.f32 %v2694, 0.0
    %v2794 = vmax.f32 %v2020, 0.0
    %v2795 = vmax.f32 %v2022, 0.0
    %v2796 = vmax.f32 %v2246, 0.0
    %v2797 = vmax.f32 %v2248, 0.0
    %v2798 = vmax.f32 %v2472, 0.0
    %v2799 = vmax.f32 %v2474, 0.0
    %v2800 = vmax.f32 %v2698, 0.0
    %v2801 = vmax.f32 %v2700, 0.0
    %v2802 = vmax.f32 %v2024, 0.0
    %v2803 = vmax.f32 %v2026, 0.0
    %v2804 = vmax.f32 %v2250, 0.0
    %v2805 = vmax.f32 %v2252, 0.0
    %v2806 = vmax.f32 %v2476, 0.0
    %v2807 = vmax.f32 %v2478, 0.0
    %v2808 = vmax.f32 %v2702, 0.0
    %v2809 = vmax.f32 %v2704, 0.0
    %v2810 = vmax.f32 %v2030, 0.0
    %v2811 = vmax.f32 %v2032, 0.0
    %v2812 = vmax.f32 %v2256, 0.0
    %v2813 = vmax.f32 %v2258, 0.0
    %v2814 = vmax.f32 %v2482, 0.0
    %v2815 = vmax.f32 %v2484, 0.0
    %v2816 = vmax.f32 %v2708, 0.0
    %v2817 = vmax.f32 %v2710, 0.0
    %v2818 = vmax.f32 %v2034, 0.0
    %v2819 = vmax.f32 %v2036, 0.0
    %v2820 = vmax.f32 %v2260, 0.0
    %v2821 = vmax.f32 %v2262, 0.0
    %v2822 = vmax.f32 %v2486, 0.0
    %v2823 = vmax.f32 %v2488, 0.0
    %v2824 = vmax.f32 %v2712, 0.0
    %v2825 = vmax.f32 %v2714, 0.0
    %v2826 = vmax.f32 %v2040, 0.0
    %v2827 = vmax.f32 %v2042, 0.0
    %v2828 = vmax.f32 %v2266, 0.0
    %v2829 = vmax.f32 %v2268, 0.0
    %v2830 = vmax.f32 %v2492, 0.0
    %v2831 = vmax.f32 %v2494, 0.0
    %v2832 = vmax.f32 %v2718, 0.0
    %v2833 = vmax.f32 %v2720, 0.0
    %v2834 = vmax.f32 %v2044, 0.0
    %v2835 = vmax.f32 %v2046, 0.0
    %v2836 = vmax.f32 %v2270, 0.0
    %v2837 = vmax.f32 %v2272, 0.0
    %v2838 = vmax.f32 %v2496, 0.0
    %v2839 = vmax.f32 %v2498, 0.0
    %v2840 = vmax.f32 %v2722, 0.0
    %v2841 = vmax.f32 %v2724, 0.0
    %v2842 = vmax.f32 %v2050, 0.0
    %v2843 = vmax.f32 %v2052, 0.0
    %v2844 = vmax.f32 %v2276, 0.0
    %v2845 = vmax.f32 %v2278, 0.0
    %v2846 = vmax.f32 %v2502, 0.0
    %v2847 = vmax.f32 %v2504, 0.0
    %v2848 = vmax.f32 %v2728, 0.0
    %v2849 = vmax.f32 %v2730, 0.0
    %v2850 = vmax.f32 %v2054, 0.0
    %v2851 = vmax.f32 %v2056, 0.0
    %v2852 = vmax.f32 %v2280, 0.0
    %v2853 = vmax.f32 %v2282, 0.0
    %v2854 = vmax.f32 %v2506, 0.0
    %v2855 = vmax.f32 %v2508, 0.0
    %v2856 = vmax.f32 %v2732, 0.0
    %v2857 = vmax.f32 %v2734, 0.0
    %v2858 = vmax.f32 %v2060, 0.0
    %v2859 = vmax.f32 %v2062, 0.0
    %v2860 = vmax.f32 %v2286, 0.0
    %v2861 = vmax.f32 %v2288, 0.0
    %v2862 = vmax.f32 %v2512, 0.0
    %v2863 = vmax.f32 %v2514, 0.0
    %v2864 = vmax.f32 %v2738, 0.0
    %v2865 = vmax.f32 %v2740, 0.0
    %v2866 = vmax.f32 %v2064, 0.0
    %v2867 = vmax.f32 %v2066, 0.0
    %v2868 = vmax.f32 %v2290, 0.0
    %v2869 = vmax.f32 %v2292, 0.0
    %v2870 = vmax.f32 %v2516, 0.0
    %v2871 = vmax.f32 %v2518, 0.0
    %v2872 = vmax.f32 %v2742, 0.0
    %v2873 = vmax.f32 %v2744, 0.0
    %v2874 = vmax.f32 %v2746, %v2754
    %v2875 = vmax.f32 %v2874, %v2762
    %v2876 = vmax.f32 %v2875, %v2770
    %v2877 = vmax.f32 %v2876, %v2778
    %v2878 = vmax.f32 %v2877, %v2786
    %v2879 = vmax.f32 %v2878, %v2794
    %v2880 = vmax.f32 %v2879, %v2802
    %v2881 = vrot.slane %v2880, 4
    %v2882 = vmax.f32 %v2880, %v2881
    %v2883 = vrot.slane %v2882, 2
    %v2884 = vmax.f32 %v2882, %v2883
    %v2885 = vrot.slane %v2884, 1
    %v2886 = vmax.f32 %v2884, %v2885
    %v2887 = vmax.f32 %v2747, %v2755
    %v2888 = vmax.f32 %v2887, %v2763
    %v2889 = vmax.f32 %v2888, %v2771
    %v2890 = vmax.f32 %v2889, %v2779
    %v2891 = vmax.f32 %v2890, %v2787
    %v2892 = vmax.f32 %v2891, %v2795
    %v2893 = vmax.f32 %v2892, %v2803
    %v2894 = vrot.slane %v2893, 4
    %v2895 = vmax.f32 %v2893, %v2894
    %v2896 = vrot.slane %v2895, 2
    %v2897 = vmax.f32 %v2895, %v2896
    %v2898 = vrot.slane %v2897, 1
    %v2899 = vmax.f32 %v2897, %v2898
    %v2900 = vmax.f32 %v2748, %v2756
    %v2901 = vmax.f32 %v2900, %v2764
    %v2902 = vmax.f32 %v2901, %v2772
    %v2903 = vmax.f32 %v2902, %v2780
    %v2904 = vmax.f32 %v2903, %v2788
    %v2905 = vmax.f32 %v2904, %v2796
    %v2906 = vmax.f32 %v2905, %v2804
    %v2907 = vrot.slane %v2906, 4
    %v2908 = vmax.f32 %v2906, %v2907
    %v2909 = vrot.slane %v2908, 2
    %v2910 = vmax.f32 %v2908, %v2909
    %v2911 = vrot.slane %v2910, 1
    %v2912 = vmax.f32 %v2910, %v2911
    %v2913 = vmax.f32 %v2749, %v2757
    %v2914 = vmax.f32 %v2913, %v2765
    %v2915 = vmax.f32 %v2914, %v2773
    %v2916 = vmax.f32 %v2915, %v2781
    %v2917 = vmax.f32 %v2916, %v2789
    %v2918 = vmax.f32 %v2917, %v2797
    %v2919 = vmax.f32 %v2918, %v2805
    %v2920 = vrot.slane %v2919, 4
    %v2921 = vmax.f32 %v2919, %v2920
    %v2922 = vrot.slane %v2921, 2
    %v2923 = vmax.f32 %v2921, %v2922
    %v2924 = vrot.slane %v2923, 1
    %v2925 = vmax.f32 %v2923, %v2924
    %v2926 = vmax.f32 %v2750, %v2758
    %v2927 = vmax.f32 %v2926, %v2766
    %v2928 = vmax.f32 %v2927, %v2774
    %v2929 = vmax.f32 %v2928, %v2782
    %v2930 = vmax.f32 %v2929, %v2790
    %v2931 = vmax.f32 %v2930, %v2798
    %v2932 = vmax.f32 %v2931, %v2806
    %v2933 = vrot.slane %v2932, 4
    %v2934 = vmax.f32 %v2932, %v2933
    %v2935 = vrot.slane %v2934, 2
    %v2936 = vmax.f32 %v2934, %v2935
    %v2937 = vrot.slane %v2936, 1
    %v2938 = vmax.f32 %v2936, %v2937
    %v2939 = vmax.f32 %v2751, %v2759
    %v2940 = vmax.f32 %v2939, %v2767
    %v2941 = vmax.f32 %v2940, %v2775
    %v2942 = vmax.f32 %v2941, %v2783
    %v2943 = vmax.f32 %v2942, %v2791
    %v2944 = vmax.f32 %v2943, %v2799
    %v2945 = vmax.f32 %v2944, %v2807
    %v2946 = vrot.slane %v2945, 4
    %v2947 = vmax.f32 %v2945, %v2946
    %v2948 = vrot.slane %v2947, 2
    %v2949 = vmax.f32 %v2947, %v2948
    %v2950 = vrot.slane %v2949, 1
    %v2951 = vmax.f32 %v2949, %v2950
    %v2952 = vmax.f32 %v2752, %v2760
    %v2953 = vmax.f32 %v2952, %v2768
    %v2954 = vmax.f32 %v2953, %v2776
    %v2955 = vmax.f32 %v2954, %v2784
    %v2956 = vmax.f32 %v2955, %v2792
    %v2957 = vmax.f32 %v2956, %v2800
    %v2958 = vmax.f32 %v2957, %v2808
    %v2959 = vrot.slane %v2958, 4
    %v2960 = vmax.f32 %v2958, %v2959
    %v2961 = vrot.slane %v2960, 2
    %v2962 = vmax.f32 %v2960, %v2961
    %v2963 = vrot.slane %v2962, 1
    %v2964 = vmax.f32 %v2962, %v2963
    %v2965 = vmax.f32 %v2753, %v2761
    %v2966 = vmax.f32 %v2965, %v2769
    %v2967 = vmax.f32 %v2966, %v2777
    %v2968 = vmax.f32 %v2967, %v2785
    %v2969 = vmax.f32 %v2968, %v2793
    %v2970 = vmax.f32 %v2969, %v2801
    %v2971 = vmax.f32 %v2970, %v2809
    %v2972 = vrot.slane %v2971, 4
    %v2973 = vmax.f32 %v2971, %v2972
    %v2974 = vrot.slane %v2973, 2
    %v2975 = vmax.f32 %v2973, %v2974
    %v2976 = vrot.slane %v2975, 1
    %v2977 = vmax.f32 %v2975, %v2976
    %v2978 = vadd.f32 %v2746, %v2754
    %v2979 = vadd.f32 %v2978, %v2762
    %v2980 = vadd.f32 %v2979, %v2770
    %v2981 = vadd.f32 %v2980, %v2778
    %v2982 = vadd.f32 %v2981, %v2786
    %v2983 = vadd.f32 %v2982, %v2794
    %v2984 = vadd.f32 %v2983, %v2802
    %v2985 = vrot.slane %v2984, 4
    %v2986 = vadd.f32 %v2984, %v2985
    %v2987 = vrot.slane %v2986, 2
    %v2988 = vadd.f32 %v2986, %v2987
    %v2989 = vrot.slane %v2988, 1
    %v2990 = vadd.f32 %v2988, %v2989
    %v2991 = vadd.f32 %v2747, %v2755
    %v2992 = vadd.f32 %v2991, %v2763
    %v2993 = vadd.f32 %v2992, %v2771
    %v2994 = vadd.f32 %v2993, %v2779
    %v2995 = vadd.f32 %v2994, %v2787
    %v2996 = vadd.f32 %v2995, %v2795
    %v2997 = vadd.f32 %v2996, %v2803
    %v2998 = vrot.slane %v2997, 4
    %v2999 = vadd.f32 %v2997, %v2998
    %v3000 = vrot.slane %v2999, 2
    %v3001 = vadd.f32 %v2999, %v3000
    %v3002 = vrot.slane %v3001, 1
    %v3003 = vadd.f32 %v3001, %v3002
    %v3004 = vadd.f32 %v2748, %v2756
    %v3005 = vadd.f32 %v3004, %v2764
    %v3006 = vadd.f32 %v3005, %v2772
    %v3007 = vadd.f32 %v3006, %v2780
    %v3008 = vadd.f32 %v3007, %v2788
    %v3009 = vadd.f32 %v3008, %v2796
    %v3010 = vadd.f32 %v3009, %v2804
    %v3011 = vrot.slane %v3010, 4
    %v3012 = vadd.f32 %v3010, %v3011
    %v3013 = vrot.slane %v3012, 2
    %v3014 = vadd.f32 %v3012, %v3013
    %v3015 = vrot.slane %v3014, 1
    %v3016 = vadd.f32 %v3014, %v3015
    %v3017 = vadd.f32 %v2749, %v2757
    %v3018 = vadd.f32 %v3017, %v2765
    %v3019 = vadd.f32 %v3018, %v2773
    %v3020 = vadd.f32 %v3019, %v2781
    %v3021 = vadd.f32 %v3020, %v2789
    %v3022 = vadd.f32 %v3021, %v2797
    %v3023 = vadd.f32 %v3022, %v2805
    %v3024 = vrot.slane %v3023, 4
    %v3025 = vadd.f32 %v3023, %v3024
    %v3026 = vrot.slane %v3025, 2
    %v3027 = vadd.f32 %v3025, %v3026
    %v3028 = vrot.slane %v3027, 1
    %v3029 = vadd.f32 %v3027, %v3028
    %v3030 = vadd.f32 %v2750, %v2758
    %v3031 = vadd.f32 %v3030, %v2766
    %v3032 = vadd.f32 %v3031, %v2774
    %v3033 = vadd.f32 %v3032, %v2782
    %v3034 = vadd.f32 %v3033, %v2790
    %v3035 = vadd.f32 %v3034, %v2798
    %v3036 = vadd.f32 %v3035, %v2806
    %v3037 = vrot.slane %v3036, 4
    %v3038 = vadd.f32 %v3036, %v3037
    %v3039 = vrot.slane %v3038, 2
    %v3040 = vadd.f32 %v3038, %v3039
    %v3041 = vrot.slane %v3040, 1
    %v3042 = vadd.f32 %v3040, %v3041
    %v3043 = vadd.f32 %v2751, %v2759
    %v3044 = vadd.f32 %v3043, %v2767
    %v3045 = vadd.f32 %v3044, %v2775
    %v3046 = vadd.f32 %v3045, %v2783
    %v3047 = vadd.f32 %v3046, %v2791
    %v3048 = vadd.f32 %v3047, %v2799
    %v3049 = vadd.f32 %v3048, %v2807
    %v3050 = vrot.slane %v3049, 4
    %v3051 = vadd.f32 %v3049, %v3050
    %v3052 = vrot.slane %v3051, 2
    %v3053 = vadd.f32 %v3051, %v3052
    %v3054 = vrot.slane %v3053, 1
    %v3055 = vadd.f32 %v3053, %v3054
    %v3056 = vadd.f32 %v2752, %v2760
    %v3057 = vadd.f32 %v3056, %v2768
    %v3058 = vadd.f32 %v3057, %v2776
    %v3059 = vadd.f32 %v3058, %v2784
    %v3060 = vadd.f32 %v3059, %v2792
    %v3061 = vadd.f32 %v3060, %v2800
    %v3062 = vadd.f32 %v3061, %v2808
    %v3063 = vrot.slane %v3062, 4
    %v3064 = vadd.f32 %v3062, %v3063
    %v3065 = vrot.slane %v3064, 2
    %v3066 = vadd.f32 %v3064, %v3065
    %v3067 = vrot.slane %v3066, 1
    %v3068 = vadd.f32 %v3066, %v3067
    %v3069 = vadd.f32 %v2753, %v2761
    %v3070 = vadd.f32 %v3069, %v2769
    %v3071 = vadd.f32 %v3070, %v2777
    %v3072 = vadd.f32 %v3071, %v2785
    %v3073 = vadd.f32 %v3072, %v2793
    %v3074 = vadd.f32 %v3073, %v2801
    %v3075 = vadd.f32 %v3074, %v2809
    %v3076 = vrot.slane %v3075, 4
    %v3077 = vadd.f32 %v3075, %v3076
    %v3078 = vrot.slane %v3077, 2
    %v3079 = vadd.f32 %v3077, %v3078
    %v3080 = vrot.slane %v3079, 1
    %v3081 = vadd.f32 %v3079, %v3080
    %v3082 = vrcp.pop 64.0
    %v3083 = vmul.f32 %v2990, %v3082
    %v3084 = vmul.f32 %v3003, %v3082
    %v3085 = vmul.f32 %v3016, %v3082
    %v3086 = vmul.f32 %v3029, %v3082
    %v3087 = vmul.f32 %v3042, %v3082
    %v3088 = vmul.f32 %v3055, %v3082
    %v3089 = vmul.f32 %v3068, %v3082
    %v3090 = vmul.f32 %v3081, %v3082
    %v3091 = vmax.f32 %v2810, %v2818
    %v3092 = vmax.f32 %v3091, %v2826
    %v3093 = vmax.f32 %v3092, %v2834
    %v3094 = vmax.f32 %v3093, %v2842
    %v3095 = vmax.f32 %v3094, %v2850
    %v3096 = vmax.f32 %v3095, %v2858
    %v3097 = vmax.f32 %v3096, %v2866
    %v3098 = vrot.slane %v3097, 4
    %v3099 = vmax.f32 %v3097, %v3098
    %v3100 = vrot.slane %v3099, 2
    %v3101 = vmax.f32 %v3099, %v3100
    %v3102 = vrot.slane %v3101, 1
    %v3103 = vmax.f32 %v3101, %v3102
    %v3104 = vmax.f32 %v2811, %v2819
    %v3105 = vmax.f32 %v3104, %v2827
    %v3106 = vmax.f32 %v3105, %v2835
    %v3107 = vmax.f32 %v3106, %v2843
    %v3108 = vmax.f32 %v3107, %v2851
    %v3109 = vmax.f32 %v3108, %v2859
    %v3110 = vmax.f32 %v3109, %v2867
    %v3111 = vrot.slane %v3110, 4
    %v3112 = vmax.f32 %v3110, %v3111
    %v3113 = vrot.slane %v3112, 2
    %v3114 = vmax.f32 %v3112, %v3113
    %v3115 = vrot.slane %v3114, 1
    %v3116 = vmax.f32 %v3114, %v3115
    %v3117 = vmax.f32 %v2812, %v2820
    %v3118 = vmax.f32 %v3117, %v2828
    %v3119 = vmax.f32 %v3118, %v2836
    %v3120 = vmax.f32 %v3119, %v2844
    %v3121 = vmax.f32 %v3120, %v2852
    %v3122 = vmax.f32 %v3121, %v2860
    %v3123 = vmax.f32 %v3122, %v2868
    %v3124 = vrot.slane %v3123, 4
    %v3125 = vmax.f32 %v3123, %v3124
    %v3126 = vrot.slane %v3125, 2
    %v3127 = vmax.f32 %v3125, %v3126
    %v3128 = vrot.slane %v3127, 1
    %v3129 = vmax.f32 %v3127, %v3128
    %v3130 = vmax.f32 %v2813, %v2821
    %v3131 = vmax.f32 %v3130, %v2829
    %v3132 = vmax.f32 %v3131, %v2837
    %v3133 = vmax.f32 %v3132, %v2845
    %v3134 = vmax.f32 %v3133, %v2853
    %v3135 = vmax.f32 %v3134, %v2861
    %v3136 = vmax.f32 %v3135, %v2869
    %v3137 = vrot.slane %v3136, 4
    %v3138 = vmax.f32 %v3136, %v3137
    %v3139 = vrot.slane %v3138, 2
    %v3140 = vmax.f32 %v3138, %v3139
    %v3141 = vrot.slane %v3140, 1
    %v3142 = vmax.f32 %v3140, %v3141
    %v3143 = vmax.f32 %v2814, %v2822
    %v3144 = vmax.f32 %v3143, %v2830
    %v3145 = vmax.f32 %v3144, %v2838
    %v3146 = vmax.f32 %v3145, %v2846
    %v3147 = vmax.f32 %v3146, %v2854
    %v3148 = vmax.f32 %v3147, %v2862
    %v3149 = vmax.f32 %v3148, %v2870
    %v3150 = vrot.slane %v3149, 4
    %v3151 = vmax.f32 %v3149, %v3150
    %v3152 = vrot.slane %v3151, 2
    %v3153 = vmax.f32 %v3151, %v3152
    %v3154 = vrot.slane %v3153, 1
    %v3155 = vmax.f32 %v3153, %v3154
    %v3156 = vmax.f32 %v2815, %v2823
    %v3157 = vmax.f32 %v3156, %v2831
    %v3158 = vmax.f32 %v3157, %v2839
    %v3159 = vmax.f32 %v3158, %v2847
    %v3160 = vmax.f32 %v3159, %v2855
    %v3161 = vmax.f32 %v3160, %v2863
    %v3162 = vmax.f32 %v3161, %v2871
    %v3163 = vrot.slane %v3162, 4
    %v3164 = vmax.f32 %v3162, %v3163
    %v3165 = vrot.slane %v3164, 2
    %v3166 = vmax.f32 %v3164, %v3165
    %v3167 = vrot.slane %v3166, 1
    %v3168 = vmax.f32 %v3166, %v3167
    %v3169 = vmax.f32 %v2816, %v2824
    %v3170 = vmax.f32 %v3169, %v2832
    %v3171 = vmax.f32 %v3170, %v2840
    %v3172 = vmax.f32 %v3171, %v2848
    %v3173 = vmax.f32 %v3172, %v2856
    %v3174 = vmax.f32 %v3173, %v2864
    %v3175 = vmax.f32 %v3174, %v2872
    %v3176 = vrot.slane %v3175, 4
    %v3177 = vmax.f32 %v3175, %v3176
    %v3178 = vrot.slane %v3177, 2
    %v3179 = vmax.f32 %v3177, %v3178
    %v3180 = vrot.slane %v3179, 1
    %v3181 = vmax.f32 %v3179, %v3180
    %v3182 = vmax.f32 %v2817, %v2825
    %v3183 = vmax.f32 %v3182, %v2833
    %v3184 = vmax.f32 %v3183, %v2841
    %v3185 = vmax.f32 %v3184, %v2849
    %v3186 = vmax.f32 %v3185, %v2857
    %v3187 = vmax.f32 %v3186, %v2865
    %v3188 = vmax.f32 %v3187, %v2873
    %v3189 = vrot.slane %v3188, 4
    %v3190 = vmax.f32 %v3188, %v3189
    %v3191 = vrot.slane %v3190, 2
    %v3192 = vmax.f32 %v3190, %v3191
    %v3193 = vrot.slane %v3192, 1
    %v3194 = vmax.f32 %v3192, %v3193
    %v3195 = vadd.f32 %v2810, %v2818
    %v3196 = vadd.f32 %v3195, %v2826
    %v3197 = vadd.f32 %v3196, %v2834
    %v3198 = vadd.f32 %v3197, %v2842
    %v3199 = vadd.f32 %v3198, %v2850
    %v3200 = vadd.f32 %v3199, %v2858
    %v3201 = vadd.f32 %v3200, %v2866
    %v3202 = vrot.slane %v3201, 4
    %v3203 = vadd.f32 %v3201, %v3202
    %v3204 = vrot.slane %v3203, 2
    %v3205 = vadd.f32 %v3203, %v3204
    %v3206 = vrot.slane %v3205, 1
    %v3207 = vadd.f32 %v3205, %v3206
    %v3208 = vadd.f32 %v2811, %v2819
    %v3209 = vadd.f32 %v3208, %v2827
    %v3210 = vadd.f32 %v3209, %v2835
    %v3211 = vadd.f32 %v3210, %v2843
    %v3212 = vadd.f32 %v3211, %v2851
    %v3213 = vadd.f32 %v3212, %v2859
    %v3214 = vadd.f32 %v3213, %v2867
    %v3215 = vrot.slane %v3214, 4
    %v3216 = vadd.f32 %v3214, %v3215
    %v3217 = vrot.slane %v3216, 2
    %v3218 = vadd.f32 %v3216, %v3217
    %v3219 = vrot.slane %v3218, 1
    %v3220 = vadd.f32 %v3218, %v3219
    %v3221 = vadd.f32 %v2812, %v2820
    %v3222 = vadd.f32 %v3221, %v2828
    %v3223 = vadd.f32 %v3222, %v2836
    %v3224 = vadd.f32 %v3223, %v2844
    %v3225 = vadd.f32 %v3224, %v2852
    %v3226 = vadd.f32 %v3225, %v2860
    %v3227 = vadd.f32 %v3226, %v2868
    %v3228 = vrot.slane %v3227, 4
    %v3229 = vadd.f32 %v3227, %v3228
    %v3230 = vrot.slane %v3229, 2
    %v3231 = vadd.f32 %v3229, %v3230
    %v3232 = vrot.slane %v3231, 1
    %v3233 = vadd.f32 %v3231, %v3232
    %v3234 = vadd.f32 %v2813, %v2821
    %v3235 = vadd.f32 %v3234, %v2829
    %v3236 = vadd.f32 %v3235, %v2837
    %v3237 = vadd.f32 %v3236, %v2845
    %v3238 = vadd.f32 %v3237, %v2853
    %v3239 = vadd.f32 %v3238, %v2861
    %v3240 = vadd.f32 %v3239, %v2869
    %v3241 = vrot.slane %v3240, 4
    %v3242 = vadd.f32 %v3240, %v3241
    %v3243 = vrot.slane %v3242, 2
    %v3244 = vadd.f32 %v3242, %v3243
    %v3245 = vrot.slane %v3244, 1
    %v3246 = vadd.f32 %v3244, %v3245
    %v3247 = vadd.f32 %v2814, %v2822
    %v3248 = vadd.f32 %v3247, %v2830
    %v3249 = vadd.f32 %v3248, %v2838
    %v3250 = vadd.f32 %v3249, %v2846
    %v3251 = vadd.f32 %v3250, %v2854
    %v3252 = vadd.f32 %v3251, %v2862
    %v3253 = vadd.f32 %v3252, %v2870
    %v3254 = vrot.slane %v3253, 4
    %v3255 = vadd.f32 %v3253, %v3254
    %v3256 = vrot.slane %v3255, 2
    %v3257 = vadd.f32 %v3255, %v3256
    %v3258 = vrot.slane %v3257, 1
    %v3259 = vadd.f32 %v3257, %v3258
    %v3260 = vadd.f32 %v2815, %v2823
    %v3261 = vadd.f32 %v3260, %v2831
    %v3262 = vadd.f32 %v3261, %v2839
    %v3263 = vadd.f32 %v3262, %v2847
    %v3264 = vadd.f32 %v3263, %v2855
    %v3265 = vadd.f32 %v3264, %v2863
    %v3266 = vadd.f32 %v3265, %v2871
    %v3267 = vrot.slane %v3266, 4
    %v3268 = vadd.f32 %v3266, %v3267
    %v3269 = vrot.slane %v3268, 2
    %v3270 = vadd.f32 %v3268, %v3269
    %v3271 = vrot.slane %v3270, 1
    %v3272 = vadd.f32 %v3270, %v3271
    %v3273 = vadd.f32 %v2816, %v2824
    %v3274 = vadd.f32 %v3273, %v2832
    %v3275 = vadd.f32 %v3274, %v2840
    %v3276 = vadd.f32 %v3275, %v2848
    %v3277 = vadd.f32 %v3276, %v2856
    %v3278 = vadd.f32 %v3277, %v2864
    %v3279 = vadd.f32 %v3278, %v2872
    %v3280 = vrot.slane %v3279, 4
    %v3281 = vadd.f32 %v3279, %v3280
    %v3282 = vrot.slane %v3281, 2
    %v3283 = vadd.f32 %v3281, %v3282
    %v3284 = vrot.slane %v3283, 1
    %v3285 = vadd.f32 %v3283, %v3284
    %v3286 = vadd.f32 %v2817, %v2825
    %v3287 = vadd.f32 %v3286, %v2833
    %v3288 = vadd.f32 %v3287, %v2841
    %v3289 = vadd.f32 %v3288, %v2849
    %v3290 = vadd.f32 %v3289, %v2857
    %v3291 = vadd.f32 %v3290, %v2865
    %v3292 = vadd.f32 %v3291, %v2873
    %v3293 = vrot.slane %v3292, 4
    %v3294 = vadd.f32 %v3292, %v3293
    %v3295 = vrot.slane %v3294, 2
    %v3296 = vadd.f32 %v3294, %v3295
    %v3297 = vrot.slane %v3296, 1
    %v3298 = vadd.f32 %v3296, %v3297
    %v3299 = vmul.f32 %v3207, %v3082
    %v3300 = vmul.f32 %v3220, %v3082
    %v3301 = vmul.f32 %v3233, %v3082
    %v3302 = vmul.f32 %v3246, %v3082
    %v3303 = vmul.f32 %v3259, %v3082
    %v3304 = vmul.f32 %v3272, %v3082
    %v3305 = vmul.f32 %v3285, %v3082
    %v3306 = vmul.f32 %v3298, %v3082
    %vm3307 = vcmask 1040384
    %v3308 = vsel %vm3307, %v2886, %v3103
    %v3309 = vsel %vm3307, %v2899, %v3116
    %v3310 = vsel %vm3307, %v2912, %v3129
    %v3311 = vsel %vm3307, %v2925, %v3142
    %v3312 = vsel %vm3307, %v2938, %v3155
    %v3313 = vsel %vm3307, %v2951, %v3168
    %v3314 = vsel %vm3307, %v2964, %v3181
    %v3315 = vsel %vm3307, %v2977, %v3194
    %v3316 = vpack.c.bf16 %v3308, %v3308
    %v3317 = vpack.c.bf16 %v3309, %v3309
    %v3318 = vpack.c.bf16 %v3310, %v3310
    %v3319 = vpack.c.bf16 %v3311, %v3311
    %v3320 = vpack.c.bf16 %v3312, %v3312
    %v3321 = vpack.c.bf16 %v3313, %v3313
    %v3322 = vpack.c.bf16 %v3314, %v3314
    %v3323 = vpack.c.bf16 %v3315, %v3315
    %v3324 = vsel %vm3307, %v3083, %v3299
    %v3325 = vsel %vm3307, %v3084, %v3300
    %v3326 = vsel %vm3307, %v3085, %v3301
    %v3327 = vsel %vm3307, %v3086, %v3302
    %v3328 = vsel %vm3307, %v3087, %v3303
    %v3329 = vsel %vm3307, %v3088, %v3304
    %v3330 = vsel %vm3307, %v3089, %v3305
    %v3331 = vsel %vm3307, %v3090, %v3306
    %v3332 = vpack.c.bf16 %v3324, %v3324
    %v3333 = vpack.c.bf16 %v3325, %v3325
    %v3334 = vpack.c.bf16 %v3326, %v3326
    %v3335 = vpack.c.bf16 %v3327, %v3327
    %v3336 = vpack.c.bf16 %v3328, %v3328
    %v3337 = vpack.c.bf16 %v3329, %v3329
    %v3338 = vpack.c.bf16 %v3330, %v3330
    %v3339 = vpack.c.bf16 %v3331, %v3331
    %v3340 = vld [vmem:[#allocation5] sm:$0xff]
    %v3341 = vld [vmem:[#allocation5 + $0x8] sm:$0xff]
    %v3342 = vld [vmem:[#allocation5 + $0x10] sm:$0xff]
    %v3343 = vld [vmem:[#allocation5 + $0x18] sm:$0xff]
    %v3344 = vld [vmem:[#allocation5 + $0x20] sm:$0xff]
    %v3345 = vld [vmem:[#allocation5 + $0x28] sm:$0xff]
    %v3346 = vld [vmem:[#allocation5 + $0x30] sm:$0xff]
    %v3347 = vld [vmem:[#allocation5 + $0x38] sm:$0xff]
    %v3348 = vld [vmem:[#allocation5 + $0x40] sm:$0xff]
    %v3349 = vld [vmem:[#allocation5 + $0x48] sm:$0xff]
    %v3350 = vld [vmem:[#allocation5 + $0x50] sm:$0xff]
    %v3351 = vld [vmem:[#allocation5 + $0x58] sm:$0xff]
    %v3352 = vld [vmem:[#allocation5 + $0x60] sm:$0xff]
    %v3353 = vld [vmem:[#allocation5 + $0x68] sm:$0xff]
    %v3354 = vld [vmem:[#allocation5 + $0x70] sm:$0xff]
    %v3355 = vld [vmem:[#allocation5 + $0x78] sm:$0xff]
    %v3356 = vld [vmem:[#allocation5 + $0x80] sm:$0xff]
    %v3357 = vld [vmem:[#allocation5 + $0x88] sm:$0xff]
    %v3358 = vld [vmem:[#allocation5 + $0x90] sm:$0xff]
    %v3359 = vld [vmem:[#allocation5 + $0x98] sm:$0xff]
    %v3360 = vld [vmem:[#allocation5 + $0xa0] sm:$0xff]
    %v3361 = vld [vmem:[#allocation5 + $0xa8] sm:$0xff]
    %v3362 = vld [vmem:[#allocation5 + $0xb0] sm:$0xff]
    %v3363 = vld [vmem:[#allocation5 + $0xb8] sm:$0xff]
    %v3364 = vld [vmem:[#allocation5 + $0xc0] sm:$0xff]
    %v3365 = vld [vmem:[#allocation5 + $0xc8] sm:$0xff]
    %v3366 = vld [vmem:[#allocation5 + $0xd0] sm:$0xff]
    %v3367 = vld [vmem:[#allocation5 + $0xd8] sm:$0xff]
    %v3368 = vld [vmem:[#allocation5 + $0xe0] sm:$0xff]
    %v3369 = vld [vmem:[#allocation5 + $0xe8] sm:$0xff]
    %v3370 = vld [vmem:[#allocation5 + $0xf0] sm:$0xff]
    %v3371 = vld [vmem:[#allocation5 + $0xf8] sm:$0xff]
    %v3372 = vld [vmem:[#allocation5 + $0x100] sm:$0xff]
    %v3373 = vld [vmem:[#allocation5 + $0x108] sm:$0xff]
    %v3374 = vld [vmem:[#allocation5 + $0x110] sm:$0xff]
    %v3375 = vld [vmem:[#allocation5 + $0x118] sm:$0xff]
    %v3376 = vld [vmem:[#allocation5 + $0x120] sm:$0xff]
    %v3377 = vld [vmem:[#allocation5 + $0x128] sm:$0xff]
    %v3378 = vld [vmem:[#allocation5 + $0x130] sm:$0xff]
    %v3379 = vld [vmem:[#allocation5 + $0x138] sm:$0xff]
    %v3380 = vld [vmem:[#allocation5 + $0x140] sm:$0xff]
    %v3381 = vld [vmem:[#allocation5 + $0x148] sm:$0xff]
    %v3382 = vld [vmem:[#allocation5 + $0x150] sm:$0xff]
    %v3383 = vld [vmem:[#allocation5 + $0x158] sm:$0xff]
    %v3384 = vld [vmem:[#allocation5 + $0x160] sm:$0xff]
    %v3385 = vld [vmem:[#allocation5 + $0x168] sm:$0xff]
    %v3386 = vld [vmem:[#allocation5 + $0x170] sm:$0xff]
    %v3387 = vld [vmem:[#allocation5 + $0x178] sm:$0xff]
    %v3388 = vld [vmem:[#allocation5 + $0x180] sm:$0xff]
    %v3389 = vld [vmem:[#allocation5 + $0x188] sm:$0xff]
    %v3390 = vld [vmem:[#allocation5 + $0x190] sm:$0xff]
    %v3391 = vld [vmem:[#allocation5 + $0x198] sm:$0xff]
    %v3392 = vld [vmem:[#allocation5 + $0x1a0] sm:$0xff]
    %v3393 = vld [vmem:[#allocation5 + $0x1a8] sm:$0xff]
    %v3394 = vld [vmem:[#allocation5 + $0x1b0] sm:$0xff]
    %v3395 = vld [vmem:[#allocation5 + $0x1b8] sm:$0xff]
    %v3396 = vld [vmem:[#allocation5 + $0x1c0] sm:$0xff]
    %v3397 = vld [vmem:[#allocation5 + $0x1c8] sm:$0xff]
    %v3398 = vld [vmem:[#allocation5 + $0x1d0] sm:$0xff]
    %v3399 = vld [vmem:[#allocation5 + $0x1d8] sm:$0xff]
    %v3400 = vld [vmem:[#allocation5 + $0x1e0] sm:$0xff]
    %v3401 = vld [vmem:[#allocation5 + $0x1e8] sm:$0xff]
    %v3402 = vld [vmem:[#allocation5 + $0x1f0] sm:$0xff]
    %v3403 = vld [vmem:[#allocation5 + $0x1f8] sm:$0xff]
    %v3404 = vld [vmem:[#allocation5 + $0x200] sm:$0xff]
    %v3405 = vld [vmem:[#allocation5 + $0x208] sm:$0xff]
    %v3406 = vld [vmem:[#allocation5 + $0x210] sm:$0xff]
    %v3407 = vld [vmem:[#allocation5 + $0x218] sm:$0xff]
    %v3408 = vld [vmem:[#allocation5 + $0x220] sm:$0xff]
    %v3409 = vld [vmem:[#allocation5 + $0x228] sm:$0xff]
    %v3410 = vld [vmem:[#allocation5 + $0x230] sm:$0xff]
    %v3411 = vld [vmem:[#allocation5 + $0x238] sm:$0xff]
    %v3412 = vld [vmem:[#allocation5 + $0x240] sm:$0xff]
    %v3413 = vld [vmem:[#allocation5 + $0x248] sm:$0xff]
    %v3414 = vld [vmem:[#allocation5 + $0x250] sm:$0xff]
    %v3415 = vld [vmem:[#allocation5 + $0x258] sm:$0xff]
    %v3416 = vld [vmem:[#allocation5 + $0x260] sm:$0xff]
    %v3417 = vld [vmem:[#allocation5 + $0x268] sm:$0xff]
    %v3418 = vld [vmem:[#allocation5 + $0x270] sm:$0xff]
    %v3419 = vld [vmem:[#allocation5 + $0x278] sm:$0xff]
    %v3420 = vld [vmem:[#allocation5 + $0x280] sm:$0xff]
    %v3421 = vld [vmem:[#allocation5 + $0x288] sm:$0xff]
    %v3422 = vld [vmem:[#allocation5 + $0x290] sm:$0xff]
    %v3423 = vld [vmem:[#allocation5 + $0x298] sm:$0xff]
    %v3424 = vld [vmem:[#allocation5 + $0x2a0] sm:$0xff]
    %v3425 = vld [vmem:[#allocation5 + $0x2a8] sm:$0xff]
    %v3426 = vld [vmem:[#allocation5 + $0x2b0] sm:$0xff]
    %v3427 = vld [vmem:[#allocation5 + $0x2b8] sm:$0xff]
    %v3428 = vld [vmem:[#allocation5 + $0x2c0] sm:$0xff]
    %v3429 = vld [vmem:[#allocation5 + $0x2c8] sm:$0xff]
    %v3430 = vld [vmem:[#allocation5 + $0x2d0] sm:$0xff]
    %v3431 = vld [vmem:[#allocation5 + $0x2d8] sm:$0xff]
    %v3432 = vld [vmem:[#allocation5 + $0x2e0] sm:$0xff]
    %v3433 = vld [vmem:[#allocation5 + $0x2e8] sm:$0xff]
    %v3434 = vld [vmem:[#allocation5 + $0x2f0] sm:$0xff]
    %v3435 = vld [vmem:[#allocation5 + $0x2f8] sm:$0xff]
    %v3436 = vld [vmem:[#allocation5 + $0x300] sm:$0xff]
    %v3437 = vld [vmem:[#allocation5 + $0x308] sm:$0xff]
    %v3438 = vld [vmem:[#allocation5 + $0x310] sm:$0xff]
    %v3439 = vld [vmem:[#allocation5 + $0x318] sm:$0xff]
    %v3440 = vld [vmem:[#allocation5 + $0x320] sm:$0xff]
    %v3441 = vld [vmem:[#allocation5 + $0x328] sm:$0xff]
    %v3442 = vld [vmem:[#allocation5 + $0x330] sm:$0xff]
    %v3443 = vld [vmem:[#allocation5 + $0x338] sm:$0xff]
    %v3444 = vld [vmem:[#allocation5 + $0x340] sm:$0xff]
    %v3445 = vld [vmem:[#allocation5 + $0x348] sm:$0xff]
    %v3446 = vld [vmem:[#allocation5 + $0x350] sm:$0xff]
    %v3447 = vld [vmem:[#allocation5 + $0x358] sm:$0xff]
    %v3448 = vld [vmem:[#allocation5 + $0x360] sm:$0xff]
    %v3449 = vld [vmem:[#allocation5 + $0x368] sm:$0xff]
    %v3450 = vld [vmem:[#allocation5 + $0x370] sm:$0xff]
    %v3451 = vld [vmem:[#allocation5 + $0x378] sm:$0xff]
    %v3452 = vld [vmem:[#allocation5 + $0x380] sm:$0xff]
    %v3453 = vld [vmem:[#allocation5 + $0x388] sm:$0xff]
    %v3454 = vld [vmem:[#allocation5 + $0x390] sm:$0xff]
    %v3455 = vld [vmem:[#allocation5 + $0x398] sm:$0xff]
    %v3456 = vld [vmem:[#allocation5 + $0x3a0] sm:$0xff]
    %v3457 = vld [vmem:[#allocation5 + $0x3a8] sm:$0xff]
    %v3458 = vld [vmem:[#allocation5 + $0x3b0] sm:$0xff]
    %v3459 = vld [vmem:[#allocation5 + $0x3b8] sm:$0xff]
    %v3460 = vld [vmem:[#allocation5 + $0x3c0] sm:$0xff]
    %v3461 = vld [vmem:[#allocation5 + $0x3c8] sm:$0xff]
    %v3462 = vld [vmem:[#allocation5 + $0x3d0] sm:$0xff]
    %v3463 = vld [vmem:[#allocation5 + $0x3d8] sm:$0xff]
    %v3464 = vld [vmem:[#allocation5 + $0x3e0] sm:$0xff]
    %v3465 = vld [vmem:[#allocation5 + $0x3e8] sm:$0xff]
    %v3466 = vld [vmem:[#allocation5 + $0x3f0] sm:$0xff]
    %v3467 = vld [vmem:[#allocation5 + $0x3f8] sm:$0xff]
    %v3468 = vld [vmem:[#allocation5 + $0x400] sm:$0xff]
    %v3469 = vld [vmem:[#allocation5 + $0x408] sm:$0xff]
    %v3470 = vld [vmem:[#allocation5 + $0x410] sm:$0xff]
    %v3471 = vld [vmem:[#allocation5 + $0x418] sm:$0xff]
    %v3472 = vld [vmem:[#allocation5 + $0x420] sm:$0xff]
    %v3473 = vld [vmem:[#allocation5 + $0x428] sm:$0xff]
    %v3474 = vld [vmem:[#allocation5 + $0x430] sm:$0xff]
    %v3475 = vld [vmem:[#allocation5 + $0x438] sm:$0xff]
    %v3476 = vld [vmem:[#allocation5 + $0x440] sm:$0xff]
    %v3477 = vld [vmem:[#allocation5 + $0x448] sm:$0xff]
    %v3478 = vld [vmem:[#allocation5 + $0x450] sm:$0xff]
    %v3479 = vld [vmem:[#allocation5 + $0x458] sm:$0xff]
    %v3480 = vld [vmem:[#allocation5 + $0x460] sm:$0xff]
    %v3481 = vld [vmem:[#allocation5 + $0x468] sm:$0xff]
    %v3482 = vld [vmem:[#allocation5 + $0x470] sm:$0xff]
    %v3483 = vld [vmem:[#allocation5 + $0x478] sm:$0xff]
    %v3484 = vld [vmem:[#allocation5 + $0x480] sm:$0xff]
    %v3485 = vld [vmem:[#allocation5 + $0x488] sm:$0xff]
    %v3486 = vld [vmem:[#allocation5 + $0x490] sm:$0xff]
    %v3487 = vld [vmem:[#allocation5 + $0x498] sm:$0xff]
    %v3488 = vld [vmem:[#allocation5 + $0x4a0] sm:$0xff]
    %v3489 = vld [vmem:[#allocation5 + $0x4a8] sm:$0xff]
    %v3490 = vld [vmem:[#allocation5 + $0x4b0] sm:$0xff]
    %v3491 = vld [vmem:[#allocation5 + $0x4b8] sm:$0xff]
    %v3492 = vld [vmem:[#allocation5 + $0x4c0] sm:$0xff]
    %v3493 = vld [vmem:[#allocation5 + $0x4c8] sm:$0xff]
    %v3494 = vld [vmem:[#allocation5 + $0x4d0] sm:$0xff]
    %v3495 = vld [vmem:[#allocation5 + $0x4d8] sm:$0xff]
    %v3496 = vld [vmem:[#allocation5 + $0x4e0] sm:$0xff]
    %v3497 = vld [vmem:[#allocation5 + $0x4e8] sm:$0xff]
    %v3498 = vld [vmem:[#allocation5 + $0x4f0] sm:$0xff]
    %v3499 = vld [vmem:[#allocation5 + $0x4f8] sm:$0xff]
    %v3500 = vld [vmem:[#allocation5 + $0x500] sm:$0xff]
    %v3501 = vld [vmem:[#allocation5 + $0x508] sm:$0xff]
    %v3502 = vld [vmem:[#allocation5 + $0x510] sm:$0xff]
    %v3503 = vld [vmem:[#allocation5 + $0x518] sm:$0xff]
    %v3504 = vld [vmem:[#allocation5 + $0x520] sm:$0xff]
    %v3505 = vld [vmem:[#allocation5 + $0x528] sm:$0xff]
    %v3506 = vld [vmem:[#allocation5 + $0x530] sm:$0xff]
    %v3507 = vld [vmem:[#allocation5 + $0x538] sm:$0xff]
    %v3508 = vld [vmem:[#allocation5 + $0x540] sm:$0xff]
    %v3509 = vld [vmem:[#allocation5 + $0x548] sm:$0xff]
    %v3510 = vld [vmem:[#allocation5 + $0x550] sm:$0xff]
    %v3511 = vld [vmem:[#allocation5 + $0x558] sm:$0xff]
    %v3512 = vld [vmem:[#allocation5 + $0x560] sm:$0xff]
    %v3513 = vld [vmem:[#allocation5 + $0x568] sm:$0xff]
    %v3514 = vld [vmem:[#allocation5 + $0x570] sm:$0xff]
    %v3515 = vld [vmem:[#allocation5 + $0x578] sm:$0xff]
    %v3516 = vld [vmem:[#allocation5 + $0x580] sm:$0xff]
    %v3517 = vld [vmem:[#allocation5 + $0x588] sm:$0xff]
    %v3518 = vld [vmem:[#allocation5 + $0x590] sm:$0xff]
    %v3519 = vld [vmem:[#allocation5 + $0x598] sm:$0xff]
    %v3520 = vld [vmem:[#allocation5 + $0x5a0] sm:$0xff]
    %v3521 = vld [vmem:[#allocation5 + $0x5a8] sm:$0xff]
    %v3522 = vld [vmem:[#allocation5 + $0x5b0] sm:$0xff]
    %v3523 = vld [vmem:[#allocation5 + $0x5b8] sm:$0xff]
    %v3524 = vld [vmem:[#allocation5 + $0x5c0] sm:$0xff]
    %v3525 = vld [vmem:[#allocation5 + $0x5c8] sm:$0xff]
    %v3526 = vld [vmem:[#allocation5 + $0x5d0] sm:$0xff]
    %v3527 = vld [vmem:[#allocation5 + $0x5d8] sm:$0xff]
    %v3528 = vld [vmem:[#allocation5 + $0x5e0] sm:$0xff]
    %v3529 = vld [vmem:[#allocation5 + $0x5e8] sm:$0xff]
    %v3530 = vld [vmem:[#allocation5 + $0x5f0] sm:$0xff]
    %v3531 = vld [vmem:[#allocation5 + $0x5f8] sm:$0xff]
    %v3532 = vld [vmem:[#allocation5 + $0x600] sm:$0xff]
    %v3533 = vld [vmem:[#allocation5 + $0x608] sm:$0xff]
    %v3534 = vld [vmem:[#allocation5 + $0x610] sm:$0xff]
    %v3535 = vld [vmem:[#allocation5 + $0x618] sm:$0xff]
    %v3536 = vld [vmem:[#allocation5 + $0x620] sm:$0xff]
    %v3537 = vld [vmem:[#allocation5 + $0x628] sm:$0xff]
    %v3538 = vld [vmem:[#allocation5 + $0x630] sm:$0xff]
    %v3539 = vld [vmem:[#allocation5 + $0x638] sm:$0xff]
    %v3540 = vld [vmem:[#allocation5 + $0x640] sm:$0xff]
    %v3541 = vld [vmem:[#allocation5 + $0x648] sm:$0xff]
    %v3542 = vld [vmem:[#allocation5 + $0x650] sm:$0xff]
    %v3543 = vld [vmem:[#allocation5 + $0x658] sm:$0xff]
    %v3544 = vld [vmem:[#allocation5 + $0x660] sm:$0xff]
    %v3545 = vld [vmem:[#allocation5 + $0x668] sm:$0xff]
    %v3546 = vld [vmem:[#allocation5 + $0x670] sm:$0xff]
    %v3547 = vld [vmem:[#allocation5 + $0x678] sm:$0xff]
    %v3548 = vld [vmem:[#allocation5 + $0x680] sm:$0xff]
    %v3549 = vld [vmem:[#allocation5 + $0x688] sm:$0xff]
    %v3550 = vld [vmem:[#allocation5 + $0x690] sm:$0xff]
    %v3551 = vld [vmem:[#allocation5 + $0x698] sm:$0xff]
    %v3552 = vld [vmem:[#allocation5 + $0x6a0] sm:$0xff]
    %v3553 = vld [vmem:[#allocation5 + $0x6a8] sm:$0xff]
    %v3554 = vld [vmem:[#allocation5 + $0x6b0] sm:$0xff]
    %v3555 = vld [vmem:[#allocation5 + $0x6b8] sm:$0xff]
    %v3556 = vld [vmem:[#allocation5 + $0x6c0] sm:$0xff]
    %v3557 = vld [vmem:[#allocation5 + $0x6c8] sm:$0xff]
    %v3558 = vld [vmem:[#allocation5 + $0x6d0] sm:$0xff]
    %v3559 = vld [vmem:[#allocation5 + $0x6d8] sm:$0xff]
    %v3560 = vld [vmem:[#allocation5 + $0x6e0] sm:$0xff]
    %v3561 = vld [vmem:[#allocation5 + $0x6e8] sm:$0xff]
    %v3562 = vld [vmem:[#allocation5 + $0x6f0] sm:$0xff]
    %v3563 = vld [vmem:[#allocation5 + $0x6f8] sm:$0xff]
    %v3564 = vld [vmem:[#allocation5 + $0x700] sm:$0xff]
    %v3565 = vld [vmem:[#allocation5 + $0x708] sm:$0xff]
    %v3566 = vld [vmem:[#allocation5 + $0x710] sm:$0xff]
    %v3567 = vld [vmem:[#allocation5 + $0x718] sm:$0xff]
    %v3568 = vld [vmem:[#allocation5 + $0x720] sm:$0xff]
    %v3569 = vld [vmem:[#allocation5 + $0x728] sm:$0xff]
    %v3570 = vld [vmem:[#allocation5 + $0x730] sm:$0xff]
    %v3571 = vld [vmem:[#allocation5 + $0x738] sm:$0xff]
    %v3572 = vld [vmem:[#allocation5 + $0x740] sm:$0xff]
    %v3573 = vld [vmem:[#allocation5 + $0x748] sm:$0xff]
    %v3574 = vld [vmem:[#allocation5 + $0x750] sm:$0xff]
    %v3575 = vld [vmem:[#allocation5 + $0x758] sm:$0xff]
    %v3576 = vld [vmem:[#allocation5 + $0x760] sm:$0xff]
    %v3577 = vld [vmem:[#allocation5 + $0x768] sm:$0xff]
    %v3578 = vld [vmem:[#allocation5 + $0x770] sm:$0xff]
    %v3579 = vld [vmem:[#allocation5 + $0x778] sm:$0xff]
    %v3580 = vld [vmem:[#allocation5 + $0x780] sm:$0xff]
    %v3581 = vld [vmem:[#allocation5 + $0x788] sm:$0xff]
    %v3582 = vld [vmem:[#allocation5 + $0x790] sm:$0xff]
    %v3583 = vld [vmem:[#allocation5 + $0x798] sm:$0xff]
    %v3584 = vld [vmem:[#allocation5 + $0x7a0] sm:$0xff]
    %v3585 = vld [vmem:[#allocation5 + $0x7a8] sm:$0xff]
    %v3586 = vld [vmem:[#allocation5 + $0x7b0] sm:$0xff]
    %v3587 = vld [vmem:[#allocation5 + $0x7b8] sm:$0xff]
    %v3588 = vld [vmem:[#allocation5 + $0x7c0] sm:$0xff]
    %v3589 = vld [vmem:[#allocation5 + $0x7c8] sm:$0xff]
    %v3590 = vld [vmem:[#allocation5 + $0x7d0] sm:$0xff]
    %v3591 = vld [vmem:[#allocation5 + $0x7d8] sm:$0xff]
    %v3592 = vld [vmem:[#allocation5 + $0x7e0] sm:$0xff]
    %v3593 = vld [vmem:[#allocation5 + $0x7e8] sm:$0xff]
    %v3594 = vld [vmem:[#allocation5 + $0x7f0] sm:$0xff]
    %v3595 = vld [vmem:[#allocation5 + $0x7f8] sm:$0xff]
    %v3596 = vld [vmem:[#allocation7] sm:$0xff]
    %v3597 = vld [vmem:[#allocation7 + $0x8] sm:$0xff]
    %v3598 = vld [vmem:[#allocation7 + $0x10] sm:$0xff]
    %v3599 = vld [vmem:[#allocation7 + $0x18] sm:$0xff]
    %v3600 = vld [vmem:[#allocation7 + $0x20] sm:$0xff]
    %v3601 = vld [vmem:[#allocation7 + $0x28] sm:$0xff]
    %v3602 = vld [vmem:[#allocation7 + $0x30] sm:$0xff]
    %v3603 = vld [vmem:[#allocation7 + $0x38] sm:$0xff]
    %v3604 = vld [vmem:[#allocation7 + $0x40] sm:$0xff]
    %v3605 = vld [vmem:[#allocation7 + $0x48] sm:$0xff]
    %v3606 = vld [vmem:[#allocation7 + $0x50] sm:$0xff]
    %v3607 = vld [vmem:[#allocation7 + $0x58] sm:$0xff]
    %v3608 = vld [vmem:[#allocation7 + $0x60] sm:$0xff]
    %v3609 = vld [vmem:[#allocation7 + $0x68] sm:$0xff]
    %v3610 = vld [vmem:[#allocation7 + $0x70] sm:$0xff]
    %v3611 = vld [vmem:[#allocation7 + $0x78] sm:$0xff]
    %v3612 = vld [vmem:[#allocation7 + $0x80] sm:$0xff]
    %v3613 = vld [vmem:[#allocation7 + $0x88] sm:$0xff]
    %v3614 = vld [vmem:[#allocation7 + $0x90] sm:$0xff]
    %v3615 = vld [vmem:[#allocation7 + $0x98] sm:$0xff]
    %v3616 = vld [vmem:[#allocation7 + $0xa0] sm:$0xff]
    %v3617 = vld [vmem:[#allocation7 + $0xa8] sm:$0xff]
    %v3618 = vld [vmem:[#allocation7 + $0xb0] sm:$0xff]
    %v3619 = vld [vmem:[#allocation7 + $0xb8] sm:$0xff]
    %v3620 = vld [vmem:[#allocation7 + $0xc0] sm:$0xff]
    %v3621 = vld [vmem:[#allocation7 + $0xc8] sm:$0xff]
    %v3622 = vld [vmem:[#allocation7 + $0xd0] sm:$0xff]
    %v3623 = vld [vmem:[#allocation7 + $0xd8] sm:$0xff]
    %v3624 = vld [vmem:[#allocation7 + $0xe0] sm:$0xff]
    %v3625 = vld [vmem:[#allocation7 + $0xe8] sm:$0xff]
    %v3626 = vld [vmem:[#allocation7 + $0xf0] sm:$0xff]
    %v3627 = vld [vmem:[#allocation7 + $0xf8] sm:$0xff]
    %v3628 = vld [vmem:[#allocation7 + $0x100] sm:$0xff]
    %v3629 = vld [vmem:[#allocation7 + $0x108] sm:$0xff]
    %v3630 = vld [vmem:[#allocation7 + $0x110] sm:$0xff]
    %v3631 = vld [vmem:[#allocation7 + $0x118] sm:$0xff]
    %v3632 = vld [vmem:[#allocation7 + $0x120] sm:$0xff]
    %v3633 = vld [vmem:[#allocation7 + $0x128] sm:$0xff]
    %v3634 = vld [vmem:[#allocation7 + $0x130] sm:$0xff]
    %v3635 = vld [vmem:[#allocation7 + $0x138] sm:$0xff]
    %v3636 = vld [vmem:[#allocation7 + $0x140] sm:$0xff]
    %v3637 = vld [vmem:[#allocation7 + $0x148] sm:$0xff]
    %v3638 = vld [vmem:[#allocation7 + $0x150] sm:$0xff]
    %v3639 = vld [vmem:[#allocation7 + $0x158] sm:$0xff]
    %v3640 = vld [vmem:[#allocation7 + $0x160] sm:$0xff]
    %v3641 = vld [vmem:[#allocation7 + $0x168] sm:$0xff]
    %v3642 = vld [vmem:[#allocation7 + $0x170] sm:$0xff]
    %v3643 = vld [vmem:[#allocation7 + $0x178] sm:$0xff]
    %v3644 = vld [vmem:[#allocation7 + $0x180] sm:$0xff]
    %v3645 = vld [vmem:[#allocation7 + $0x188] sm:$0xff]
    %v3646 = vld [vmem:[#allocation7 + $0x190] sm:$0xff]
    %v3647 = vld [vmem:[#allocation7 + $0x198] sm:$0xff]
    %v3648 = vld [vmem:[#allocation7 + $0x1a0] sm:$0xff]
    %v3649 = vld [vmem:[#allocation7 + $0x1a8] sm:$0xff]
    %v3650 = vld [vmem:[#allocation7 + $0x1b0] sm:$0xff]
    %v3651 = vld [vmem:[#allocation7 + $0x1b8] sm:$0xff]
    %v3652 = vld [vmem:[#allocation7 + $0x1c0] sm:$0xff]
    %v3653 = vld [vmem:[#allocation7 + $0x1c8] sm:$0xff]
    %v3654 = vld [vmem:[#allocation7 + $0x1d0] sm:$0xff]
    %v3655 = vld [vmem:[#allocation7 + $0x1d8] sm:$0xff]
    %v3656 = vld [vmem:[#allocation7 + $0x1e0] sm:$0xff]
    %v3657 = vld [vmem:[#allocation7 + $0x1e8] sm:$0xff]
    %v3658 = vld [vmem:[#allocation7 + $0x1f0] sm:$0xff]
    %v3659 = vld [vmem:[#allocation7 + $0x1f8] sm:$0xff]
    %v3660 = vld [vmem:[#allocation7 + $0x200] sm:$0xff]
    %v3661 = vld [vmem:[#allocation7 + $0x208] sm:$0xff]
    %v3662 = vld [vmem:[#allocation7 + $0x210] sm:$0xff]
    %v3663 = vld [vmem:[#allocation7 + $0x218] sm:$0xff]
    %v3664 = vld [vmem:[#allocation7 + $0x220] sm:$0xff]
    %v3665 = vld [vmem:[#allocation7 + $0x228] sm:$0xff]
    %v3666 = vld [vmem:[#allocation7 + $0x230] sm:$0xff]
    %v3667 = vld [vmem:[#allocation7 + $0x238] sm:$0xff]
    %v3668 = vld [vmem:[#allocation7 + $0x240] sm:$0xff]
    %v3669 = vld [vmem:[#allocation7 + $0x248] sm:$0xff]
    %v3670 = vld [vmem:[#allocation7 + $0x250] sm:$0xff]
    %v3671 = vld [vmem:[#allocation7 + $0x258] sm:$0xff]
    %v3672 = vld [vmem:[#allocation7 + $0x260] sm:$0xff]
    %v3673 = vld [vmem:[#allocation7 + $0x268] sm:$0xff]
    %v3674 = vld [vmem:[#allocation7 + $0x270] sm:$0xff]
    %v3675 = vld [vmem:[#allocation7 + $0x278] sm:$0xff]
    %v3676 = vld [vmem:[#allocation7 + $0x280] sm:$0xff]
    %v3677 = vld [vmem:[#allocation7 + $0x288] sm:$0xff]
    %v3678 = vld [vmem:[#allocation7 + $0x290] sm:$0xff]
    %v3679 = vld [vmem:[#allocation7 + $0x298] sm:$0xff]
    %v3680 = vld [vmem:[#allocation7 + $0x2a0] sm:$0xff]
    %v3681 = vld [vmem:[#allocation7 + $0x2a8] sm:$0xff]
    %v3682 = vld [vmem:[#allocation7 + $0x2b0] sm:$0xff]
    %v3683 = vld [vmem:[#allocation7 + $0x2b8] sm:$0xff]
    %v3684 = vld [vmem:[#allocation7 + $0x2c0] sm:$0xff]
    %v3685 = vld [vmem:[#allocation7 + $0x2c8] sm:$0xff]
    %v3686 = vld [vmem:[#allocation7 + $0x2d0] sm:$0xff]
    %v3687 = vld [vmem:[#allocation7 + $0x2d8] sm:$0xff]
    %v3688 = vld [vmem:[#allocation7 + $0x2e0] sm:$0xff]
    %v3689 = vld [vmem:[#allocation7 + $0x2e8] sm:$0xff]
    %v3690 = vld [vmem:[#allocation7 + $0x2f0] sm:$0xff]
    %v3691 = vld [vmem:[#allocation7 + $0x2f8] sm:$0xff]
    %v3692 = vld [vmem:[#allocation7 + $0x300] sm:$0xff]
    %v3693 = vld [vmem:[#allocation7 + $0x308] sm:$0xff]
    %v3694 = vld [vmem:[#allocation7 + $0x310] sm:$0xff]
    %v3695 = vld [vmem:[#allocation7 + $0x318] sm:$0xff]
    %v3696 = vld [vmem:[#allocation7 + $0x320] sm:$0xff]
    %v3697 = vld [vmem:[#allocation7 + $0x328] sm:$0xff]
    %v3698 = vld [vmem:[#allocation7 + $0x330] sm:$0xff]
    %v3699 = vld [vmem:[#allocation7 + $0x338] sm:$0xff]
    %v3700 = vld [vmem:[#allocation7 + $0x340] sm:$0xff]
    %v3701 = vld [vmem:[#allocation7 + $0x348] sm:$0xff]
    %v3702 = vld [vmem:[#allocation7 + $0x350] sm:$0xff]
    %v3703 = vld [vmem:[#allocation7 + $0x358] sm:$0xff]
    %v3704 = vld [vmem:[#allocation7 + $0x360] sm:$0xff]
    %v3705 = vld [vmem:[#allocation7 + $0x368] sm:$0xff]
    %v3706 = vld [vmem:[#allocation7 + $0x370] sm:$0xff]
    %v3707 = vld [vmem:[#allocation7 + $0x378] sm:$0xff]
    %v3708 = vld [vmem:[#allocation7 + $0x380] sm:$0xff]
    %v3709 = vld [vmem:[#allocation7 + $0x388] sm:$0xff]
    %v3710 = vld [vmem:[#allocation7 + $0x390] sm:$0xff]
    %v3711 = vld [vmem:[#allocation7 + $0x398] sm:$0xff]
    %v3712 = vld [vmem:[#allocation7 + $0x3a0] sm:$0xff]
    %v3713 = vld [vmem:[#allocation7 + $0x3a8] sm:$0xff]
    %v3714 = vld [vmem:[#allocation7 + $0x3b0] sm:$0xff]
    %v3715 = vld [vmem:[#allocation7 + $0x3b8] sm:$0xff]
    %v3716 = vld [vmem:[#allocation7 + $0x3c0] sm:$0xff]
    %v3717 = vld [vmem:[#allocation7 + $0x3c8] sm:$0xff]
    %v3718 = vld [vmem:[#allocation7 + $0x3d0] sm:$0xff]
    %v3719 = vld [vmem:[#allocation7 + $0x3d8] sm:$0xff]
    %v3720 = vld [vmem:[#allocation7 + $0x3e0] sm:$0xff]
    %v3721 = vld [vmem:[#allocation7 + $0x3e8] sm:$0xff]
    %v3722 = vld [vmem:[#allocation7 + $0x3f0] sm:$0xff]
    %v3723 = vld [vmem:[#allocation7 + $0x3f8] sm:$0xff]
    %v3724 = vld [vmem:[#allocation7 + $0x400] sm:$0xff]
    %v3725 = vld [vmem:[#allocation7 + $0x408] sm:$0xff]
    %v3726 = vld [vmem:[#allocation7 + $0x410] sm:$0xff]
    %v3727 = vld [vmem:[#allocation7 + $0x418] sm:$0xff]
    %v3728 = vld [vmem:[#allocation7 + $0x420] sm:$0xff]
    %v3729 = vld [vmem:[#allocation7 + $0x428] sm:$0xff]
    %v3730 = vld [vmem:[#allocation7 + $0x430] sm:$0xff]
    %v3731 = vld [vmem:[#allocation7 + $0x438] sm:$0xff]
    %v3732 = vld [vmem:[#allocation7 + $0x440] sm:$0xff]
    %v3733 = vld [vmem:[#allocation7 + $0x448] sm:$0xff]
    %v3734 = vld [vmem:[#allocation7 + $0x450] sm:$0xff]
    %v3735 = vld [vmem:[#allocation7 + $0x458] sm:$0xff]
    %v3736 = vld [vmem:[#allocation7 + $0x460] sm:$0xff]
    %v3737 = vld [vmem:[#allocation7 + $0x468] sm:$0xff]
    %v3738 = vld [vmem:[#allocation7 + $0x470] sm:$0xff]
    %v3739 = vld [vmem:[#allocation7 + $0x478] sm:$0xff]
    %v3740 = vld [vmem:[#allocation7 + $0x480] sm:$0xff]
    %v3741 = vld [vmem:[#allocation7 + $0x488] sm:$0xff]
    %v3742 = vld [vmem:[#allocation7 + $0x490] sm:$0xff]
    %v3743 = vld [vmem:[#allocation7 + $0x498] sm:$0xff]
    %v3744 = vld [vmem:[#allocation7 + $0x4a0] sm:$0xff]
    %v3745 = vld [vmem:[#allocation7 + $0x4a8] sm:$0xff]
    %v3746 = vld [vmem:[#allocation7 + $0x4b0] sm:$0xff]
    %v3747 = vld [vmem:[#allocation7 + $0x4b8] sm:$0xff]
    %v3748 = vld [vmem:[#allocation7 + $0x4c0] sm:$0xff]
    %v3749 = vld [vmem:[#allocation7 + $0x4c8] sm:$0xff]
    %v3750 = vld [vmem:[#allocation7 + $0x4d0] sm:$0xff]
    %v3751 = vld [vmem:[#allocation7 + $0x4d8] sm:$0xff]
    %v3752 = vld [vmem:[#allocation7 + $0x4e0] sm:$0xff]
    %v3753 = vld [vmem:[#allocation7 + $0x4e8] sm:$0xff]
    %v3754 = vld [vmem:[#allocation7 + $0x4f0] sm:$0xff]
    %v3755 = vld [vmem:[#allocation7 + $0x4f8] sm:$0xff]
    %v3756 = vld [vmem:[#allocation7 + $0x500] sm:$0xff]
    %v3757 = vld [vmem:[#allocation7 + $0x508] sm:$0xff]
    %v3758 = vld [vmem:[#allocation7 + $0x510] sm:$0xff]
    %v3759 = vld [vmem:[#allocation7 + $0x518] sm:$0xff]
    %v3760 = vld [vmem:[#allocation7 + $0x520] sm:$0xff]
    %v3761 = vld [vmem:[#allocation7 + $0x528] sm:$0xff]
    %v3762 = vld [vmem:[#allocation7 + $0x530] sm:$0xff]
    %v3763 = vld [vmem:[#allocation7 + $0x538] sm:$0xff]
    %v3764 = vld [vmem:[#allocation7 + $0x540] sm:$0xff]
    %v3765 = vld [vmem:[#allocation7 + $0x548] sm:$0xff]
    %v3766 = vld [vmem:[#allocation7 + $0x550] sm:$0xff]
    %v3767 = vld [vmem:[#allocation7 + $0x558] sm:$0xff]
    %v3768 = vld [vmem:[#allocation7 + $0x560] sm:$0xff]
    %v3769 = vld [vmem:[#allocation7 + $0x568] sm:$0xff]
    %v3770 = vld [vmem:[#allocation7 + $0x570] sm:$0xff]
    %v3771 = vld [vmem:[#allocation7 + $0x578] sm:$0xff]
    %v3772 = vld [vmem:[#allocation7 + $0x580] sm:$0xff]
    %v3773 = vld [vmem:[#allocation7 + $0x588] sm:$0xff]
    %v3774 = vld [vmem:[#allocation7 + $0x590] sm:$0xff]
    %v3775 = vld [vmem:[#allocation7 + $0x598] sm:$0xff]
    %v3776 = vld [vmem:[#allocation7 + $0x5a0] sm:$0xff]
    %v3777 = vld [vmem:[#allocation7 + $0x5a8] sm:$0xff]
    %v3778 = vld [vmem:[#allocation7 + $0x5b0] sm:$0xff]
    %v3779 = vld [vmem:[#allocation7 + $0x5b8] sm:$0xff]
    %v3780 = vld [vmem:[#allocation7 + $0x5c0] sm:$0xff]
    %v3781 = vld [vmem:[#allocation7 + $0x5c8] sm:$0xff]
    %v3782 = vld [vmem:[#allocation7 + $0x5d0] sm:$0xff]
    %v3783 = vld [vmem:[#allocation7 + $0x5d8] sm:$0xff]
    %v3784 = vld [vmem:[#allocation7 + $0x5e0] sm:$0xff]
    %v3785 = vld [vmem:[#allocation7 + $0x5e8] sm:$0xff]
    %v3786 = vld [vmem:[#allocation7 + $0x5f0] sm:$0xff]
    %v3787 = vld [vmem:[#allocation7 + $0x5f8] sm:$0xff]
    %v3788 = vld [vmem:[#allocation7 + $0x600] sm:$0xff]
    %v3789 = vld [vmem:[#allocation7 + $0x608] sm:$0xff]
    %v3790 = vld [vmem:[#allocation7 + $0x610] sm:$0xff]
    %v3791 = vld [vmem:[#allocation7 + $0x618] sm:$0xff]
    %v3792 = vld [vmem:[#allocation7 + $0x620] sm:$0xff]
    %v3793 = vld [vmem:[#allocation7 + $0x628] sm:$0xff]
    %v3794 = vld [vmem:[#allocation7 + $0x630] sm:$0xff]
    %v3795 = vld [vmem:[#allocation7 + $0x638] sm:$0xff]
    %v3796 = vld [vmem:[#allocation7 + $0x640] sm:$0xff]
    %v3797 = vld [vmem:[#allocation7 + $0x648] sm:$0xff]
    %v3798 = vld [vmem:[#allocation7 + $0x650] sm:$0xff]
    %v3799 = vld [vmem:[#allocation7 + $0x658] sm:$0xff]
    %v3800 = vld [vmem:[#allocation7 + $0x660] sm:$0xff]
    %v3801 = vld [vmem:[#allocation7 + $0x668] sm:$0xff]
    %v3802 = vld [vmem:[#allocation7 + $0x670] sm:$0xff]
    %v3803 = vld [vmem:[#allocation7 + $0x678] sm:$0xff]
    %v3804 = vld [vmem:[#allocation7 + $0x680] sm:$0xff]
    %v3805 = vld [vmem:[#allocation7 + $0x688] sm:$0xff]
    %v3806 = vld [vmem:[#allocation7 + $0x690] sm:$0xff]
    %v3807 = vld [vmem:[#allocation7 + $0x698] sm:$0xff]
    %v3808 = vld [vmem:[#allocation7 + $0x6a0] sm:$0xff]
    %v3809 = vld [vmem:[#allocation7 + $0x6a8] sm:$0xff]
    %v3810 = vld [vmem:[#allocation7 + $0x6b0] sm:$0xff]
    %v3811 = vld [vmem:[#allocation7 + $0x6b8] sm:$0xff]
    %v3812 = vld [vmem:[#allocation7 + $0x6c0] sm:$0xff]
    %v3813 = vld [vmem:[#allocation7 + $0x6c8] sm:$0xff]
    %v3814 = vld [vmem:[#allocation7 + $0x6d0] sm:$0xff]
    %v3815 = vld [vmem:[#allocation7 + $0x6d8] sm:$0xff]
    %v3816 = vld [vmem:[#allocation7 + $0x6e0] sm:$0xff]
    %v3817 = vld [vmem:[#allocation7 + $0x6e8] sm:$0xff]
    %v3818 = vld [vmem:[#allocation7 + $0x6f0] sm:$0xff]
    %v3819 = vld [vmem:[#allocation7 + $0x6f8] sm:$0xff]
    %v3820 = vld [vmem:[#allocation7 + $0x700] sm:$0xff]
    %v3821 = vld [vmem:[#allocation7 + $0x708] sm:$0xff]
    %v3822 = vld [vmem:[#allocation7 + $0x710] sm:$0xff]
    %v3823 = vld [vmem:[#allocation7 + $0x718] sm:$0xff]
    %v3824 = vld [vmem:[#allocation7 + $0x720] sm:$0xff]
    %v3825 = vld [vmem:[#allocation7 + $0x728] sm:$0xff]
    %v3826 = vld [vmem:[#allocation7 + $0x730] sm:$0xff]
    %v3827 = vld [vmem:[#allocation7 + $0x738] sm:$0xff]
    %v3828 = vld [vmem:[#allocation7 + $0x740] sm:$0xff]
    %v3829 = vld [vmem:[#allocation7 + $0x748] sm:$0xff]
    %v3830 = vld [vmem:[#allocation7 + $0x750] sm:$0xff]
    %v3831 = vld [vmem:[#allocation7 + $0x758] sm:$0xff]
    %v3832 = vld [vmem:[#allocation7 + $0x760] sm:$0xff]
    %v3833 = vld [vmem:[#allocation7 + $0x768] sm:$0xff]
    %v3834 = vld [vmem:[#allocation7 + $0x770] sm:$0xff]
    %v3835 = vld [vmem:[#allocation7 + $0x778] sm:$0xff]
    %v3836 = vld [vmem:[#allocation7 + $0x780] sm:$0xff]
    %v3837 = vld [vmem:[#allocation7 + $0x788] sm:$0xff]
    %v3838 = vld [vmem:[#allocation7 + $0x790] sm:$0xff]
    %v3839 = vld [vmem:[#allocation7 + $0x798] sm:$0xff]
    %v3840 = vld [vmem:[#allocation7 + $0x7a0] sm:$0xff]
    %v3841 = vld [vmem:[#allocation7 + $0x7a8] sm:$0xff]
    %v3842 = vld [vmem:[#allocation7 + $0x7b0] sm:$0xff]
    %v3843 = vld [vmem:[#allocation7 + $0x7b8] sm:$0xff]
    %v3844 = vld [vmem:[#allocation7 + $0x7c0] sm:$0xff]
    %v3845 = vld [vmem:[#allocation7 + $0x7c8] sm:$0xff]
    %v3846 = vld [vmem:[#allocation7 + $0x7d0] sm:$0xff]
    %v3847 = vld [vmem:[#allocation7 + $0x7d8] sm:$0xff]
    %v3848 = vld [vmem:[#allocation7 + $0x7e0] sm:$0xff]
    %v3849 = vld [vmem:[#allocation7 + $0x7e8] sm:$0xff]
    %v3850 = vld [vmem:[#allocation7 + $0x7f0] sm:$0xff]
    %v3851 = vld [vmem:[#allocation7 + $0x7f8] sm:$0xff]
    %v4108 = vunpack.c.l.b16 %v3596
    %v4109 = vunpack.c.h.b16 %v3596
    %v4110 = vunpack.c.l.b16 %v3597
    %v4111 = vunpack.c.h.b16 %v3597
    %v4112 = vunpack.c.l.b16 %v3598
    %v4113 = vunpack.c.h.b16 %v3598
    %v4114 = vunpack.c.l.b16 %v3599
    %v4115 = vunpack.c.h.b16 %v3599
    %v4116 = vunpack.c.l.b16 %v3600
    %v4117 = vunpack.c.h.b16 %v3600
    %v4118 = vunpack.c.l.b16 %v3601
    %v4119 = vunpack.c.h.b16 %v3601
    %v4120 = vunpack.c.l.b16 %v3602
    %v4121 = vunpack.c.h.b16 %v3602
    %v4122 = vunpack.c.l.b16 %v3603
    %v4123 = vunpack.c.h.b16 %v3603
    %v4124 = vunpack.c.l.b16 %v3604
    %v4125 = vunpack.c.h.b16 %v3604
    %v4126 = vunpack.c.l.b16 %v3605
    %v4127 = vunpack.c.h.b16 %v3605
    %v4128 = vunpack.c.l.b16 %v3606
    %v4129 = vunpack.c.h.b16 %v3606
    %v4130 = vunpack.c.l.b16 %v3607
    %v4131 = vunpack.c.h.b16 %v3607
    %v4132 = vunpack.c.l.b16 %v3608
    %v4133 = vunpack.c.h.b16 %v3608
    %v4134 = vunpack.c.l.b16 %v3609
    %v4135 = vunpack.c.h.b16 %v3609
    %v4136 = vunpack.c.l.b16 %v3610
    %v4137 = vunpack.c.h.b16 %v3610
    %v4138 = vunpack.c.l.b16 %v3611
    %v4139 = vunpack.c.h.b16 %v3611
    %v4140 = vunpack.c.l.b16 %v3612
    %v4141 = vunpack.c.h.b16 %v3612
    %v4142 = vunpack.c.l.b16 %v3613
    %v4143 = vunpack.c.h.b16 %v3613
    %v4144 = vunpack.c.l.b16 %v3614
    %v4145 = vunpack.c.h.b16 %v3614
    %v4146 = vunpack.c.l.b16 %v3615
    %v4147 = vunpack.c.h.b16 %v3615
    %v4148 = vunpack.c.l.b16 %v3616
    %v4149 = vunpack.c.h.b16 %v3616
    %v4150 = vunpack.c.l.b16 %v3617
    %v4151 = vunpack.c.h.b16 %v3617
    %v4152 = vunpack.c.l.b16 %v3618
    %v4153 = vunpack.c.h.b16 %v3618
    %v4154 = vunpack.c.l.b16 %v3619
    %v4155 = vunpack.c.h.b16 %v3619
    %v4156 = vunpack.c.l.b16 %v3620
    %v4157 = vunpack.c.h.b16 %v3620
    %v4158 = vunpack.c.l.b16 %v3621
    %v4159 = vunpack.c.h.b16 %v3621
    %v4160 = vunpack.c.l.b16 %v3622
    %v4161 = vunpack.c.h.b16 %v3622
    %v4162 = vunpack.c.l.b16 %v3623
    %v4163 = vunpack.c.h.b16 %v3623
    %v4164 = vunpack.c.l.b16 %v3624
    %v4165 = vunpack.c.h.b16 %v3624
    %v4166 = vunpack.c.l.b16 %v3625
    %v4167 = vunpack.c.h.b16 %v3625
    %v4168 = vunpack.c.l.b16 %v3626
    %v4169 = vunpack.c.h.b16 %v3626
    %v4170 = vunpack.c.l.b16 %v3627
    %v4171 = vunpack.c.h.b16 %v3627
    %v4172 = vunpack.c.l.b16 %v3628
    %v4173 = vunpack.c.h.b16 %v3628
    %v4174 = vunpack.c.l.b16 %v3629
    %v4175 = vunpack.c.h.b16 %v3629
    %v4176 = vunpack.c.l.b16 %v3630
    %v4177 = vunpack.c.h.b16 %v3630
    %v4178 = vunpack.c.l.b16 %v3631
    %v4179 = vunpack.c.h.b16 %v3631
    %v4180 = vunpack.c.l.b16 %v3632
    %v4181 = vunpack.c.h.b16 %v3632
    %v4182 = vunpack.c.l.b16 %v3633
    %v4183 = vunpack.c.h.b16 %v3633
    %v4184 = vunpack.c.l.b16 %v3634
    %v4185 = vunpack.c.h.b16 %v3634
    %v4186 = vunpack.c.l.b16 %v3635
    %v4187 = vunpack.c.h.b16 %v3635
    %v4188 = vunpack.c.l.b16 %v3636
    %v4189 = vunpack.c.h.b16 %v3636
    %v4190 = vunpack.c.l.b16 %v3637
    %v4191 = vunpack.c.h.b16 %v3637
    %v4192 = vunpack.c.l.b16 %v3638
    %v4193 = vunpack.c.h.b16 %v3638
    %v4194 = vunpack.c.l.b16 %v3639
    %v4195 = vunpack.c.h.b16 %v3639
    %v4196 = vunpack.c.l.b16 %v3640
    %v4197 = vunpack.c.h.b16 %v3640
    %v4198 = vunpack.c.l.b16 %v3641
    %v4199 = vunpack.c.h.b16 %v3641
    %v4200 = vunpack.c.l.b16 %v3642
    %v4201 = vunpack.c.h.b16 %v3642
    %v4202 = vunpack.c.l.b16 %v3643
    %v4203 = vunpack.c.h.b16 %v3643
    %v4204 = vunpack.c.l.b16 %v3644
    %v4205 = vunpack.c.h.b16 %v3644
    %v4206 = vunpack.c.l.b16 %v3645
    %v4207 = vunpack.c.h.b16 %v3645
    %v4208 = vunpack.c.l.b16 %v3646
    %v4209 = vunpack.c.h.b16 %v3646
    %v4210 = vunpack.c.l.b16 %v3647
    %v4211 = vunpack.c.h.b16 %v3647
    %v4212 = vunpack.c.l.b16 %v3648
    %v4213 = vunpack.c.h.b16 %v3648
    %v4214 = vunpack.c.l.b16 %v3649
    %v4215 = vunpack.c.h.b16 %v3649
    %v4216 = vunpack.c.l.b16 %v3650
    %v4217 = vunpack.c.h.b16 %v3650
    %v4218 = vunpack.c.l.b16 %v3651
    %v4219 = vunpack.c.h.b16 %v3651
    %v4220 = vunpack.c.l.b16 %v3652
    %v4221 = vunpack.c.h.b16 %v3652
    %v4222 = vunpack.c.l.b16 %v3653
    %v4223 = vunpack.c.h.b16 %v3653
    %v4224 = vunpack.c.l.b16 %v3654
    %v4225 = vunpack.c.h.b16 %v3654
    %v4226 = vunpack.c.l.b16 %v3655
    %v4227 = vunpack.c.h.b16 %v3655
    %v4228 = vunpack.c.l.b16 %v3656
    %v4229 = vunpack.c.h.b16 %v3656
    %v4230 = vunpack.c.l.b16 %v3657
    %v4231 = vunpack.c.h.b16 %v3657
    %v4232 = vunpack.c.l.b16 %v3658
    %v4233 = vunpack.c.h.b16 %v3658
    %v4234 = vunpack.c.l.b16 %v3659
    %v4235 = vunpack.c.h.b16 %v3659
    %v4236 = vunpack.c.l.b16 %v3660
    %v4237 = vunpack.c.h.b16 %v3660
    %v4238 = vunpack.c.l.b16 %v3661
    %v4239 = vunpack.c.h.b16 %v3661
    %v4240 = vunpack.c.l.b16 %v3662
    %v4241 = vunpack.c.h.b16 %v3662
    %v4242 = vunpack.c.l.b16 %v3663
    %v4243 = vunpack.c.h.b16 %v3663
    %v4244 = vunpack.c.l.b16 %v3664
    %v4245 = vunpack.c.h.b16 %v3664
    %v4246 = vunpack.c.l.b16 %v3665
    %v4247 = vunpack.c.h.b16 %v3665
    %v4248 = vunpack.c.l.b16 %v3666
    %v4249 = vunpack.c.h.b16 %v3666
    %v4250 = vunpack.c.l.b16 %v3667
    %v4251 = vunpack.c.h.b16 %v3667
    %v4252 = vunpack.c.l.b16 %v3668
    %v4253 = vunpack.c.h.b16 %v3668
    %v4254 = vunpack.c.l.b16 %v3669
    %v4255 = vunpack.c.h.b16 %v3669
    %v4256 = vunpack.c.l.b16 %v3670
    %v4257 = vunpack.c.h.b16 %v3670
    %v4258 = vunpack.c.l.b16 %v3671
    %v4259 = vunpack.c.h.b16 %v3671
    %v4260 = vunpack.c.l.b16 %v3672
    %v4261 = vunpack.c.h.b16 %v3672
    %v4262 = vunpack.c.l.b16 %v3673
    %v4263 = vunpack.c.h.b16 %v3673
    %v4264 = vunpack.c.l.b16 %v3674
    %v4265 = vunpack.c.h.b16 %v3674
    %v4266 = vunpack.c.l.b16 %v3675
    %v4267 = vunpack.c.h.b16 %v3675
    %v4268 = vunpack.c.l.b16 %v3676
    %v4269 = vunpack.c.h.b16 %v3676
    %v4270 = vunpack.c.l.b16 %v3677
    %v4271 = vunpack.c.h.b16 %v3677
    %v4272 = vunpack.c.l.b16 %v3678
    %v4273 = vunpack.c.h.b16 %v3678
    %v4274 = vunpack.c.l.b16 %v3679
    %v4275 = vunpack.c.h.b16 %v3679
    %v4276 = vunpack.c.l.b16 %v3680
    %v4277 = vunpack.c.h.b16 %v3680
    %v4278 = vunpack.c.l.b16 %v3681
    %v4279 = vunpack.c.h.b16 %v3681
    %v4280 = vunpack.c.l.b16 %v3682
    %v4281 = vunpack.c.h.b16 %v3682
    %v4282 = vunpack.c.l.b16 %v3683
    %v4283 = vunpack.c.h.b16 %v3683
    %v4284 = vunpack.c.l.b16 %v3684
    %v4285 = vunpack.c.h.b16 %v3684
    %v4286 = vunpack.c.l.b16 %v3685
    %v4287 = vunpack.c.h.b16 %v3685
    %v4288 = vunpack.c.l.b16 %v3686
    %v4289 = vunpack.c.h.b16 %v3686
    %v4290 = vunpack.c.l.b16 %v3687
    %v4291 = vunpack.c.h.b16 %v3687
    %v4292 = vunpack.c.l.b16 %v3688
    %v4293 = vunpack.c.h.b16 %v3688
    %v4294 = vunpack.c.l.b16 %v3689
    %v4295 = vunpack.c.h.b16 %v3689
    %v4296 = vunpack.c.l.b16 %v3690
    %v4297 = vunpack.c.h.b16 %v3690
    %v4298 = vunpack.c.l.b16 %v3691
    %v4299 = vunpack.c.h.b16 %v3691
    %v4300 = vunpack.c.l.b16 %v3692
    %v4301 = vunpack.c.h.b16 %v3692
    %v4302 = vunpack.c.l.b16 %v3693
    %v4303 = vunpack.c.h.b16 %v3693
    %v4304 = vunpack.c.l.b16 %v3694
    %v4305 = vunpack.c.h.b16 %v3694
    %v4306 = vunpack.c.l.b16 %v3695
    %v4307 = vunpack.c.h.b16 %v3695
    %v4308 = vunpack.c.l.b16 %v3696
    %v4309 = vunpack.c.h.b16 %v3696
    %v4310 = vunpack.c.l.b16 %v3697
    %v4311 = vunpack.c.h.b16 %v3697
    %v4312 = vunpack.c.l.b16 %v3698
    %v4313 = vunpack.c.h.b16 %v3698
    %v4314 = vunpack.c.l.b16 %v3699
    %v4315 = vunpack.c.h.b16 %v3699
    %v4316 = vunpack.c.l.b16 %v3700
    %v4317 = vunpack.c.h.b16 %v3700
    %v4318 = vunpack.c.l.b16 %v3701
    %v4319 = vunpack.c.h.b16 %v3701
    %v4320 = vunpack.c.l.b16 %v3702
    %v4321 = vunpack.c.h.b16 %v3702
    %v4322 = vunpack.c.l.b16 %v3703
    %v4323 = vunpack.c.h.b16 %v3703
    %v4324 = vunpack.c.l.b16 %v3704
    %v4325 = vunpack.c.h.b16 %v3704
    %v4326 = vunpack.c.l.b16 %v3705
    %v4327 = vunpack.c.h.b16 %v3705
    %v4328 = vunpack.c.l.b16 %v3706
    %v4329 = vunpack.c.h.b16 %v3706
    %v4330 = vunpack.c.l.b16 %v3707
    %v4331 = vunpack.c.h.b16 %v3707
    %v4332 = vunpack.c.l.b16 %v3708
    %v4333 = vunpack.c.h.b16 %v3708
    %v4334 = vunpack.c.l.b16 %v3709
    %v4335 = vunpack.c.h.b16 %v3709
    %v4336 = vunpack.c.l.b16 %v3710
    %v4337 = vunpack.c.h.b16 %v3710
    %v4338 = vunpack.c.l.b16 %v3711
    %v4339 = vunpack.c.h.b16 %v3711
    %v4340 = vunpack.c.l.b16 %v3712
    %v4341 = vunpack.c.h.b16 %v3712
    %v4342 = vunpack.c.l.b16 %v3713
    %v4343 = vunpack.c.h.b16 %v3713
    %v4344 = vunpack.c.l.b16 %v3714
    %v4345 = vunpack.c.h.b16 %v3714
    %v4346 = vunpack.c.l.b16 %v3715
    %v4347 = vunpack.c.h.b16 %v3715
    %v4348 = vunpack.c.l.b16 %v3716
    %v4349 = vunpack.c.h.b16 %v3716
    %v4350 = vunpack.c.l.b16 %v3717
    %v4351 = vunpack.c.h.b16 %v3717
    %v4352 = vunpack.c.l.b16 %v3718
    %v4353 = vunpack.c.h.b16 %v3718
    %v4354 = vunpack.c.l.b16 %v3719
    %v4355 = vunpack.c.h.b16 %v3719
    %v4356 = vunpack.c.l.b16 %v3720
    %v4357 = vunpack.c.h.b16 %v3720
    %v4358 = vunpack.c.l.b16 %v3721
    %v4359 = vunpack.c.h.b16 %v3721
    %v4360 = vunpack.c.l.b16 %v3722
    %v4361 = vunpack.c.h.b16 %v3722
    %v4362 = vunpack.c.l.b16 %v3723
    %v4363 = vunpack.c.h.b16 %v3723
    %v4364 = vunpack.c.l.b16 %v3724
    %v4365 = vunpack.c.h.b16 %v3724
    %v4366 = vunpack.c.l.b16 %v3725
    %v4367 = vunpack.c.h.b16 %v3725
    %v4368 = vunpack.c.l.b16 %v3726
    %v4369 = vunpack.c.h.b16 %v3726
    %v4370 = vunpack.c.l.b16 %v3727
    %v4371 = vunpack.c.h.b16 %v3727
    %v4372 = vunpack.c.l.b16 %v3728
    %v4373 = vunpack.c.h.b16 %v3728
    %v4374 = vunpack.c.l.b16 %v3729
    %v4375 = vunpack.c.h.b16 %v3729
    %v4376 = vunpack.c.l.b16 %v3730
    %v4377 = vunpack.c.h.b16 %v3730
    %v4378 = vunpack.c.l.b16 %v3731
    %v4379 = vunpack.c.h.b16 %v3731
    %v4380 = vunpack.c.l.b16 %v3732
    %v4381 = vunpack.c.h.b16 %v3732
    %v4382 = vunpack.c.l.b16 %v3733
    %v4383 = vunpack.c.h.b16 %v3733
    %v4384 = vunpack.c.l.b16 %v3734
    %v4385 = vunpack.c.h.b16 %v3734
    %v4386 = vunpack.c.l.b16 %v3735
    %v4387 = vunpack.c.h.b16 %v3735
    %v4388 = vunpack.c.l.b16 %v3736
    %v4389 = vunpack.c.h.b16 %v3736
    %v4390 = vunpack.c.l.b16 %v3737
    %v4391 = vunpack.c.h.b16 %v3737
    %v4392 = vunpack.c.l.b16 %v3738
    %v4393 = vunpack.c.h.b16 %v3738
    %v4394 = vunpack.c.l.b16 %v3739
    %v4395 = vunpack.c.h.b16 %v3739
    %v4396 = vunpack.c.l.b16 %v3740
    %v4397 = vunpack.c.h.b16 %v3740
    %v4398 = vunpack.c.l.b16 %v3741
    %v4399 = vunpack.c.h.b16 %v3741
    %v4400 = vunpack.c.l.b16 %v3742
    %v4401 = vunpack.c.h.b16 %v3742
    %v4402 = vunpack.c.l.b16 %v3743
    %v4403 = vunpack.c.h.b16 %v3743
    %v4404 = vunpack.c.l.b16 %v3744
    %v4405 = vunpack.c.h.b16 %v3744
    %v4406 = vunpack.c.l.b16 %v3745
    %v4407 = vunpack.c.h.b16 %v3745
    %v4408 = vunpack.c.l.b16 %v3746
    %v4409 = vunpack.c.h.b16 %v3746
    %v4410 = vunpack.c.l.b16 %v3747
    %v4411 = vunpack.c.h.b16 %v3747
    %v4412 = vunpack.c.l.b16 %v3748
    %v4413 = vunpack.c.h.b16 %v3748
    %v4414 = vunpack.c.l.b16 %v3749
    %v4415 = vunpack.c.h.b16 %v3749
    %v4416 = vunpack.c.l.b16 %v3750
    %v4417 = vunpack.c.h.b16 %v3750
    %v4418 = vunpack.c.l.b16 %v3751
    %v4419 = vunpack.c.h.b16 %v3751
    %v4420 = vunpack.c.l.b16 %v3752
    %v4421 = vunpack.c.h.b16 %v3752
    %v4422 = vunpack.c.l.b16 %v3753
    %v4423 = vunpack.c.h.b16 %v3753
    %v4424 = vunpack.c.l.b16 %v3754
    %v4425 = vunpack.c.h.b16 %v3754
    %v4426 = vunpack.c.l.b16 %v3755
    %v4427 = vunpack.c.h.b16 %v3755
    %v4428 = vunpack.c.l.b16 %v3756
    %v4429 = vunpack.c.h.b16 %v3756
    %v4430 = vunpack.c.l.b16 %v3757
    %v4431 = vunpack.c.h.b16 %v3757
    %v4432 = vunpack.c.l.b16 %v3758
    %v4433 = vunpack.c.h.b16 %v3758
    %v4434 = vunpack.c.l.b16 %v3759
    %v4435 = vunpack.c.h.b16 %v3759
    %v4436 = vunpack.c.l.b16 %v3760
    %v4437 = vunpack.c.h.b16 %v3760
    %v4438 = vunpack.c.l.b16 %v3761
    %v4439 = vunpack.c.h.b16 %v3761
    %v4440 = vunpack.c.l.b16 %v3762
    %v4441 = vunpack.c.h.b16 %v3762
    %v4442 = vunpack.c.l.b16 %v3763
    %v4443 = vunpack.c.h.b16 %v3763
    %v4444 = vunpack.c.l.b16 %v3764
    %v4445 = vunpack.c.h.b16 %v3764
    %v4446 = vunpack.c.l.b16 %v3765
    %v4447 = vunpack.c.h.b16 %v3765
    %v4448 = vunpack.c.l.b16 %v3766
    %v4449 = vunpack.c.h.b16 %v3766
    %v4450 = vunpack.c.l.b16 %v3767
    %v4451 = vunpack.c.h.b16 %v3767
    %v4452 = vunpack.c.l.b16 %v3768
    %v4453 = vunpack.c.h.b16 %v3768
    %v4454 = vunpack.c.l.b16 %v3769
    %v4455 = vunpack.c.h.b16 %v3769
    %v4456 = vunpack.c.l.b16 %v3770
    %v4457 = vunpack.c.h.b16 %v3770
    %v4458 = vunpack.c.l.b16 %v3771
    %v4459 = vunpack.c.h.b16 %v3771
    %v4460 = vunpack.c.l.b16 %v3772
    %v4461 = vunpack.c.h.b16 %v3772
    %v4462 = vunpack.c.l.b16 %v3773
    %v4463 = vunpack.c.h.b16 %v3773
    %v4464 = vunpack.c.l.b16 %v3774
    %v4465 = vunpack.c.h.b16 %v3774
    %v4466 = vunpack.c.l.b16 %v3775
    %v4467 = vunpack.c.h.b16 %v3775
    %v4468 = vunpack.c.l.b16 %v3776
    %v4469 = vunpack.c.h.b16 %v3776
    %v4470 = vunpack.c.l.b16 %v3777
    %v4471 = vunpack.c.h.b16 %v3777
    %v4472 = vunpack.c.l.b16 %v3778
    %v4473 = vunpack.c.h.b16 %v3778
    %v4474 = vunpack.c.l.b16 %v3779
    %v4475 = vunpack.c.h.b16 %v3779
    %v4476 = vunpack.c.l.b16 %v3780
    %v4477 = vunpack.c.h.b16 %v3780
    %v4478 = vunpack.c.l.b16 %v3781
    %v4479 = vunpack.c.h.b16 %v3781
    %v4480 = vunpack.c.l.b16 %v3782
    %v4481 = vunpack.c.h.b16 %v3782
    %v4482 = vunpack.c.l.b16 %v3783
    %v4483 = vunpack.c.h.b16 %v3783
    %v4484 = vunpack.c.l.b16 %v3784
    %v4485 = vunpack.c.h.b16 %v3784
    %v4486 = vunpack.c.l.b16 %v3785
    %v4487 = vunpack.c.h.b16 %v3785
    %v4488 = vunpack.c.l.b16 %v3786
    %v4489 = vunpack.c.h.b16 %v3786
    %v4490 = vunpack.c.l.b16 %v3787
    %v4491 = vunpack.c.h.b16 %v3787
    %v4492 = vunpack.c.l.b16 %v3788
    %v4493 = vunpack.c.h.b16 %v3788
    %v4494 = vunpack.c.l.b16 %v3789
    %v4495 = vunpack.c.h.b16 %v3789
    %v4496 = vunpack.c.l.b16 %v3790
    %v4497 = vunpack.c.h.b16 %v3790
    %v4498 = vunpack.c.l.b16 %v3791
    %v4499 = vunpack.c.h.b16 %v3791
    %v4500 = vunpack.c.l.b16 %v3792
    %v4501 = vunpack.c.h.b16 %v3792
    %v4502 = vunpack.c.l.b16 %v3793
    %v4503 = vunpack.c.h.b16 %v3793
    %v4504 = vunpack.c.l.b16 %v3794
    %v4505 = vunpack.c.h.b16 %v3794
    %v4506 = vunpack.c.l.b16 %v3795
    %v4507 = vunpack.c.h.b16 %v3795
    %v4508 = vunpack.c.l.b16 %v3796
    %v4509 = vunpack.c.h.b16 %v3796
    %v4510 = vunpack.c.l.b16 %v3797
    %v4511 = vunpack.c.h.b16 %v3797
    %v4512 = vunpack.c.l.b16 %v3798
    %v4513 = vunpack.c.h.b16 %v3798
    %v4514 = vunpack.c.l.b16 %v3799
    %v4515 = vunpack.c.h.b16 %v3799
    %v4516 = vunpack.c.l.b16 %v3800
    %v4517 = vunpack.c.h.b16 %v3800
    %v4518 = vunpack.c.l.b16 %v3801
    %v4519 = vunpack.c.h.b16 %v3801
    %v4520 = vunpack.c.l.b16 %v3802
    %v4521 = vunpack.c.h.b16 %v3802
    %v4522 = vunpack.c.l.b16 %v3803
    %v4523 = vunpack.c.h.b16 %v3803
    %v4524 = vunpack.c.l.b16 %v3804
    %v4525 = vunpack.c.h.b16 %v3804
    %v4526 = vunpack.c.l.b16 %v3805
    %v4527 = vunpack.c.h.b16 %v3805
    %v4528 = vunpack.c.l.b16 %v3806
    %v4529 = vunpack.c.h.b16 %v3806
    %v4530 = vunpack.c.l.b16 %v3807
    %v4531 = vunpack.c.h.b16 %v3807
    %v4532 = vunpack.c.l.b16 %v3808
    %v4533 = vunpack.c.h.b16 %v3808
    %v4534 = vunpack.c.l.b16 %v3809
    %v4535 = vunpack.c.h.b16 %v3809
    %v4536 = vunpack.c.l.b16 %v3810
    %v4537 = vunpack.c.h.b16 %v3810
    %v4538 = vunpack.c.l.b16 %v3811
    %v4539 = vunpack.c.h.b16 %v3811
    %v4540 = vunpack.c.l.b16 %v3812
    %v4541 = vunpack.c.h.b16 %v3812
    %v4542 = vunpack.c.l.b16 %v3813
    %v4543 = vunpack.c.h.b16 %v3813
    %v4544 = vunpack.c.l.b16 %v3814
    %v4545 = vunpack.c.h.b16 %v3814
    %v4546 = vunpack.c.l.b16 %v3815
    %v4547 = vunpack.c.h.b16 %v3815
    %v4548 = vunpack.c.l.b16 %v3816
    %v4549 = vunpack.c.h.b16 %v3816
    %v4550 = vunpack.c.l.b16 %v3817
    %v4551 = vunpack.c.h.b16 %v3817
    %v4552 = vunpack.c.l.b16 %v3818
    %v4553 = vunpack.c.h.b16 %v3818
    %v4554 = vunpack.c.l.b16 %v3819
    %v4555 = vunpack.c.h.b16 %v3819
    %v4556 = vunpack.c.l.b16 %v3820
    %v4557 = vunpack.c.h.b16 %v3820
    %v4558 = vunpack.c.l.b16 %v3821
    %v4559 = vunpack.c.h.b16 %v3821
    %v4560 = vunpack.c.l.b16 %v3822
    %v4561 = vunpack.c.h.b16 %v3822
    %v4562 = vunpack.c.l.b16 %v3823
    %v4563 = vunpack.c.h.b16 %v3823
    %v4564 = vunpack.c.l.b16 %v3824
    %v4565 = vunpack.c.h.b16 %v3824
    %v4566 = vunpack.c.l.b16 %v3825
    %v4567 = vunpack.c.h.b16 %v3825
    %v4568 = vunpack.c.l.b16 %v3826
    %v4569 = vunpack.c.h.b16 %v3826
    %v4570 = vunpack.c.l.b16 %v3827
    %v4571 = vunpack.c.h.b16 %v3827
    %v4572 = vunpack.c.l.b16 %v3828
    %v4573 = vunpack.c.h.b16 %v3828
    %v4574 = vunpack.c.l.b16 %v3829
    %v4575 = vunpack.c.h.b16 %v3829
    %v4576 = vunpack.c.l.b16 %v3830
    %v4577 = vunpack.c.h.b16 %v3830
    %v4578 = vunpack.c.l.b16 %v3831
    %v4579 = vunpack.c.h.b16 %v3831
    %v4580 = vunpack.c.l.b16 %v3832
    %v4581 = vunpack.c.h.b16 %v3832
    %v4582 = vunpack.c.l.b16 %v3833
    %v4583 = vunpack.c.h.b16 %v3833
    %v4584 = vunpack.c.l.b16 %v3834
    %v4585 = vunpack.c.h.b16 %v3834
    %v4586 = vunpack.c.l.b16 %v3835
    %v4587 = vunpack.c.h.b16 %v3835
    %v4588 = vunpack.c.l.b16 %v3836
    %v4589 = vunpack.c.h.b16 %v3836
    %v4590 = vunpack.c.l.b16 %v3837
    %v4591 = vunpack.c.h.b16 %v3837
    %v4592 = vunpack.c.l.b16 %v3838
    %v4593 = vunpack.c.h.b16 %v3838
    %v4594 = vunpack.c.l.b16 %v3839
    %v4595 = vunpack.c.h.b16 %v3839
    %v4596 = vunpack.c.l.b16 %v3840
    %v4597 = vunpack.c.h.b16 %v3840
    %v4598 = vunpack.c.l.b16 %v3841
    %v4599 = vunpack.c.h.b16 %v3841
    %v4600 = vunpack.c.l.b16 %v3842
    %v4601 = vunpack.c.h.b16 %v3842
    %v4602 = vunpack.c.l.b16 %v3843
    %v4603 = vunpack.c.h.b16 %v3843
    %v4604 = vunpack.c.l.b16 %v3844
    %v4605 = vunpack.c.h.b16 %v3844
    %v4606 = vunpack.c.l.b16 %v3845
    %v4607 = vunpack.c.h.b16 %v3845
    %v4608 = vunpack.c.l.b16 %v3846
    %v4609 = vunpack.c.h.b16 %v3846
    %v4610 = vunpack.c.l.b16 %v3847
    %v4611 = vunpack.c.h.b16 %v3847
    %v4612 = vunpack.c.l.b16 %v3848
    %v4613 = vunpack.c.h.b16 %v3848
    %v4614 = vunpack.c.l.b16 %v3849
    %v4615 = vunpack.c.h.b16 %v3849
    %v4616 = vunpack.c.l.b16 %v3850
    %v4617 = vunpack.c.h.b16 %v3850
    %v4618 = vunpack.c.l.b16 %v3851
    %v4619 = vunpack.c.h.b16 %v3851
    %v4620 = vpack.c.b16 %v4112, %v4108
    %v4621 = vpack.c.b16 %v4113, %v4109
    %v4622 = vpack.c.b16 %v4114, %v4110
    %v4623 = vpack.c.b16 %v4115, %v4111
    %v4624 = vpack.c.b16 %v4120, %v4116
    %v4625 = vpack.c.b16 %v4121, %v4117
    %v4626 = vpack.c.b16 %v4122, %v4118
    %v4627 = vpack.c.b16 %v4123, %v4119
    %v4628 = vpack.c.b16 %v4128, %v4124
    %v4629 = vpack.c.b16 %v4129, %v4125
    %v4630 = vpack.c.b16 %v4130, %v4126
    %v4631 = vpack.c.b16 %v4131, %v4127
    %v4632 = vpack.c.b16 %v4136, %v4132
    %v4633 = vpack.c.b16 %v4137, %v4133
    %v4634 = vpack.c.b16 %v4138, %v4134
    %v4635 = vpack.c.b16 %v4139, %v4135
    %v4636 = vpack.c.b16 %v4144, %v4140
    %v4637 = vpack.c.b16 %v4145, %v4141
    %v4638 = vpack.c.b16 %v4146, %v4142
    %v4639 = vpack.c.b16 %v4147, %v4143
    %v4640 = vpack.c.b16 %v4152, %v4148
    %v4641 = vpack.c.b16 %v4153, %v4149
    %v4642 = vpack.c.b16 %v4154, %v4150
    %v4643 = vpack.c.b16 %v4155, %v4151
    %v4644 = vpack.c.b16 %v4160, %v4156
    %v4645 = vpack.c.b16 %v4161, %v4157
    %v4646 = vpack.c.b16 %v4162, %v4158
    %v4647 = vpack.c.b16 %v4163, %v4159
    %v4648 = vpack.c.b16 %v4168, %v4164
    %v4649 = vpack.c.b16 %v4169, %v4165
    %v4650 = vpack.c.b16 %v4170, %v4166
    %v4651 = vpack.c.b16 %v4171, %v4167
    %v4652 = vpack.c.b16 %v4176, %v4172
    %v4653 = vpack.c.b16 %v4177, %v4173
    %v4654 = vpack.c.b16 %v4178, %v4174
    %v4655 = vpack.c.b16 %v4179, %v4175
    %v4656 = vpack.c.b16 %v4184, %v4180
    %v4657 = vpack.c.b16 %v4185, %v4181
    %v4658 = vpack.c.b16 %v4186, %v4182
    %v4659 = vpack.c.b16 %v4187, %v4183
    %v4660 = vpack.c.b16 %v4192, %v4188
    %v4661 = vpack.c.b16 %v4193, %v4189
    %v4662 = vpack.c.b16 %v4194, %v4190
    %v4663 = vpack.c.b16 %v4195, %v4191
    %v4664 = vpack.c.b16 %v4200, %v4196
    %v4665 = vpack.c.b16 %v4201, %v4197
    %v4666 = vpack.c.b16 %v4202, %v4198
    %v4667 = vpack.c.b16 %v4203, %v4199
    %v4668 = vpack.c.b16 %v4208, %v4204
    %v4669 = vpack.c.b16 %v4209, %v4205
    %v4670 = vpack.c.b16 %v4210, %v4206
    %v4671 = vpack.c.b16 %v4211, %v4207
    %v4672 = vpack.c.b16 %v4216, %v4212
    %v4673 = vpack.c.b16 %v4217, %v4213
    %v4674 = vpack.c.b16 %v4218, %v4214
    %v4675 = vpack.c.b16 %v4219, %v4215
    %v4676 = vpack.c.b16 %v4224, %v4220
    %v4677 = vpack.c.b16 %v4225, %v4221
    %v4678 = vpack.c.b16 %v4226, %v4222
    %v4679 = vpack.c.b16 %v4227, %v4223
    %v4680 = vpack.c.b16 %v4232, %v4228
    %v4681 = vpack.c.b16 %v4233, %v4229
    %v4682 = vpack.c.b16 %v4234, %v4230
    %v4683 = vpack.c.b16 %v4235, %v4231
    %v4684 = vpack.c.b16 %v4240, %v4236
    %v4685 = vpack.c.b16 %v4241, %v4237
    %v4686 = vpack.c.b16 %v4242, %v4238
    %v4687 = vpack.c.b16 %v4243, %v4239
    %v4688 = vpack.c.b16 %v4248, %v4244
    %v4689 = vpack.c.b16 %v4249, %v4245
    %v4690 = vpack.c.b16 %v4250, %v4246
    %v4691 = vpack.c.b16 %v4251, %v4247
    %v4692 = vpack.c.b16 %v4256, %v4252
    %v4693 = vpack.c.b16 %v4257, %v4253
    %v4694 = vpack.c.b16 %v4258, %v4254
    %v4695 = vpack.c.b16 %v4259, %v4255
    %v4696 = vpack.c.b16 %v4264, %v4260
    %v4697 = vpack.c.b16 %v4265, %v4261
    %v4698 = vpack.c.b16 %v4266, %v4262
    %v4699 = vpack.c.b16 %v4267, %v4263
    %v4700 = vpack.c.b16 %v4272, %v4268
    %v4701 = vpack.c.b16 %v4273, %v4269
    %v4702 = vpack.c.b16 %v4274, %v4270
    %v4703 = vpack.c.b16 %v4275, %v4271
    %v4704 = vpack.c.b16 %v4280, %v4276
    %v4705 = vpack.c.b16 %v4281, %v4277
    %v4706 = vpack.c.b16 %v4282, %v4278
    %v4707 = vpack.c.b16 %v4283, %v4279
    %v4708 = vpack.c.b16 %v4288, %v4284
    %v4709 = vpack.c.b16 %v4289, %v4285
    %v4710 = vpack.c.b16 %v4290, %v4286
    %v4711 = vpack.c.b16 %v4291, %v4287
    %v4712 = vpack.c.b16 %v4296, %v4292
    %v4713 = vpack.c.b16 %v4297, %v4293
    %v4714 = vpack.c.b16 %v4298, %v4294
    %v4715 = vpack.c.b16 %v4299, %v4295
    %v4716 = vpack.c.b16 %v4304, %v4300
    %v4717 = vpack.c.b16 %v4305, %v4301
    %v4718 = vpack.c.b16 %v4306, %v4302
    %v4719 = vpack.c.b16 %v4307, %v4303
    %v4720 = vpack.c.b16 %v4312, %v4308
    %v4721 = vpack.c.b16 %v4313, %v4309
    %v4722 = vpack.c.b16 %v4314, %v4310
    %v4723 = vpack.c.b16 %v4315, %v4311
    %v4724 = vpack.c.b16 %v4320, %v4316
    %v4725 = vpack.c.b16 %v4321, %v4317
    %v4726 = vpack.c.b16 %v4322, %v4318
    %v4727 = vpack.c.b16 %v4323, %v4319
    %v4728 = vpack.c.b16 %v4328, %v4324
    %v4729 = vpack.c.b16 %v4329, %v4325
    %v4730 = vpack.c.b16 %v4330, %v4326
    %v4731 = vpack.c.b16 %v4331, %v4327
    %v4732 = vpack.c.b16 %v4336, %v4332
    %v4733 = vpack.c.b16 %v4337, %v4333
    %v4734 = vpack.c.b16 %v4338, %v4334
    %v4735 = vpack.c.b16 %v4339, %v4335
    %v4736 = vpack.c.b16 %v4344, %v4340
    %v4737 = vpack.c.b16 %v4345, %v4341
    %v4738 = vpack.c.b16 %v4346, %v4342
    %v4739 = vpack.c.b16 %v4347, %v4343
    %v4740 = vpack.c.b16 %v4352, %v4348
    %v4741 = vpack.c.b16 %v4353, %v4349
    %v4742 = vpack.c.b16 %v4354, %v4350
    %v4743 = vpack.c.b16 %v4355, %v4351
    %v4744 = vpack.c.b16 %v4360, %v4356
    %v4745 = vpack.c.b16 %v4361, %v4357
    %v4746 = vpack.c.b16 %v4362, %v4358
    %v4747 = vpack.c.b16 %v4363, %v4359
    %v4748 = vpack.c.b16 %v4368, %v4364
    %v4749 = vpack.c.b16 %v4369, %v4365
    %v4750 = vpack.c.b16 %v4370, %v4366
    %v4751 = vpack.c.b16 %v4371, %v4367
    %v4752 = vpack.c.b16 %v4376, %v4372
    %v4753 = vpack.c.b16 %v4377, %v4373
    %v4754 = vpack.c.b16 %v4378, %v4374
    %v4755 = vpack.c.b16 %v4379, %v4375
    %v4756 = vpack.c.b16 %v4384, %v4380
    %v4757 = vpack.c.b16 %v4385, %v4381
    %v4758 = vpack.c.b16 %v4386, %v4382
    %v4759 = vpack.c.b16 %v4387, %v4383
    %v4760 = vpack.c.b16 %v4392, %v4388
    %v4761 = vpack.c.b16 %v4393, %v4389
    %v4762 = vpack.c.b16 %v4394, %v4390
    %v4763 = vpack.c.b16 %v4395, %v4391
    %v4764 = vpack.c.b16 %v4400, %v4396
    %v4765 = vpack.c.b16 %v4401, %v4397
    %v4766 = vpack.c.b16 %v4402, %v4398
    %v4767 = vpack.c.b16 %v4403, %v4399
    %v4768 = vpack.c.b16 %v4408, %v4404
    %v4769 = vpack.c.b16 %v4409, %v4405
    %v4770 = vpack.c.b16 %v4410, %v4406
    %v4771 = vpack.c.b16 %v4411, %v4407
    %v4772 = vpack.c.b16 %v4416, %v4412
    %v4773 = vpack.c.b16 %v4417, %v4413
    %v4774 = vpack.c.b16 %v4418, %v4414
    %v4775 = vpack.c.b16 %v4419, %v4415
    %v4776 = vpack.c.b16 %v4424, %v4420
    %v4777 = vpack.c.b16 %v4425, %v4421
    %v4778 = vpack.c.b16 %v4426, %v4422
    %v4779 = vpack.c.b16 %v4427, %v4423
    %v4780 = vpack.c.b16 %v4432, %v4428
    %v4781 = vpack.c.b16 %v4433, %v4429
    %v4782 = vpack.c.b16 %v4434, %v4430
    %v4783 = vpack.c.b16 %v4435, %v4431
    %v4784 = vpack.c.b16 %v4440, %v4436
    %v4785 = vpack.c.b16 %v4441, %v4437
    %v4786 = vpack.c.b16 %v4442, %v4438
    %v4787 = vpack.c.b16 %v4443, %v4439
    %v4788 = vpack.c.b16 %v4448, %v4444
    %v4789 = vpack.c.b16 %v4449, %v4445
    %v4790 = vpack.c.b16 %v4450, %v4446
    %v4791 = vpack.c.b16 %v4451, %v4447
    %v4792 = vpack.c.b16 %v4456, %v4452
    %v4793 = vpack.c.b16 %v4457, %v4453
    %v4794 = vpack.c.b16 %v4458, %v4454
    %v4795 = vpack.c.b16 %v4459, %v4455
    %v4796 = vpack.c.b16 %v4464, %v4460
    %v4797 = vpack.c.b16 %v4465, %v4461
    %v4798 = vpack.c.b16 %v4466, %v4462
    %v4799 = vpack.c.b16 %v4467, %v4463
    %v4800 = vpack.c.b16 %v4472, %v4468
    %v4801 = vpack.c.b16 %v4473, %v4469
    %v4802 = vpack.c.b16 %v4474, %v4470
    %v4803 = vpack.c.b16 %v4475, %v4471
    %v4804 = vpack.c.b16 %v4480, %v4476
    %v4805 = vpack.c.b16 %v4481, %v4477
    %v4806 = vpack.c.b16 %v4482, %v4478
    %v4807 = vpack.c.b16 %v4483, %v4479
    %v4808 = vpack.c.b16 %v4488, %v4484
    %v4809 = vpack.c.b16 %v4489, %v4485
    %v4810 = vpack.c.b16 %v4490, %v4486
    %v4811 = vpack.c.b16 %v4491, %v4487
    %v4812 = vpack.c.b16 %v4496, %v4492
    %v4813 = vpack.c.b16 %v4497, %v4493
    %v4814 = vpack.c.b16 %v4498, %v4494
    %v4815 = vpack.c.b16 %v4499, %v4495
    %v4816 = vpack.c.b16 %v4504, %v4500
    %v4817 = vpack.c.b16 %v4505, %v4501
    %v4818 = vpack.c.b16 %v4506, %v4502
    %v4819 = vpack.c.b16 %v4507, %v4503
    %v4820 = vpack.c.b16 %v4512, %v4508
    %v4821 = vpack.c.b16 %v4513, %v4509
    %v4822 = vpack.c.b16 %v4514, %v4510
    %v4823 = vpack.c.b16 %v4515, %v4511
    %v4824 = vpack.c.b16 %v4520, %v4516
    %v4825 = vpack.c.b16 %v4521, %v4517
    %v4826 = vpack.c.b16 %v4522, %v4518
    %v4827 = vpack.c.b16 %v4523, %v4519
    %v4828 = vpack.c.b16 %v4528, %v4524
    %v4829 = vpack.c.b16 %v4529, %v4525
    %v4830 = vpack.c.b16 %v4530, %v4526
    %v4831 = vpack.c.b16 %v4531, %v4527
    %v4832 = vpack.c.b16 %v4536, %v4532
    %v4833 = vpack.c.b16 %v4537, %v4533
    %v4834 = vpack.c.b16 %v4538, %v4534
    %v4835 = vpack.c.b16 %v4539, %v4535
    %v4836 = vpack.c.b16 %v4544, %v4540
    %v4837 = vpack.c.b16 %v4545, %v4541
    %v4838 = vpack.c.b16 %v4546, %v4542
    %v4839 = vpack.c.b16 %v4547, %v4543
    %v4840 = vpack.c.b16 %v4552, %v4548
    %v4841 = vpack.c.b16 %v4553, %v4549
    %v4842 = vpack.c.b16 %v4554, %v4550
    %v4843 = vpack.c.b16 %v4555, %v4551
    %v4844 = vpack.c.b16 %v4560, %v4556
    %v4845 = vpack.c.b16 %v4561, %v4557
    %v4846 = vpack.c.b16 %v4562, %v4558
    %v4847 = vpack.c.b16 %v4563, %v4559
    %v4848 = vpack.c.b16 %v4568, %v4564
    %v4849 = vpack.c.b16 %v4569, %v4565
    %v4850 = vpack.c.b16 %v4570, %v4566
    %v4851 = vpack.c.b16 %v4571, %v4567
    %v4852 = vpack.c.b16 %v4576, %v4572
    %v4853 = vpack.c.b16 %v4577, %v4573
    %v4854 = vpack.c.b16 %v4578, %v4574
    %v4855 = vpack.c.b16 %v4579, %v4575
    %v4856 = vpack.c.b16 %v4584, %v4580
    %v4857 = vpack.c.b16 %v4585, %v4581
    %v4858 = vpack.c.b16 %v4586, %v4582
    %v4859 = vpack.c.b16 %v4587, %v4583
    %v4860 = vpack.c.b16 %v4592, %v4588
    %v4861 = vpack.c.b16 %v4593, %v4589
    %v4862 = vpack.c.b16 %v4594, %v4590
    %v4863 = vpack.c.b16 %v4595, %v4591
    %v4864 = vpack.c.b16 %v4600, %v4596
    %v4865 = vpack.c.b16 %v4601, %v4597
    %v4866 = vpack.c.b16 %v4602, %v4598
    %v4867 = vpack.c.b16 %v4603, %v4599
    %v4868 = vpack.c.b16 %v4608, %v4604
    %v4869 = vpack.c.b16 %v4609, %v4605
    %v4870 = vpack.c.b16 %v4610, %v4606
    %v4871 = vpack.c.b16 %v4611, %v4607
    %v4872 = vpack.c.b16 %v4616, %v4612
    %v4873 = vpack.c.b16 %v4617, %v4613
    %v4874 = vpack.c.b16 %v4618, %v4614
    %v4875 = vpack.c.b16 %v4619, %v4615
    %5132 = vmatprep.subr.bf16.mxu0 %v4649
    %5133 = vmatpush1.bf16.msra.mxu0 %v4648
    %5134 = vmatprep.subr.bf16.mxu0 %v4645
    %5135 = vmatpush1.bf16.msra.mxu0 %v4644
    %5136 = vmatprep.subr.bf16.mxu0 %v4641
    %5137 = vmatpush1.bf16.msra.mxu0 %v4640
    %5138 = vmatprep.subr.bf16.mxu0 %v4637
    %5139 = vmatpush1.bf16.msra.mxu0 %v4636
    %5140 = vmatprep.subr.bf16.mxu0 %v4633
    %5141 = vmatpush1.bf16.msra.mxu0 %v4632
    %5142 = vmatprep.subr.bf16.mxu0 %v4629
    %5143 = vmatpush1.bf16.msra.mxu0 %v4628
    %5144 = vmatprep.subr.bf16.mxu0 %v4625
    %5145 = vmatpush1.bf16.msra.mxu0 %v4624
    %5146 = vmatprep.subr.bf16.mxu0 %v4621
    %5147 = vmatpush1.bf16.msra.mxu0 %v4620
    %5148 = vmatprep.subr.bf16.mxu0 %v4681
    %5149 = vmatpush2.bf16.msra.mxu0 %v4680
    %5150 = vmatprep.subr.bf16.mxu0 %v4677
    %5151 = vmatpush2.bf16.msra.mxu0 %v4676
    %5152 = vmatprep.subr.bf16.mxu0 %v4673
    %5153 = vmatpush2.bf16.msra.mxu0 %v4672
    %5154 = vmatprep.subr.bf16.mxu0 %v4669
    %5155 = vmatpush2.bf16.msra.mxu0 %v4668
    %5156 = vmatprep.subr.bf16.mxu0 %v4665
    %5157 = vmatpush2.bf16.msra.mxu0 %v4664
    %5158 = vmatprep.subr.bf16.mxu0 %v4661
    %5159 = vmatpush2.bf16.msra.mxu0 %v4660
    %5160 = vmatprep.subr.bf16.mxu0 %v4657
    %5161 = vmatpush2.bf16.msra.mxu0 %v4656
    %5162 = vmatprep.subr.bf16.mxu0 %v4653
    %5163 = vmatpush2.bf16.msra.mxu0 %v4652
    %5164 = vmatprep.mubr.bf16.mxu0 %v3333
    %5165 = vmatmul.mubr.bf16.gmra.mxu0 %v3332
    %v5166 = vpop.f32.mrf.mxu0
    %v5167 = vadd.f32 0.0, %v5166
    %v5168 = vpop.f32.mrf.mxu0
    %v5169 = vadd.f32 0.0, %v5168
    %v5170 = vpop.f32.mrf.mxu0
    %v5171 = vpop.f32.mrf.mxu0
    %5172 = vdwg.mxu0
    %5173 = vmatprep.subr.bf16.mxu0 %v4713
    %5174 = vmatpush1.bf16.msra.mxu0 %v4712
    %5175 = vmatprep.subr.bf16.mxu0 %v4709
    %5176 = vmatpush1.bf16.msra.mxu0 %v4708
    %5177 = vmatprep.subr.bf16.mxu0 %v4705
    %5178 = vmatpush1.bf16.msra.mxu0 %v4704
    %5179 = vmatprep.subr.bf16.mxu0 %v4701
    %5180 = vmatpush1.bf16.msra.mxu0 %v4700
    %5181 = vmatprep.subr.bf16.mxu0 %v4697
    %5182 = vmatpush1.bf16.msra.mxu0 %v4696
    %5183 = vmatprep.subr.bf16.mxu0 %v4693
    %5184 = vmatpush1.bf16.msra.mxu0 %v4692
    %5185 = vmatprep.subr.bf16.mxu0 %v4689
    %5186 = vmatpush1.bf16.msra.mxu0 %v4688
    %5187 = vmatprep.subr.bf16.mxu0 %v4685
    %5188 = vmatpush1.bf16.msra.mxu0 %v4684
    %5189 = vmatprep.subr.bf16.mxu0 %v4745
    %5190 = vmatpush2.bf16.msra.mxu0 %v4744
    %5191 = vmatprep.subr.bf16.mxu0 %v4741
    %5192 = vmatpush2.bf16.msra.mxu0 %v4740
    %5193 = vmatprep.subr.bf16.mxu0 %v4737
    %5194 = vmatpush2.bf16.msra.mxu0 %v4736
    %5195 = vmatprep.subr.bf16.mxu0 %v4733
    %5196 = vmatpush2.bf16.msra.mxu0 %v4732
    %5197 = vmatprep.subr.bf16.mxu0 %v4729
    %5198 = vmatpush2.bf16.msra.mxu0 %v4728
    %5199 = vmatprep.subr.bf16.mxu0 %v4725
    %5200 = vmatpush2.bf16.msra.mxu0 %v4724
    %5201 = vmatprep.subr.bf16.mxu0 %v4721
    %5202 = vmatpush2.bf16.msra.mxu0 %v4720
    %5203 = vmatprep.subr.bf16.mxu0 %v4717
    %5204 = vmatpush2.bf16.msra.mxu0 %v4716
    %5205 = vmatprep.mubr.bf16.mxu0 %v3335
    %5206 = vmatmul.mubr.bf16.gmra.mxu0 %v3334
    %v5207 = vpop.f32.mrf.mxu0
    %v5208 = vadd.f32 %v5167, %v5207
    %v5209 = vpop.f32.mrf.mxu0
    %v5210 = vadd.f32 %v5169, %v5209
    %v5211 = vpop.f32.mrf.mxu0
    %v5212 = vpop.f32.mrf.mxu0
    %5213 = vdwg.mxu0
    %5214 = vmatprep.subr.bf16.mxu0 %v4777
    %5215 = vmatpush1.bf16.msra.mxu0 %v4776
    %5216 = vmatprep.subr.bf16.mxu0 %v4773
    %5217 = vmatpush1.bf16.msra.mxu0 %v4772
    %5218 = vmatprep.subr.bf16.mxu0 %v4769
    %5219 = vmatpush1.bf16.msra.mxu0 %v4768
    %5220 = vmatprep.subr.bf16.mxu0 %v4765
    %5221 = vmatpush1.bf16.msra.mxu0 %v4764
    %5222 = vmatprep.subr.bf16.mxu0 %v4761
    %5223 = vmatpush1.bf16.msra.mxu0 %v4760
    %5224 = vmatprep.subr.bf16.mxu0 %v4757
    %5225 = vmatpush1.bf16.msra.mxu0 %v4756
    %5226 = vmatprep.subr.bf16.mxu0 %v4753
    %5227 = vmatpush1.bf16.msra.mxu0 %v4752
    %5228 = vmatprep.subr.bf16.mxu0 %v4749
    %5229 = vmatpush1.bf16.msra.mxu0 %v4748
    %5230 = vmatprep.subr.bf16.mxu0 %v4809
    %5231 = vmatpush2.bf16.msra.mxu0 %v4808
    %5232 = vmatprep.subr.bf16.mxu0 %v4805
    %5233 = vmatpush2.bf16.msra.mxu0 %v4804
    %5234 = vmatprep.subr.bf16.mxu0 %v4801
    %5235 = vmatpush2.bf16.msra.mxu0 %v4800
    %5236 = vmatprep.subr.bf16.mxu0 %v4797
    %5237 = vmatpush2.bf16.msra.mxu0 %v4796
    %5238 = vmatprep.subr.bf16.mxu0 %v4793
    %5239 = vmatpush2.bf16.msra.mxu0 %v4792
    %5240 = vmatprep.subr.bf16.mxu0 %v4789
    %5241 = vmatpush2.bf16.msra.mxu0 %v4788
    %5242 = vmatprep.subr.bf16.mxu0 %v4785
    %5243 = vmatpush2.bf16.msra.mxu0 %v4784
    %5244 = vmatprep.subr.bf16.mxu0 %v4781
    %5245 = vmatpush2.bf16.msra.mxu0 %v4780
    %5246 = vmatprep.mubr.bf16.mxu0 %v3337
    %5247 = vmatmul.mubr.bf16.gmra.mxu0 %v3336
    %v5248 = vpop.f32.mrf.mxu0
    %v5249 = vadd.f32 %v5208, %v5248
    %v5250 = vpop.f32.mrf.mxu0
    %v5251 = vadd.f32 %v5210, %v5250
    %v5252 = vpop.f32.mrf.mxu0
    %v5253 = vpop.f32.mrf.mxu0
    %5254 = vdwg.mxu0
    %5255 = vmatprep.subr.bf16.mxu0 %v4841
    %5256 = vmatpush1.bf16.msra.mxu0 %v4840
    %5257 = vmatprep.subr.bf16.mxu0 %v4837
    %5258 = vmatpush1.bf16.msra.mxu0 %v4836
    %5259 = vmatprep.subr.bf16.mxu0 %v4833
    %5260 = vmatpush1.bf16.msra.mxu0 %v4832
    %5261 = vmatprep.subr.bf16.mxu0 %v4829
    %5262 = vmatpush1.bf16.msra.mxu0 %v4828
    %5263 = vmatprep.subr.bf16.mxu0 %v4825
    %5264 = vmatpush1.bf16.msra.mxu0 %v4824
    %5265 = vmatprep.subr.bf16.mxu0 %v4821
    %5266 = vmatpush1.bf16.msra.mxu0 %v4820
    %5267 = vmatprep.subr.bf16.mxu0 %v4817
    %5268 = vmatpush1.bf16.msra.mxu0 %v4816
    %5269 = vmatprep.subr.bf16.mxu0 %v4813
    %5270 = vmatpush1.bf16.msra.mxu0 %v4812
    %5271 = vmatprep.subr.bf16.mxu0 %v4873
    %5272 = vmatpush2.bf16.msra.mxu0 %v4872
    %5273 = vmatprep.subr.bf16.mxu0 %v4869
    %5274 = vmatpush2.bf16.msra.mxu0 %v4868
    %5275 = vmatprep.subr.bf16.mxu0 %v4865
    %5276 = vmatpush2.bf16.msra.mxu0 %v4864
    %5277 = vmatprep.subr.bf16.mxu0 %v4861
    %5278 = vmatpush2.bf16.msra.mxu0 %v4860
    %5279 = vmatprep.subr.bf16.mxu0 %v4857
    %5280 = vmatpush2.bf16.msra.mxu0 %v4856
    %5281 = vmatprep.subr.bf16.mxu0 %v4853
    %5282 = vmatpush2.bf16.msra.mxu0 %v4852
    %5283 = vmatprep.subr.bf16.mxu0 %v4849
    %5284 = vmatpush2.bf16.msra.mxu0 %v4848
    %5285 = vmatprep.subr.bf16.mxu0 %v4845
    %5286 = vmatpush2.bf16.msra.mxu0 %v4844
    %5287 = vmatprep.mubr.bf16.mxu0 %v3339
    %5288 = vmatmul.mubr.bf16.gmra.mxu0 %v3338
    %v5289 = vpop.f32.mrf.mxu0
    %v5290 = vadd.f32 %v5249, %v5289
    %v5291 = vpop.f32.mrf.mxu0
    %v5292 = vadd.f32 %v5251, %v5291
    %v5293 = vpop.f32.mrf.mxu0
    %v5294 = vpop.f32.mrf.mxu0
    %5295 = vdwg.mxu0
    %5296 = vmatprep.subr.bf16.mxu0 %v4651
    %5297 = vmatpush1.bf16.msra.mxu0 %v4650
    %5298 = vmatprep.subr.bf16.mxu0 %v4647
    %5299 = vmatpush1.bf16.msra.mxu0 %v4646
    %5300 = vmatprep.subr.bf16.mxu0 %v4643
    %5301 = vmatpush1.bf16.msra.mxu0 %v4642
    %5302 = vmatprep.subr.bf16.mxu0 %v4639
    %5303 = vmatpush1.bf16.msra.mxu0 %v4638
    %5304 = vmatprep.subr.bf16.mxu0 %v4635
    %5305 = vmatpush1.bf16.msra.mxu0 %v4634
    %5306 = vmatprep.subr.bf16.mxu0 %v4631
    %5307 = vmatpush1.bf16.msra.mxu0 %v4630
    %5308 = vmatprep.subr.bf16.mxu0 %v4627
    %5309 = vmatpush1.bf16.msra.mxu0 %v4626
    %5310 = vmatprep.subr.bf16.mxu0 %v4623
    %5311 = vmatpush1.bf16.msra.mxu0 %v4622
    %5312 = vmatprep.subr.bf16.mxu0 %v4683
    %5313 = vmatpush2.bf16.msra.mxu0 %v4682
    %5314 = vmatprep.subr.bf16.mxu0 %v4679
    %5315 = vmatpush2.bf16.msra.mxu0 %v4678
    %5316 = vmatprep.subr.bf16.mxu0 %v4675
    %5317 = vmatpush2.bf16.msra.mxu0 %v4674
    %5318 = vmatprep.subr.bf16.mxu0 %v4671
    %5319 = vmatpush2.bf16.msra.mxu0 %v4670
    %5320 = vmatprep.subr.bf16.mxu0 %v4667
    %5321 = vmatpush2.bf16.msra.mxu0 %v4666
    %5322 = vmatprep.subr.bf16.mxu0 %v4663
    %5323 = vmatpush2.bf16.msra.mxu0 %v4662
    %5324 = vmatprep.subr.bf16.mxu0 %v4659
    %5325 = vmatpush2.bf16.msra.mxu0 %v4658
    %5326 = vmatprep.subr.bf16.mxu0 %v4655
    %5327 = vmatpush2.bf16.msra.mxu0 %v4654
    %5328 = vmatprep.mubr.bf16.mxu0 %v3333
    %5329 = vmatmul.mubr.bf16.gmra.mxu0 %v3332
    %v5330 = vpop.f32.mrf.mxu0
    %v5331 = vadd.f32 0.0, %v5330
    %v5332 = vpop.f32.mrf.mxu0
    %v5333 = vadd.f32 0.0, %v5332
    %v5334 = vpop.f32.mrf.mxu0
    %v5335 = vpop.f32.mrf.mxu0
    %5336 = vdwg.mxu0
    %5337 = vmatprep.subr.bf16.mxu0 %v4715
    %5338 = vmatpush1.bf16.msra.mxu0 %v4714
    %5339 = vmatprep.subr.bf16.mxu0 %v4711
    %5340 = vmatpush1.bf16.msra.mxu0 %v4710
    %5341 = vmatprep.subr.bf16.mxu0 %v4707
    %5342 = vmatpush1.bf16.msra.mxu0 %v4706
    %5343 = vmatprep.subr.bf16.mxu0 %v4703
    %5344 = vmatpush1.bf16.msra.mxu0 %v4702
    %5345 = vmatprep.subr.bf16.mxu0 %v4699
    %5346 = vmatpush1.bf16.msra.mxu0 %v4698
    %5347 = vmatprep.subr.bf16.mxu0 %v4695
    %5348 = vmatpush1.bf16.msra.mxu0 %v4694
    %5349 = vmatprep.subr.bf16.mxu0 %v4691
    %5350 = vmatpush1.bf16.msra.mxu0 %v4690
    %5351 = vmatprep.subr.bf16.mxu0 %v4687
    %5352 = vmatpush1.bf16.msra.mxu0 %v4686
    %5353 = vmatprep.subr.bf16.mxu0 %v4747
    %5354 = vmatpush2.bf16.msra.mxu0 %v4746
    %5355 = vmatprep.subr.bf16.mxu0 %v4743
    %5356 = vmatpush2.bf16.msra.mxu0 %v4742
    %5357 = vmatprep.subr.bf16.mxu0 %v4739
    %5358 = vmatpush2.bf16.msra.mxu0 %v4738
    %5359 = vmatprep.subr.bf16.mxu0 %v4735
    %5360 = vmatpush2.bf16.msra.mxu0 %v4734
    %5361 = vmatprep.subr.bf16.mxu0 %v4731
    %5362 = vmatpush2.bf16.msra.mxu0 %v4730
    %5363 = vmatprep.subr.bf16.mxu0 %v4727
    %5364 = vmatpush2.bf16.msra.mxu0 %v4726
    %5365 = vmatprep.subr.bf16.mxu0 %v4723
    %5366 = vmatpush2.bf16.msra.mxu0 %v4722
    %5367 = vmatprep.subr.bf16.mxu0 %v4719
    %5368 = vmatpush2.bf16.msra.mxu0 %v4718
    %5369 = vmatprep.mubr.bf16.mxu0 %v3335
    %5370 = vmatmul.mubr.bf16.gmra.mxu0 %v3334
    %v5371 = vpop.f32.mrf.mxu0
    %v5372 = vadd.f32 %v5331, %v5371
    %v5373 = vpop.f32.mrf.mxu0
    %v5374 = vadd.f32 %v5333, %v5373
    %v5375 = vpop.f32.mrf.mxu0
    %v5376 = vpop.f32.mrf.mxu0
    %5377 = vdwg.mxu0
    %5378 = vmatprep.subr.bf16.mxu0 %v4779
    %5379 = vmatpush1.bf16.msra.mxu0 %v4778
    %5380 = vmatprep.subr.bf16.mxu0 %v4775
    %5381 = vmatpush1.bf16.msra.mxu0 %v4774
    %5382 = vmatprep.subr.bf16.mxu0 %v4771
    %5383 = vmatpush1.bf16.msra.mxu0 %v4770
    %5384 = vmatprep.subr.bf16.mxu0 %v4767
    %5385 = vmatpush1.bf16.msra.mxu0 %v4766
    %5386 = vmatprep.subr.bf16.mxu0 %v4763
    %5387 = vmatpush1.bf16.msra.mxu0 %v4762
    %5388 = vmatprep.subr.bf16.mxu0 %v4759
    %5389 = vmatpush1.bf16.msra.mxu0 %v4758
    %5390 = vmatprep.subr.bf16.mxu0 %v4755
    %5391 = vmatpush1.bf16.msra.mxu0 %v4754
    %5392 = vmatprep.subr.bf16.mxu0 %v4751
    %5393 = vmatpush1.bf16.msra.mxu0 %v4750
    %5394 = vmatprep.subr.bf16.mxu0 %v4811
    %5395 = vmatpush2.bf16.msra.mxu0 %v4810
    %5396 = vmatprep.subr.bf16.mxu0 %v4807
    %5397 = vmatpush2.bf16.msra.mxu0 %v4806
    %5398 = vmatprep.subr.bf16.mxu0 %v4803
    %5399 = vmatpush2.bf16.msra.mxu0 %v4802
    %5400 = vmatprep.subr.bf16.mxu0 %v4799
    %5401 = vmatpush2.bf16.msra.mxu0 %v4798
    %5402 = vmatprep.subr.bf16.mxu0 %v4795
    %5403 = vmatpush2.bf16.msra.mxu0 %v4794
    %5404 = vmatprep.subr.bf16.mxu0 %v4791
    %5405 = vmatpush2.bf16.msra.mxu0 %v4790
    %5406 = vmatprep.subr.bf16.mxu0 %v4787
    %5407 = vmatpush2.bf16.msra.mxu0 %v4786
    %5408 = vmatprep.subr.bf16.mxu0 %v4783
    %5409 = vmatpush2.bf16.msra.mxu0 %v4782
    %5410 = vmatprep.mubr.bf16.mxu0 %v3337
    %5411 = vmatmul.mubr.bf16.gmra.mxu0 %v3336
    %v5412 = vpop.f32.mrf.mxu0
    %v5413 = vadd.f32 %v5372, %v5412
    %v5414 = vpop.f32.mrf.mxu0
    %v5415 = vadd.f32 %v5374, %v5414
    %v5416 = vpop.f32.mrf.mxu0
    %v5417 = vpop.f32.mrf.mxu0
    %5418 = vdwg.mxu0
    %5419 = vmatprep.subr.bf16.mxu0 %v4843
    %5420 = vmatpush1.bf16.msra.mxu0 %v4842
    %5421 = vmatprep.subr.bf16.mxu0 %v4839
    %5422 = vmatpush1.bf16.msra.mxu0 %v4838
    %5423 = vmatprep.subr.bf16.mxu0 %v4835
    %5424 = vmatpush1.bf16.msra.mxu0 %v4834
    %5425 = vmatprep.subr.bf16.mxu0 %v4831
    %5426 = vmatpush1.bf16.msra.mxu0 %v4830
    %5427 = vmatprep.subr.bf16.mxu0 %v4827
    %5428 = vmatpush1.bf16.msra.mxu0 %v4826
    %5429 = vmatprep.subr.bf16.mxu0 %v4823
    %5430 = vmatpush1.bf16.msra.mxu0 %v4822
    %5431 = vmatprep.subr.bf16.mxu0 %v4819
    %5432 = vmatpush1.bf16.msra.mxu0 %v4818
    %5433 = vmatprep.subr.bf16.mxu0 %v4815
    %5434 = vmatpush1.bf16.msra.mxu0 %v4814
    %5435 = vmatprep.subr.bf16.mxu0 %v4875
    %5436 = vmatpush2.bf16.msra.mxu0 %v4874
    %5437 = vmatprep.subr.bf16.mxu0 %v4871
    %5438 = vmatpush2.bf16.msra.mxu0 %v4870
    %5439 = vmatprep.subr.bf16.mxu0 %v4867
    %5440 = vmatpush2.bf16.msra.mxu0 %v4866
    %5441 = vmatprep.subr.bf16.mxu0 %v4863
    %5442 = vmatpush2.bf16.msra.mxu0 %v4862
    %5443 = vmatprep.subr.bf16.mxu0 %v4859
    %5444 = vmatpush2.bf16.msra.mxu0 %v4858
    %5445 = vmatprep.subr.bf16.mxu0 %v4855
    %5446 = vmatpush2.bf16.msra.mxu0 %v4854
    %5447 = vmatprep.subr.bf16.mxu0 %v4851
    %5448 = vmatpush2.bf16.msra.mxu0 %v4850
    %5449 = vmatprep.subr.bf16.mxu0 %v4847
    %5450 = vmatpush2.bf16.msra.mxu0 %v4846
    %5451 = vmatprep.mubr.bf16.mxu0 %v3339
    %5452 = vmatmul.mubr.bf16.gmra.mxu0 %v3338
    %v5453 = vpop.f32.mrf.mxu0
    %v5454 = vadd.f32 %v5413, %v5453
    %v5455 = vpop.f32.mrf.mxu0
    %v5456 = vadd.f32 %v5415, %v5455
    %v5457 = vpop.f32.mrf.mxu0
    %v5458 = vpop.f32.mrf.mxu0
    %5459 = vdwg.mxu0
    %v5716 = vunpack.c.l.b16 %v3340
    %v5717 = vunpack.c.h.b16 %v3340
    %v5718 = vunpack.c.l.b16 %v3341
    %v5719 = vunpack.c.h.b16 %v3341
    %v5720 = vunpack.c.l.b16 %v3342
    %v5721 = vunpack.c.h.b16 %v3342
    %v5722 = vunpack.c.l.b16 %v3343
    %v5723 = vunpack.c.h.b16 %v3343
    %v5724 = vunpack.c.l.b16 %v3344
    %v5725 = vunpack.c.h.b16 %v3344
    %v5726 = vunpack.c.l.b16 %v3345
    %v5727 = vunpack.c.h.b16 %v3345
    %v5728 = vunpack.c.l.b16 %v3346
    %v5729 = vunpack.c.h.b16 %v3346
    %v5730 = vunpack.c.l.b16 %v3347
    %v5731 = vunpack.c.h.b16 %v3347
    %v5732 = vunpack.c.l.b16 %v3348
    %v5733 = vunpack.c.h.b16 %v3348
    %v5734 = vunpack.c.l.b16 %v3349
    %v5735 = vunpack.c.h.b16 %v3349
    %v5736 = vunpack.c.l.b16 %v3350
    %v5737 = vunpack.c.h.b16 %v3350
    %v5738 = vunpack.c.l.b16 %v3351
    %v5739 = vunpack.c.h.b16 %v3351
    %v5740 = vunpack.c.l.b16 %v3352
    %v5741 = vunpack.c.h.b16 %v3352
    %v5742 = vunpack.c.l.b16 %v3353
    %v5743 = vunpack.c.h.b16 %v3353
    %v5744 = vunpack.c.l.b16 %v3354
    %v5745 = vunpack.c.h.b16 %v3354
    %v5746 = vunpack.c.l.b16 %v3355
    %v5747 = vunpack.c.h.b16 %v3355
    %v5748 = vunpack.c.l.b16 %v3356
    %v5749 = vunpack.c.h.b16 %v3356
    %v5750 = vunpack.c.l.b16 %v3357
    %v5751 = vunpack.c.h.b16 %v3357
    %v5752 = vunpack.c.l.b16 %v3358
    %v5753 = vunpack.c.h.b16 %v3358
    %v5754 = vunpack.c.l.b16 %v3359
    %v5755 = vunpack.c.h.b16 %v3359
    %v5756 = vunpack.c.l.b16 %v3360
    %v5757 = vunpack.c.h.b16 %v3360
    %v5758 = vunpack.c.l.b16 %v3361
    %v5759 = vunpack.c.h.b16 %v3361
    %v5760 = vunpack.c.l.b16 %v3362
    %v5761 = vunpack.c.h.b16 %v3362
    %v5762 = vunpack.c.l.b16 %v3363
    %v5763 = vunpack.c.h.b16 %v3363
    %v5764 = vunpack.c.l.b16 %v3364
    %v5765 = vunpack.c.h.b16 %v3364
    %v5766 = vunpack.c.l.b16 %v3365
    %v5767 = vunpack.c.h.b16 %v3365
    %v5768 = vunpack.c.l.b16 %v3366
    %v5769 = vunpack.c.h.b16 %v3366
    %v5770 = vunpack.c.l.b16 %v3367
    %v5771 = vunpack.c.h.b16 %v3367
    %v5772 = vunpack.c.l.b16 %v3368
    %v5773 = vunpack.c.h.b16 %v3368
    %v5774 = vunpack.c.l.b16 %v3369
    %v5775 = vunpack.c.h.b16 %v3369
    %v5776 = vunpack.c.l.b16 %v3370
    %v5777 = vunpack.c.h.b16 %v3370
    %v5778 = vunpack.c.l.b16 %v3371
    %v5779 = vunpack.c.h.b16 %v3371
    %v5780 = vunpack.c.l.b16 %v3372
    %v5781 = vunpack.c.h.b16 %v3372
    %v5782 = vunpack.c.l.b16 %v3373
    %v5783 = vunpack.c.h.b16 %v3373
    %v5784 = vunpack.c.l.b16 %v3374
    %v5785 = vunpack.c.h.b16 %v3374
    %v5786 = vunpack.c.l.b16 %v3375
    %v5787 = vunpack.c.h.b16 %v3375
    %v5788 = vunpack.c.l.b16 %v3376
    %v5789 = vunpack.c.h.b16 %v3376
    %v5790 = vunpack.c.l.b16 %v3377
    %v5791 = vunpack.c.h.b16 %v3377
    %v5792 = vunpack.c.l.b16 %v3378
    %v5793 = vunpack.c.h.b16 %v3378
    %v5794 = vunpack.c.l.b16 %v3379
    %v5795 = vunpack.c.h.b16 %v3379
    %v5796 = vunpack.c.l.b16 %v3380
    %v5797 = vunpack.c.h.b16 %v3380
    %v5798 = vunpack.c.l.b16 %v3381
    %v5799 = vunpack.c.h.b16 %v3381
    %v5800 = vunpack.c.l.b16 %v3382
    %v5801 = vunpack.c.h.b16 %v3382
    %v5802 = vunpack.c.l.b16 %v3383
    %v5803 = vunpack.c.h.b16 %v3383
    %v5804 = vunpack.c.l.b16 %v3384
    %v5805 = vunpack.c.h.b16 %v3384
    %v5806 = vunpack.c.l.b16 %v3385
    %v5807 = vunpack.c.h.b16 %v3385
    %v5808 = vunpack.c.l.b16 %v3386
    %v5809 = vunpack.c.h.b16 %v3386
    %v5810 = vunpack.c.l.b16 %v3387
    %v5811 = vunpack.c.h.b16 %v3387
    %v5812 = vunpack.c.l.b16 %v3388
    %v5813 = vunpack.c.h.b16 %v3388
    %v5814 = vunpack.c.l.b16 %v3389
    %v5815 = vunpack.c.h.b16 %v3389
    %v5816 = vunpack.c.l.b16 %v3390
    %v5817 = vunpack.c.h.b16 %v3390
    %v5818 = vunpack.c.l.b16 %v3391
    %v5819 = vunpack.c.h.b16 %v3391
    %v5820 = vunpack.c.l.b16 %v3392
    %v5821 = vunpack.c.h.b16 %v3392
    %v5822 = vunpack.c.l.b16 %v3393
    %v5823 = vunpack.c.h.b16 %v3393
    %v5824 = vunpack.c.l.b16 %v3394
    %v5825 = vunpack.c.h.b16 %v3394
    %v5826 = vunpack.c.l.b16 %v3395
    %v5827 = vunpack.c.h.b16 %v3395
    %v5828 = vunpack.c.l.b16 %v3396
    %v5829 = vunpack.c.h.b16 %v3396
    %v5830 = vunpack.c.l.b16 %v3397
    %v5831 = vunpack.c.h.b16 %v3397
    %v5832 = vunpack.c.l.b16 %v3398
    %v5833 = vunpack.c.h.b16 %v3398
    %v5834 = vunpack.c.l.b16 %v3399
    %v5835 = vunpack.c.h.b16 %v3399
    %v5836 = vunpack.c.l.b16 %v3400
    %v5837 = vunpack.c.h.b16 %v3400
    %v5838 = vunpack.c.l.b16 %v3401
    %v5839 = vunpack.c.h.b16 %v3401
    %v5840 = vunpack.c.l.b16 %v3402
    %v5841 = vunpack.c.h.b16 %v3402
    %v5842 = vunpack.c.l.b16 %v3403
    %v5843 = vunpack.c.h.b16 %v3403
    %v5844 = vunpack.c.l.b16 %v3404
    %v5845 = vunpack.c.h.b16 %v3404
    %v5846 = vunpack.c.l.b16 %v3405
    %v5847 = vunpack.c.h.b16 %v3405
    %v5848 = vunpack.c.l.b16 %v3406
    %v5849 = vunpack.c.h.b16 %v3406
    %v5850 = vunpack.c.l.b16 %v3407
    %v5851 = vunpack.c.h.b16 %v3407
    %v5852 = vunpack.c.l.b16 %v3408
    %v5853 = vunpack.c.h.b16 %v3408
    %v5854 = vunpack.c.l.b16 %v3409
    %v5855 = vunpack.c.h.b16 %v3409
    %v5856 = vunpack.c.l.b16 %v3410
    %v5857 = vunpack.c.h.b16 %v3410
    %v5858 = vunpack.c.l.b16 %v3411
    %v5859 = vunpack.c.h.b16 %v3411
    %v5860 = vunpack.c.l.b16 %v3412
    %v5861 = vunpack.c.h.b16 %v3412
    %v5862 = vunpack.c.l.b16 %v3413
    %v5863 = vunpack.c.h.b16 %v3413
    %v5864 = vunpack.c.l.b16 %v3414
    %v5865 = vunpack.c.h.b16 %v3414
    %v5866 = vunpack.c.l.b16 %v3415
    %v5867 = vunpack.c.h.b16 %v3415
    %v5868 = vunpack.c.l.b16 %v3416
    %v5869 = vunpack.c.h.b16 %v3416
    %v5870 = vunpack.c.l.b16 %v3417
    %v5871 = vunpack.c.h.b16 %v3417
    %v5872 = vunpack.c.l.b16 %v3418
    %v5873 = vunpack.c.h.b16 %v3418
    %v5874 = vunpack.c.l.b16 %v3419
    %v5875 = vunpack.c.h.b16 %v3419
    %v5876 = vunpack.c.l.b16 %v3420
    %v5877 = vunpack.c.h.b16 %v3420
    %v5878 = vunpack.c.l.b16 %v3421
    %v5879 = vunpack.c.h.b16 %v3421
    %v5880 = vunpack.c.l.b16 %v3422
    %v5881 = vunpack.c.h.b16 %v3422
    %v5882 = vunpack.c.l.b16 %v3423
    %v5883 = vunpack.c.h.b16 %v3423
    %v5884 = vunpack.c.l.b16 %v3424
    %v5885 = vunpack.c.h.b16 %v3424
    %v5886 = vunpack.c.l.b16 %v3425
    %v5887 = vunpack.c.h.b16 %v3425
    %v5888 = vunpack.c.l.b16 %v3426
    %v5889 = vunpack.c.h.b16 %v3426
    %v5890 = vunpack.c.l.b16 %v3427
    %v5891 = vunpack.c.h.b16 %v3427
    %v5892 = vunpack.c.l.b16 %v3428
    %v5893 = vunpack.c.h.b16 %v3428
    %v5894 = vunpack.c.l.b16 %v3429
    %v5895 = vunpack.c.h.b16 %v3429
    %v5896 = vunpack.c.l.b16 %v3430
    %v5897 = vunpack.c.h.b16 %v3430
    %v5898 = vunpack.c.l.b16 %v3431
    %v5899 = vunpack.c.h.b16 %v3431
    %v5900 = vunpack.c.l.b16 %v3432
    %v5901 = vunpack.c.h.b16 %v3432
    %v5902 = vunpack.c.l.b16 %v3433
    %v5903 = vunpack.c.h.b16 %v3433
    %v5904 = vunpack.c.l.b16 %v3434
    %v5905 = vunpack.c.h.b16 %v3434
    %v5906 = vunpack.c.l.b16 %v3435
    %v5907 = vunpack.c.h.b16 %v3435
    %v5908 = vunpack.c.l.b16 %v3436
    %v5909 = vunpack.c.h.b16 %v3436
    %v5910 = vunpack.c.l.b16 %v3437
    %v5911 = vunpack.c.h.b16 %v3437
    %v5912 = vunpack.c.l.b16 %v3438
    %v5913 = vunpack.c.h.b16 %v3438
    %v5914 = vunpack.c.l.b16 %v3439
    %v5915 = vunpack.c.h.b16 %v3439
    %v5916 = vunpack.c.l.b16 %v3440
    %v5917 = vunpack.c.h.b16 %v3440
    %v5918 = vunpack.c.l.b16 %v3441
    %v5919 = vunpack.c.h.b16 %v3441
    %v5920 = vunpack.c.l.b16 %v3442
    %v5921 = vunpack.c.h.b16 %v3442
    %v5922 = vunpack.c.l.b16 %v3443
    %v5923 = vunpack.c.h.b16 %v3443
    %v5924 = vunpack.c.l.b16 %v3444
    %v5925 = vunpack.c.h.b16 %v3444
    %v5926 = vunpack.c.l.b16 %v3445
    %v5927 = vunpack.c.h.b16 %v3445
    %v5928 = vunpack.c.l.b16 %v3446
    %v5929 = vunpack.c.h.b16 %v3446
    %v5930 = vunpack.c.l.b16 %v3447
    %v5931 = vunpack.c.h.b16 %v3447
    %v5932 = vunpack.c.l.b16 %v3448
    %v5933 = vunpack.c.h.b16 %v3448
    %v5934 = vunpack.c.l.b16 %v3449
    %v5935 = vunpack.c.h.b16 %v3449
    %v5936 = vunpack.c.l.b16 %v3450
    %v5937 = vunpack.c.h.b16 %v3450
    %v5938 = vunpack.c.l.b16 %v3451
    %v5939 = vunpack.c.h.b16 %v3451
    %v5940 = vunpack.c.l.b16 %v3452
    %v5941 = vunpack.c.h.b16 %v3452
    %v5942 = vunpack.c.l.b16 %v3453
    %v5943 = vunpack.c.h.b16 %v3453
    %v5944 = vunpack.c.l.b16 %v3454
    %v5945 = vunpack.c.h.b16 %v3454
    %v5946 = vunpack.c.l.b16 %v3455
    %v5947 = vunpack.c.h.b16 %v3455
    %v5948 = vunpack.c.l.b16 %v3456
    %v5949 = vunpack.c.h.b16 %v3456
    %v5950 = vunpack.c.l.b16 %v3457
    %v5951 = vunpack.c.h.b16 %v3457
    %v5952 = vunpack.c.l.b16 %v3458
    %v5953 = vunpack.c.h.b16 %v3458
    %v5954 = vunpack.c.l.b16 %v3459
    %v5955 = vunpack.c.h.b16 %v3459
    %v5956 = vunpack.c.l.b16 %v3460
    %v5957 = vunpack.c.h.b16 %v3460
    %v5958 = vunpack.c.l.b16 %v3461
    %v5959 = vunpack.c.h.b16 %v3461
    %v5960 = vunpack.c.l.b16 %v3462
    %v5961 = vunpack.c.h.b16 %v3462
    %v5962 = vunpack.c.l.b16 %v3463
    %v5963 = vunpack.c.h.b16 %v3463
    %v5964 = vunpack.c.l.b16 %v3464
    %v5965 = vunpack.c.h.b16 %v3464
    %v5966 = vunpack.c.l.b16 %v3465
    %v5967 = vunpack.c.h.b16 %v3465
    %v5968 = vunpack.c.l.b16 %v3466
    %v5969 = vunpack.c.h.b16 %v3466
    %v5970 = vunpack.c.l.b16 %v3467
    %v5971 = vunpack.c.h.b16 %v3467
    %v5972 = vunpack.c.l.b16 %v3468
    %v5973 = vunpack.c.h.b16 %v3468
    %v5974 = vunpack.c.l.b16 %v3469
    %v5975 = vunpack.c.h.b16 %v3469
    %v5976 = vunpack.c.l.b16 %v3470
    %v5977 = vunpack.c.h.b16 %v3470
    %v5978 = vunpack.c.l.b16 %v3471
    %v5979 = vunpack.c.h.b16 %v3471
    %v5980 = vunpack.c.l.b16 %v3472
    %v5981 = vunpack.c.h.b16 %v3472
    %v5982 = vunpack.c.l.b16 %v3473
    %v5983 = vunpack.c.h.b16 %v3473
    %v5984 = vunpack.c.l.b16 %v3474
    %v5985 = vunpack.c.h.b16 %v3474
    %v5986 = vunpack.c.l.b16 %v3475
    %v5987 = vunpack.c.h.b16 %v3475
    %v5988 = vunpack.c.l.b16 %v3476
    %v5989 = vunpack.c.h.b16 %v3476
    %v5990 = vunpack.c.l.b16 %v3477
    %v5991 = vunpack.c.h.b16 %v3477
    %v5992 = vunpack.c.l.b16 %v3478
    %v5993 = vunpack.c.h.b16 %v3478
    %v5994 = vunpack.c.l.b16 %v3479
    %v5995 = vunpack.c.h.b16 %v3479
    %v5996 = vunpack.c.l.b16 %v3480
    %v5997 = vunpack.c.h.b16 %v3480
    %v5998 = vunpack.c.l.b16 %v3481
    %v5999 = vunpack.c.h.b16 %v3481
    %v6000 = vunpack.c.l.b16 %v3482
    %v6001 = vunpack.c.h.b16 %v3482
    %v6002 = vunpack.c.l.b16 %v3483
    %v6003 = vunpack.c.h.b16 %v3483
    %v6004 = vunpack.c.l.b16 %v3484
    %v6005 = vunpack.c.h.b16 %v3484
    %v6006 = vunpack.c.l.b16 %v3485
    %v6007 = vunpack.c.h.b16 %v3485
    %v6008 = vunpack.c.l.b16 %v3486
    %v6009 = vunpack.c.h.b16 %v3486
    %v6010 = vunpack.c.l.b16 %v3487
    %v6011 = vunpack.c.h.b16 %v3487
    %v6012 = vunpack.c.l.b16 %v3488
    %v6013 = vunpack.c.h.b16 %v3488
    %v6014 = vunpack.c.l.b16 %v3489
    %v6015 = vunpack.c.h.b16 %v3489
    %v6016 = vunpack.c.l.b16 %v3490
    %v6017 = vunpack.c.h.b16 %v3490
    %v6018 = vunpack.c.l.b16 %v3491
    %v6019 = vunpack.c.h.b16 %v3491
    %v6020 = vunpack.c.l.b16 %v3492
    %v6021 = vunpack.c.h.b16 %v3492
    %v6022 = vunpack.c.l.b16 %v3493
    %v6023 = vunpack.c.h.b16 %v3493
    %v6024 = vunpack.c.l.b16 %v3494
    %v6025 = vunpack.c.h.b16 %v3494
    %v6026 = vunpack.c.l.b16 %v3495
    %v6027 = vunpack.c.h.b16 %v3495
    %v6028 = vunpack.c.l.b16 %v3496
    %v6029 = vunpack.c.h.b16 %v3496
    %v6030 = vunpack.c.l.b16 %v3497
    %v6031 = vunpack.c.h.b16 %v3497
    %v6032 = vunpack.c.l.b16 %v3498
    %v6033 = vunpack.c.h.b16 %v3498
    %v6034 = vunpack.c.l.b16 %v3499
    %v6035 = vunpack.c.h.b16 %v3499
    %v6036 = vunpack.c.l.b16 %v3500
    %v6037 = vunpack.c.h.b16 %v3500
    %v6038 = vunpack.c.l.b16 %v3501
    %v6039 = vunpack.c.h.b16 %v3501
    %v6040 = vunpack.c.l.b16 %v3502
    %v6041 = vunpack.c.h.b16 %v3502
    %v6042 = vunpack.c.l.b16 %v3503
    %v6043 = vunpack.c.h.b16 %v3503
    %v6044 = vunpack.c.l.b16 %v3504
    %v6045 = vunpack.c.h.b16 %v3504
    %v6046 = vunpack.c.l.b16 %v3505
    %v6047 = vunpack.c.h.b16 %v3505
    %v6048 = vunpack.c.l.b16 %v3506
    %v6049 = vunpack.c.h.b16 %v3506
    %v6050 = vunpack.c.l.b16 %v3507
    %v6051 = vunpack.c.h.b16 %v3507
    %v6052 = vunpack.c.l.b16 %v3508
    %v6053 = vunpack.c.h.b16 %v3508
    %v6054 = vunpack.c.l.b16 %v3509
    %v6055 = vunpack.c.h.b16 %v3509
    %v6056 = vunpack.c.l.b16 %v3510
    %v6057 = vunpack.c.h.b16 %v3510
    %v6058 = vunpack.c.l.b16 %v3511
    %v6059 = vunpack.c.h.b16 %v3511
    %v6060 = vunpack.c.l.b16 %v3512
    %v6061 = vunpack.c.h.b16 %v3512
    %v6062 = vunpack.c.l.b16 %v3513
    %v6063 = vunpack.c.h.b16 %v3513
    %v6064 = vunpack.c.l.b16 %v3514
    %v6065 = vunpack.c.h.b16 %v3514
    %v6066 = vunpack.c.l.b16 %v3515
    %v6067 = vunpack.c.h.b16 %v3515
    %v6068 = vunpack.c.l.b16 %v3516
    %v6069 = vunpack.c.h.b16 %v3516
    %v6070 = vunpack.c.l.b16 %v3517
    %v6071 = vunpack.c.h.b16 %v3517
    %v6072 = vunpack.c.l.b16 %v3518
    %v6073 = vunpack.c.h.b16 %v3518
    %v6074 = vunpack.c.l.b16 %v3519
    %v6075 = vunpack.c.h.b16 %v3519
    %v6076 = vunpack.c.l.b16 %v3520
    %v6077 = vunpack.c.h.b16 %v3520
    %v6078 = vunpack.c.l.b16 %v3521
    %v6079 = vunpack.c.h.b16 %v3521
    %v6080 = vunpack.c.l.b16 %v3522
    %v6081 = vunpack.c.h.b16 %v3522
    %v6082 = vunpack.c.l.b16 %v3523
    %v6083 = vunpack.c.h.b16 %v3523
    %v6084 = vunpack.c.l.b16 %v3524
    %v6085 = vunpack.c.h.b16 %v3524
    %v6086 = vunpack.c.l.b16 %v3525
    %v6087 = vunpack.c.h.b16 %v3525
    %v6088 = vunpack.c.l.b16 %v3526
    %v6089 = vunpack.c.h.b16 %v3526
    %v6090 = vunpack.c.l.b16 %v3527
    %v6091 = vunpack.c.h.b16 %v3527
    %v6092 = vunpack.c.l.b16 %v3528
    %v6093 = vunpack.c.h.b16 %v3528
    %v6094 = vunpack.c.l.b16 %v3529
    %v6095 = vunpack.c.h.b16 %v3529
    %v6096 = vunpack.c.l.b16 %v3530
    %v6097 = vunpack.c.h.b16 %v3530
    %v6098 = vunpack.c.l.b16 %v3531
    %v6099 = vunpack.c.h.b16 %v3531
    %v6100 = vunpack.c.l.b16 %v3532
    %v6101 = vunpack.c.h.b16 %v3532
    %v6102 = vunpack.c.l.b16 %v3533
    %v6103 = vunpack.c.h.b16 %v3533
    %v6104 = vunpack.c.l.b16 %v3534
    %v6105 = vunpack.c.h.b16 %v3534
    %v6106 = vunpack.c.l.b16 %v3535
    %v6107 = vunpack.c.h.b16 %v3535
    %v6108 = vunpack.c.l.b16 %v3536
    %v6109 = vunpack.c.h.b16 %v3536
    %v6110 = vunpack.c.l.b16 %v3537
    %v6111 = vunpack.c.h.b16 %v3537
    %v6112 = vunpack.c.l.b16 %v3538
    %v6113 = vunpack.c.h.b16 %v3538
    %v6114 = vunpack.c.l.b16 %v3539
    %v6115 = vunpack.c.h.b16 %v3539
    %v6116 = vunpack.c.l.b16 %v3540
    %v6117 = vunpack.c.h.b16 %v3540
    %v6118 = vunpack.c.l.b16 %v3541
    %v6119 = vunpack.c.h.b16 %v3541
    %v6120 = vunpack.c.l.b16 %v3542
    %v6121 = vunpack.c.h.b16 %v3542
    %v6122 = vunpack.c.l.b16 %v3543
    %v6123 = vunpack.c.h.b16 %v3543
    %v6124 = vunpack.c.l.b16 %v3544
    %v6125 = vunpack.c.h.b16 %v3544
    %v6126 = vunpack.c.l.b16 %v3545
    %v6127 = vunpack.c.h.b16 %v3545
    %v6128 = vunpack.c.l.b16 %v3546
    %v6129 = vunpack.c.h.b16 %v3546
    %v6130 = vunpack.c.l.b16 %v3547
    %v6131 = vunpack.c.h.b16 %v3547
    %v6132 = vunpack.c.l.b16 %v3548
    %v6133 = vunpack.c.h.b16 %v3548
    %v6134 = vunpack.c.l.b16 %v3549
    %v6135 = vunpack.c.h.b16 %v3549
    %v6136 = vunpack.c.l.b16 %v3550
    %v6137 = vunpack.c.h.b16 %v3550
    %v6138 = vunpack.c.l.b16 %v3551
    %v6139 = vunpack.c.h.b16 %v3551
    %v6140 = vunpack.c.l.b16 %v3552
    %v6141 = vunpack.c.h.b16 %v3552
    %v6142 = vunpack.c.l.b16 %v3553
    %v6143 = vunpack.c.h.b16 %v3553
    %v6144 = vunpack.c.l.b16 %v3554
    %v6145 = vunpack.c.h.b16 %v3554
    %v6146 = vunpack.c.l.b16 %v3555
    %v6147 = vunpack.c.h.b16 %v3555
    %v6148 = vunpack.c.l.b16 %v3556
    %v6149 = vunpack.c.h.b16 %v3556
    %v6150 = vunpack.c.l.b16 %v3557
    %v6151 = vunpack.c.h.b16 %v3557
    %v6152 = vunpack.c.l.b16 %v3558
    %v6153 = vunpack.c.h.b16 %v3558
    %v6154 = vunpack.c.l.b16 %v3559
    %v6155 = vunpack.c.h.b16 %v3559
    %v6156 = vunpack.c.l.b16 %v3560
    %v6157 = vunpack.c.h.b16 %v3560
    %v6158 = vunpack.c.l.b16 %v3561
    %v6159 = vunpack.c.h.b16 %v3561
    %v6160 = vunpack.c.l.b16 %v3562
    %v6161 = vunpack.c.h.b16 %v3562
    %v6162 = vunpack.c.l.b16 %v3563
    %v6163 = vunpack.c.h.b16 %v3563
    %v6164 = vunpack.c.l.b16 %v3564
    %v6165 = vunpack.c.h.b16 %v3564
    %v6166 = vunpack.c.l.b16 %v3565
    %v6167 = vunpack.c.h.b16 %v3565
    %v6168 = vunpack.c.l.b16 %v3566
    %v6169 = vunpack.c.h.b16 %v3566
    %v6170 = vunpack.c.l.b16 %v3567
    %v6171 = vunpack.c.h.b16 %v3567
    %v6172 = vunpack.c.l.b16 %v3568
    %v6173 = vunpack.c.h.b16 %v3568
    %v6174 = vunpack.c.l.b16 %v3569
    %v6175 = vunpack.c.h.b16 %v3569
    %v6176 = vunpack.c.l.b16 %v3570
    %v6177 = vunpack.c.h.b16 %v3570
    %v6178 = vunpack.c.l.b16 %v3571
    %v6179 = vunpack.c.h.b16 %v3571
    %v6180 = vunpack.c.l.b16 %v3572
    %v6181 = vunpack.c.h.b16 %v3572
    %v6182 = vunpack.c.l.b16 %v3573
    %v6183 = vunpack.c.h.b16 %v3573
    %v6184 = vunpack.c.l.b16 %v3574
    %v6185 = vunpack.c.h.b16 %v3574
    %v6186 = vunpack.c.l.b16 %v3575
    %v6187 = vunpack.c.h.b16 %v3575
    %v6188 = vunpack.c.l.b16 %v3576
    %v6189 = vunpack.c.h.b16 %v3576
    %v6190 = vunpack.c.l.b16 %v3577
    %v6191 = vunpack.c.h.b16 %v3577
    %v6192 = vunpack.c.l.b16 %v3578
    %v6193 = vunpack.c.h.b16 %v3578
    %v6194 = vunpack.c.l.b16 %v3579
    %v6195 = vunpack.c.h.b16 %v3579
    %v6196 = vunpack.c.l.b16 %v3580
    %v6197 = vunpack.c.h.b16 %v3580
    %v6198 = vunpack.c.l.b16 %v3581
    %v6199 = vunpack.c.h.b16 %v3581
    %v6200 = vunpack.c.l.b16 %v3582
    %v6201 = vunpack.c.h.b16 %v3582
    %v6202 = vunpack.c.l.b16 %v3583
    %v6203 = vunpack.c.h.b16 %v3583
    %v6204 = vunpack.c.l.b16 %v3584
    %v6205 = vunpack.c.h.b16 %v3584
    %v6206 = vunpack.c.l.b16 %v3585
    %v6207 = vunpack.c.h.b16 %v3585
    %v6208 = vunpack.c.l.b16 %v3586
    %v6209 = vunpack.c.h.b16 %v3586
    %v6210 = vunpack.c.l.b16 %v3587
    %v6211 = vunpack.c.h.b16 %v3587
    %v6212 = vunpack.c.l.b16 %v3588
    %v6213 = vunpack.c.h.b16 %v3588
    %v6214 = vunpack.c.l.b16 %v3589
    %v6215 = vunpack.c.h.b16 %v3589
    %v6216 = vunpack.c.l.b16 %v3590
    %v6217 = vunpack.c.h.b16 %v3590
    %v6218 = vunpack.c.l.b16 %v3591
    %v6219 = vunpack.c.h.b16 %v3591
    %v6220 = vunpack.c.l.b16 %v3592
    %v6221 = vunpack.c.h.b16 %v3592
    %v6222 = vunpack.c.l.b16 %v3593
    %v6223 = vunpack.c.h.b16 %v3593
    %v6224 = vunpack.c.l.b16 %v3594
    %v6225 = vunpack.c.h.b16 %v3594
    %v6226 = vunpack.c.l.b16 %v3595
    %v6227 = vunpack.c.h.b16 %v3595
    %v6228 = vpack.c.b16 %v5720, %v5716
    %v6229 = vpack.c.b16 %v5721, %v5717
    %v6230 = vpack.c.b16 %v5722, %v5718
    %v6231 = vpack.c.b16 %v5723, %v5719
    %v6232 = vpack.c.b16 %v5728, %v5724
    %v6233 = vpack.c.b16 %v5729, %v5725
    %v6234 = vpack.c.b16 %v5730, %v5726
    %v6235 = vpack.c.b16 %v5731, %v5727
    %v6236 = vpack.c.b16 %v5736, %v5732
    %v6237 = vpack.c.b16 %v5737, %v5733
    %v6238 = vpack.c.b16 %v5738, %v5734
    %v6239 = vpack.c.b16 %v5739, %v5735
    %v6240 = vpack.c.b16 %v5744, %v5740
    %v6241 = vpack.c.b16 %v5745, %v5741
    %v6242 = vpack.c.b16 %v5746, %v5742
    %v6243 = vpack.c.b16 %v5747, %v5743
    %v6244 = vpack.c.b16 %v5752, %v5748
    %v6245 = vpack.c.b16 %v5753, %v5749
    %v6246 = vpack.c.b16 %v5754, %v5750
    %v6247 = vpack.c.b16 %v5755, %v5751
    %v6248 = vpack.c.b16 %v5760, %v5756
    %v6249 = vpack.c.b16 %v5761, %v5757
    %v6250 = vpack.c.b16 %v5762, %v5758
    %v6251 = vpack.c.b16 %v5763, %v5759
    %v6252 = vpack.c.b16 %v5768, %v5764
    %v6253 = vpack.c.b16 %v5769, %v5765
    %v6254 = vpack.c.b16 %v5770, %v5766
    %v6255 = vpack.c.b16 %v5771, %v5767
    %v6256 = vpack.c.b16 %v5776, %v5772
    %v6257 = vpack.c.b16 %v5777, %v5773
    %v6258 = vpack.c.b16 %v5778, %v5774
    %v6259 = vpack.c.b16 %v5779, %v5775
    %v6260 = vpack.c.b16 %v5784, %v5780
    %v6261 = vpack.c.b16 %v5785, %v5781
    %v6262 = vpack.c.b16 %v5786, %v5782
    %v6263 = vpack.c.b16 %v5787, %v5783
    %v6264 = vpack.c.b16 %v5792, %v5788
    %v6265 = vpack.c.b16 %v5793, %v5789
    %v6266 = vpack.c.b16 %v5794, %v5790
    %v6267 = vpack.c.b16 %v5795, %v5791
    %v6268 = vpack.c.b16 %v5800, %v5796
    %v6269 = vpack.c.b16 %v5801, %v5797
    %v6270 = vpack.c.b16 %v5802, %v5798
    %v6271 = vpack.c.b16 %v5803, %v5799
    %v6272 = vpack.c.b16 %v5808, %v5804
    %v6273 = vpack.c.b16 %v5809, %v5805
    %v6274 = vpack.c.b16 %v5810, %v5806
    %v6275 = vpack.c.b16 %v5811, %v5807
    %v6276 = vpack.c.b16 %v5816, %v5812
    %v6277 = vpack.c.b16 %v5817, %v5813
    %v6278 = vpack.c.b16 %v5818, %v5814
    %v6279 = vpack.c.b16 %v5819, %v5815
    %v6280 = vpack.c.b16 %v5824, %v5820
    %v6281 = vpack.c.b16 %v5825, %v5821
    %v6282 = vpack.c.b16 %v5826, %v5822
    %v6283 = vpack.c.b16 %v5827, %v5823
    %v6284 = vpack.c.b16 %v5832, %v5828
    %v6285 = vpack.c.b16 %v5833, %v5829
    %v6286 = vpack.c.b16 %v5834, %v5830
    %v6287 = vpack.c.b16 %v5835, %v5831
    %v6288 = vpack.c.b16 %v5840, %v5836
    %v6289 = vpack.c.b16 %v5841, %v5837
    %v6290 = vpack.c.b16 %v5842, %v5838
    %v6291 = vpack.c.b16 %v5843, %v5839
    %v6292 = vpack.c.b16 %v5848, %v5844
    %v6293 = vpack.c.b16 %v5849, %v5845
    %v6294 = vpack.c.b16 %v5850, %v5846
    %v6295 = vpack.c.b16 %v5851, %v5847
    %v6296 = vpack.c.b16 %v5856, %v5852
    %v6297 = vpack.c.b16 %v5857, %v5853
    %v6298 = vpack.c.b16 %v5858, %v5854
    %v6299 = vpack.c.b16 %v5859, %v5855
    %v6300 = vpack.c.b16 %v5864, %v5860
    %v6301 = vpack.c.b16 %v5865, %v5861
    %v6302 = vpack.c.b16 %v5866, %v5862
    %v6303 = vpack.c.b16 %v5867, %v5863
    %v6304 = vpack.c.b16 %v5872, %v5868
    %v6305 = vpack.c.b16 %v5873, %v5869
    %v6306 = vpack.c.b16 %v5874, %v5870
    %v6307 = vpack.c.b16 %v5875, %v5871
    %v6308 = vpack.c.b16 %v5880, %v5876
    %v6309 = vpack.c.b16 %v5881, %v5877
    %v6310 = vpack.c.b16 %v5882, %v5878
    %v6311 = vpack.c.b16 %v5883, %v5879
    %v6312 = vpack.c.b16 %v5888, %v5884
    %v6313 = vpack.c.b16 %v5889, %v5885
    %v6314 = vpack.c.b16 %v5890, %v5886
    %v6315 = vpack.c.b16 %v5891, %v5887
    %v6316 = vpack.c.b16 %v5896, %v5892
    %v6317 = vpack.c.b16 %v5897, %v5893
    %v6318 = vpack.c.b16 %v5898, %v5894
    %v6319 = vpack.c.b16 %v5899, %v5895
    %v6320 = vpack.c.b16 %v5904, %v5900
    %v6321 = vpack.c.b16 %v5905, %v5901
    %v6322 = vpack.c.b16 %v5906, %v5902
    %v6323 = vpack.c.b16 %v5907, %v5903
    %v6324 = vpack.c.b16 %v5912, %v5908
    %v6325 = vpack.c.b16 %v5913, %v5909
    %v6326 = vpack.c.b16 %v5914, %v5910
    %v6327 = vpack.c.b16 %v5915, %v5911
    %v6328 = vpack.c.b16 %v5920, %v5916
    %v6329 = vpack.c.b16 %v5921, %v5917
    %v6330 = vpack.c.b16 %v5922, %v5918
    %v6331 = vpack.c.b16 %v5923, %v5919
    %v6332 = vpack.c.b16 %v5928, %v5924
    %v6333 = vpack.c.b16 %v5929, %v5925
    %v6334 = vpack.c.b16 %v5930, %v5926
    %v6335 = vpack.c.b16 %v5931, %v5927
    %v6336 = vpack.c.b16 %v5936, %v5932
    %v6337 = vpack.c.b16 %v5937, %v5933
    %v6338 = vpack.c.b16 %v5938, %v5934
    %v6339 = vpack.c.b16 %v5939, %v5935
    %v6340 = vpack.c.b16 %v5944, %v5940
    %v6341 = vpack.c.b16 %v5945, %v5941
    %v6342 = vpack.c.b16 %v5946, %v5942
    %v6343 = vpack.c.b16 %v5947, %v5943
    %v6344 = vpack.c.b16 %v5952, %v5948
    %v6345 = vpack.c.b16 %v5953, %v5949
    %v6346 = vpack.c.b16 %v5954, %v5950
    %v6347 = vpack.c.b16 %v5955, %v5951
    %v6348 = vpack.c.b16 %v5960, %v5956
    %v6349 = vpack.c.b16 %v5961, %v5957
    %v6350 = vpack.c.b16 %v5962, %v5958
    %v6351 = vpack.c.b16 %v5963, %v5959
    %v6352 = vpack.c.b16 %v5968, %v5964
    %v6353 = vpack.c.b16 %v5969, %v5965
    %v6354 = vpack.c.b16 %v5970, %v5966
    %v6355 = vpack.c.b16 %v5971, %v5967
    %v6356 = vpack.c.b16 %v5976, %v5972
    %v6357 = vpack.c.b16 %v5977, %v5973
    %v6358 = vpack.c.b16 %v5978, %v5974
    %v6359 = vpack.c.b16 %v5979, %v5975
    %v6360 = vpack.c.b16 %v5984, %v5980
    %v6361 = vpack.c.b16 %v5985, %v5981
    %v6362 = vpack.c.b16 %v5986, %v5982
    %v6363 = vpack.c.b16 %v5987, %v5983
    %v6364 = vpack.c.b16 %v5992, %v5988
    %v6365 = vpack.c.b16 %v5993, %v5989
    %v6366 = vpack.c.b16 %v5994, %v5990
    %v6367 = vpack.c.b16 %v5995, %v5991
    %v6368 = vpack.c.b16 %v6000, %v5996
    %v6369 = vpack.c.b16 %v6001, %v5997
    %v6370 = vpack.c.b16 %v6002, %v5998
    %v6371 = vpack.c.b16 %v6003, %v5999
    %v6372 = vpack.c.b16 %v6008, %v6004
    %v6373 = vpack.c.b16 %v6009, %v6005
    %v6374 = vpack.c.b16 %v6010, %v6006
    %v6375 = vpack.c.b16 %v6011, %v6007
    %v6376 = vpack.c.b16 %v6016, %v6012
    %v6377 = vpack.c.b16 %v6017, %v6013
    %v6378 = vpack.c.b16 %v6018, %v6014
    %v6379 = vpack.c.b16 %v6019, %v6015
    %v6380 = vpack.c.b16 %v6024, %v6020
    %v6381 = vpack.c.b16 %v6025, %v6021
    %v6382 = vpack.c.b16 %v6026, %v6022
    %v6383 = vpack.c.b16 %v6027, %v6023
    %v6384 = vpack.c.b16 %v6032, %v6028
    %v6385 = vpack.c.b16 %v6033, %v6029
    %v6386 = vpack.c.b16 %v6034, %v6030
    %v6387 = vpack.c.b16 %v6035, %v6031
    %v6388 = vpack.c.b16 %v6040, %v6036
    %v6389 = vpack.c.b16 %v6041, %v6037
    %v6390 = vpack.c.b16 %v6042, %v6038
    %v6391 = vpack.c.b16 %v6043, %v6039
    %v6392 = vpack.c.b16 %v6048, %v6044
    %v6393 = vpack.c.b16 %v6049, %v6045
    %v6394 = vpack.c.b16 %v6050, %v6046
    %v6395 = vpack.c.b16 %v6051, %v6047
    %v6396 = vpack.c.b16 %v6056, %v6052
    %v6397 = vpack.c.b16 %v6057, %v6053
    %v6398 = vpack.c.b16 %v6058, %v6054
    %v6399 = vpack.c.b16 %v6059, %v6055
    %v6400 = vpack.c.b16 %v6064, %v6060
    %v6401 = vpack.c.b16 %v6065, %v6061
    %v6402 = vpack.c.b16 %v6066, %v6062
    %v6403 = vpack.c.b16 %v6067, %v6063
    %v6404 = vpack.c.b16 %v6072, %v6068
    %v6405 = vpack.c.b16 %v6073, %v6069
    %v6406 = vpack.c.b16 %v6074, %v6070
    %v6407 = vpack.c.b16 %v6075, %v6071
    %v6408 = vpack.c.b16 %v6080, %v6076
    %v6409 = vpack.c.b16 %v6081, %v6077
    %v6410 = vpack.c.b16 %v6082, %v6078
    %v6411 = vpack.c.b16 %v6083, %v6079
    %v6412 = vpack.c.b16 %v6088, %v6084
    %v6413 = vpack.c.b16 %v6089, %v6085
    %v6414 = vpack.c.b16 %v6090, %v6086
    %v6415 = vpack.c.b16 %v6091, %v6087
    %v6416 = vpack.c.b16 %v6096, %v6092
    %v6417 = vpack.c.b16 %v6097, %v6093
    %v6418 = vpack.c.b16 %v6098, %v6094
    %v6419 = vpack.c.b16 %v6099, %v6095
    %v6420 = vpack.c.b16 %v6104, %v6100
    %v6421 = vpack.c.b16 %v6105, %v6101
    %v6422 = vpack.c.b16 %v6106, %v6102
    %v6423 = vpack.c.b16 %v6107, %v6103
    %v6424 = vpack.c.b16 %v6112, %v6108
    %v6425 = vpack.c.b16 %v6113, %v6109
    %v6426 = vpack.c.b16 %v6114, %v6110
    %v6427 = vpack.c.b16 %v6115, %v6111
    %v6428 = vpack.c.b16 %v6120, %v6116
    %v6429 = vpack.c.b16 %v6121, %v6117
    %v6430 = vpack.c.b16 %v6122, %v6118
    %v6431 = vpack.c.b16 %v6123, %v6119
    %v6432 = vpack.c.b16 %v6128, %v6124
    %v6433 = vpack.c.b16 %v6129, %v6125
    %v6434 = vpack.c.b16 %v6130, %v6126
    %v6435 = vpack.c.b16 %v6131, %v6127
    %v6436 = vpack.c.b16 %v6136, %v6132
    %v6437 = vpack.c.b16 %v6137, %v6133
    %v6438 = vpack.c.b16 %v6138, %v6134
    %v6439 = vpack.c.b16 %v6139, %v6135
    %v6440 = vpack.c.b16 %v6144, %v6140
    %v6441 = vpack.c.b16 %v6145, %v6141
    %v6442 = vpack.c.b16 %v6146, %v6142
    %v6443 = vpack.c.b16 %v6147, %v6143
    %v6444 = vpack.c.b16 %v6152, %v6148
    %v6445 = vpack.c.b16 %v6153, %v6149
    %v6446 = vpack.c.b16 %v6154, %v6150
    %v6447 = vpack.c.b16 %v6155, %v6151
    %v6448 = vpack.c.b16 %v6160, %v6156
    %v6449 = vpack.c.b16 %v6161, %v6157
    %v6450 = vpack.c.b16 %v6162, %v6158
    %v6451 = vpack.c.b16 %v6163, %v6159
    %v6452 = vpack.c.b16 %v6168, %v6164
    %v6453 = vpack.c.b16 %v6169, %v6165
    %v6454 = vpack.c.b16 %v6170, %v6166
    %v6455 = vpack.c.b16 %v6171, %v6167
    %v6456 = vpack.c.b16 %v6176, %v6172
    %v6457 = vpack.c.b16 %v6177, %v6173
    %v6458 = vpack.c.b16 %v6178, %v6174
    %v6459 = vpack.c.b16 %v6179, %v6175
    %v6460 = vpack.c.b16 %v6184, %v6180
    %v6461 = vpack.c.b16 %v6185, %v6181
    %v6462 = vpack.c.b16 %v6186, %v6182
    %v6463 = vpack.c.b16 %v6187, %v6183
    %v6464 = vpack.c.b16 %v6192, %v6188
    %v6465 = vpack.c.b16 %v6193, %v6189
    %v6466 = vpack.c.b16 %v6194, %v6190
    %v6467 = vpack.c.b16 %v6195, %v6191
    %v6468 = vpack.c.b16 %v6200, %v6196
    %v6469 = vpack.c.b16 %v6201, %v6197
    %v6470 = vpack.c.b16 %v6202, %v6198
    %v6471 = vpack.c.b16 %v6203, %v6199
    %v6472 = vpack.c.b16 %v6208, %v6204
    %v6473 = vpack.c.b16 %v6209, %v6205
    %v6474 = vpack.c.b16 %v6210, %v6206
    %v6475 = vpack.c.b16 %v6211, %v6207
    %v6476 = vpack.c.b16 %v6216, %v6212
    %v6477 = vpack.c.b16 %v6217, %v6213
    %v6478 = vpack.c.b16 %v6218, %v6214
    %v6479 = vpack.c.b16 %v6219, %v6215
    %v6480 = vpack.c.b16 %v6224, %v6220
    %v6481 = vpack.c.b16 %v6225, %v6221
    %v6482 = vpack.c.b16 %v6226, %v6222
    %v6483 = vpack.c.b16 %v6227, %v6223
    %6740 = vmatprep.subr.bf16.mxu0 %v6257
    %6741 = vmatpush1.bf16.msra.mxu0 %v6256
    %6742 = vmatprep.subr.bf16.mxu0 %v6253
    %6743 = vmatpush1.bf16.msra.mxu0 %v6252
    %6744 = vmatprep.subr.bf16.mxu0 %v6249
    %6745 = vmatpush1.bf16.msra.mxu0 %v6248
    %6746 = vmatprep.subr.bf16.mxu0 %v6245
    %6747 = vmatpush1.bf16.msra.mxu0 %v6244
    %6748 = vmatprep.subr.bf16.mxu0 %v6241
    %6749 = vmatpush1.bf16.msra.mxu0 %v6240
    %6750 = vmatprep.subr.bf16.mxu0 %v6237
    %6751 = vmatpush1.bf16.msra.mxu0 %v6236
    %6752 = vmatprep.subr.bf16.mxu0 %v6233
    %6753 = vmatpush1.bf16.msra.mxu0 %v6232
    %6754 = vmatprep.subr.bf16.mxu0 %v6229
    %6755 = vmatpush1.bf16.msra.mxu0 %v6228
    %6756 = vmatprep.subr.bf16.mxu0 %v6289
    %6757 = vmatpush2.bf16.msra.mxu0 %v6288
    %6758 = vmatprep.subr.bf16.mxu0 %v6285
    %6759 = vmatpush2.bf16.msra.mxu0 %v6284
    %6760 = vmatprep.subr.bf16.mxu0 %v6281
    %6761 = vmatpush2.bf16.msra.mxu0 %v6280
    %6762 = vmatprep.subr.bf16.mxu0 %v6277
    %6763 = vmatpush2.bf16.msra.mxu0 %v6276
    %6764 = vmatprep.subr.bf16.mxu0 %v6273
    %6765 = vmatpush2.bf16.msra.mxu0 %v6272
    %6766 = vmatprep.subr.bf16.mxu0 %v6269
    %6767 = vmatpush2.bf16.msra.mxu0 %v6268
    %6768 = vmatprep.subr.bf16.mxu0 %v6265
    %6769 = vmatpush2.bf16.msra.mxu0 %v6264
    %6770 = vmatprep.subr.bf16.mxu0 %v6261
    %6771 = vmatpush2.bf16.msra.mxu0 %v6260
    %6772 = vmatprep.mubr.bf16.mxu0 %v3317
    %6773 = vmatmul.mubr.bf16.gmra.mxu0 %v3316
    %v6774 = vpop.f32.mrf.mxu0
    %v6775 = vadd.f32 %v5290, %v6774
    %v6776 = vpop.f32.mrf.mxu0
    %v6777 = vadd.f32 %v5292, %v6776
    %v6778 = vpop.f32.mrf.mxu0
    %v6779 = vpop.f32.mrf.mxu0
    %6780 = vdwg.mxu0
    %6781 = vmatprep.subr.bf16.mxu0 %v6321
    %6782 = vmatpush1.bf16.msra.mxu0 %v6320
    %6783 = vmatprep.subr.bf16.mxu0 %v6317
    %6784 = vmatpush1.bf16.msra.mxu0 %v6316
    %6785 = vmatprep.subr.bf16.mxu0 %v6313
    %6786 = vmatpush1.bf16.msra.mxu0 %v6312
    %6787 = vmatprep.subr.bf16.mxu0 %v6309
    %6788 = vmatpush1.bf16.msra.mxu0 %v6308
    %6789 = vmatprep.subr.bf16.mxu0 %v6305
    %6790 = vmatpush1.bf16.msra.mxu0 %v6304
    %6791 = vmatprep.subr.bf16.mxu0 %v6301
    %6792 = vmatpush1.bf16.msra.mxu0 %v6300
    %6793 = vmatprep.subr.bf16.mxu0 %v6297
    %6794 = vmatpush1.bf16.msra.mxu0 %v6296
    %6795 = vmatprep.subr.bf16.mxu0 %v6293
    %6796 = vmatpush1.bf16.msra.mxu0 %v6292
    %6797 = vmatprep.subr.bf16.mxu0 %v6353
    %6798 = vmatpush2.bf16.msra.mxu0 %v6352
    %6799 = vmatprep.subr.bf16.mxu0 %v6349
    %6800 = vmatpush2.bf16.msra.mxu0 %v6348
    %6801 = vmatprep.subr.bf16.mxu0 %v6345
    %6802 = vmatpush2.bf16.msra.mxu0 %v6344
    %6803 = vmatprep.subr.bf16.mxu0 %v6341
    %6804 = vmatpush2.bf16.msra.mxu0 %v6340
    %6805 = vmatprep.subr.bf16.mxu0 %v6337
    %6806 = vmatpush2.bf16.msra.mxu0 %v6336
    %6807 = vmatprep.subr.bf16.mxu0 %v6333
    %6808 = vmatpush2.bf16.msra.mxu0 %v6332
    %6809 = vmatprep.subr.bf16.mxu0 %v6329
    %6810 = vmatpush2.bf16.msra.mxu0 %v6328
    %6811 = vmatprep.subr.bf16.mxu0 %v6325
    %6812 = vmatpush2.bf16.msra.mxu0 %v6324
    %6813 = vmatprep.mubr.bf16.mxu0 %v3319
    %6814 = vmatmul.mubr.bf16.gmra.mxu0 %v3318
    %v6815 = vpop.f32.mrf.mxu0
    %v6816 = vadd.f32 %v6775, %v6815
    %v6817 = vpop.f32.mrf.mxu0
    %v6818 = vadd.f32 %v6777, %v6817
    %v6819 = vpop.f32.mrf.mxu0
    %v6820 = vpop.f32.mrf.mxu0
    %6821 = vdwg.mxu0
    %6822 = vmatprep.subr.bf16.mxu0 %v6385
    %6823 = vmatpush1.bf16.msra.mxu0 %v6384
    %6824 = vmatprep.subr.bf16.mxu0 %v6381
    %6825 = vmatpush1.bf16.msra.mxu0 %v6380
    %6826 = vmatprep.subr.bf16.mxu0 %v6377
    %6827 = vmatpush1.bf16.msra.mxu0 %v6376
    %6828 = vmatprep.subr.bf16.mxu0 %v6373
    %6829 = vmatpush1.bf16.msra.mxu0 %v6372
    %6830 = vmatprep.subr.bf16.mxu0 %v6369
    %6831 = vmatpush1.bf16.msra.mxu0 %v6368
    %6832 = vmatprep.subr.bf16.mxu0 %v6365
    %6833 = vmatpush1.bf16.msra.mxu0 %v6364
    %6834 = vmatprep.subr.bf16.mxu0 %v6361
    %6835 = vmatpush1.bf16.msra.mxu0 %v6360
    %6836 = vmatprep.subr.bf16.mxu0 %v6357
    %6837 = vmatpush1.bf16.msra.mxu0 %v6356
    %6838 = vmatprep.subr.bf16.mxu0 %v6417
    %6839 = vmatpush2.bf16.msra.mxu0 %v6416
    %6840 = vmatprep.subr.bf16.mxu0 %v6413
    %6841 = vmatpush2.bf16.msra.mxu0 %v6412
    %6842 = vmatprep.subr.bf16.mxu0 %v6409
    %6843 = vmatpush2.bf16.msra.mxu0 %v6408
    %6844 = vmatprep.subr.bf16.mxu0 %v6405
    %6845 = vmatpush2.bf16.msra.mxu0 %v6404
    %6846 = vmatprep.subr.bf16.mxu0 %v6401
    %6847 = vmatpush2.bf16.msra.mxu0 %v6400
    %6848 = vmatprep.subr.bf16.mxu0 %v6397
    %6849 = vmatpush2.bf16.msra.mxu0 %v6396
    %6850 = vmatprep.subr.bf16.mxu0 %v6393
    %6851 = vmatpush2.bf16.msra.mxu0 %v6392
    %6852 = vmatprep.subr.bf16.mxu0 %v6389
    %6853 = vmatpush2.bf16.msra.mxu0 %v6388
    %6854 = vmatprep.mubr.bf16.mxu0 %v3321
    %6855 = vmatmul.mubr.bf16.gmra.mxu0 %v3320
    %v6856 = vpop.f32.mrf.mxu0
    %v6857 = vadd.f32 %v6816, %v6856
    %v6858 = vpop.f32.mrf.mxu0
    %v6859 = vadd.f32 %v6818, %v6858
    %v6860 = vpop.f32.mrf.mxu0
    %v6861 = vpop.f32.mrf.mxu0
    %6862 = vdwg.mxu0
    %6863 = vmatprep.subr.bf16.mxu0 %v6449
    %6864 = vmatpush1.bf16.msra.mxu0 %v6448
    %6865 = vmatprep.subr.bf16.mxu0 %v6445
    %6866 = vmatpush1.bf16.msra.mxu0 %v6444
    %6867 = vmatprep.subr.bf16.mxu0 %v6441
    %6868 = vmatpush1.bf16.msra.mxu0 %v6440
    %6869 = vmatprep.subr.bf16.mxu0 %v6437
    %6870 = vmatpush1.bf16.msra.mxu0 %v6436
    %6871 = vmatprep.subr.bf16.mxu0 %v6433
    %6872 = vmatpush1.bf16.msra.mxu0 %v6432
    %6873 = vmatprep.subr.bf16.mxu0 %v6429
    %6874 = vmatpush1.bf16.msra.mxu0 %v6428
    %6875 = vmatprep.subr.bf16.mxu0 %v6425
    %6876 = vmatpush1.bf16.msra.mxu0 %v6424
    %6877 = vmatprep.subr.bf16.mxu0 %v6421
    %6878 = vmatpush1.bf16.msra.mxu0 %v6420
    %6879 = vmatprep.subr.bf16.mxu0 %v6481
    %6880 = vmatpush2.bf16.msra.mxu0 %v6480
    %6881 = vmatprep.subr.bf16.mxu0 %v6477
    %6882 = vmatpush2.bf16.msra.mxu0 %v6476
    %6883 = vmatprep.subr.bf16.mxu0 %v6473
    %6884 = vmatpush2.bf16.msra.mxu0 %v6472
    %6885 = vmatprep.subr.bf16.mxu0 %v6469
    %6886 = vmatpush2.bf16.msra.mxu0 %v6468
    %6887 = vmatprep.subr.bf16.mxu0 %v6465
    %6888 = vmatpush2.bf16.msra.mxu0 %v6464
    %6889 = vmatprep.subr.bf16.mxu0 %v6461
    %6890 = vmatpush2.bf16.msra.mxu0 %v6460
    %6891 = vmatprep.subr.bf16.mxu0 %v6457
    %6892 = vmatpush2.bf16.msra.mxu0 %v6456
    %6893 = vmatprep.subr.bf16.mxu0 %v6453
    %6894 = vmatpush2.bf16.msra.mxu0 %v6452
    %6895 = vmatprep.mubr.bf16.mxu0 %v3323
    %6896 = vmatmul.mubr.bf16.gmra.mxu0 %v3322
    %v6897 = vpop.f32.mrf.mxu0
    %v6898 = vadd.f32 %v6857, %v6897
    %v6899 = vpop.f32.mrf.mxu0
    %v6900 = vadd.f32 %v6859, %v6899
    %v6901 = vpop.f32.mrf.mxu0
    %v6902 = vpop.f32.mrf.mxu0
    %6903 = vdwg.mxu0
    %6904 = vmatprep.subr.bf16.mxu0 %v6259
    %6905 = vmatpush1.bf16.msra.mxu0 %v6258
    %6906 = vmatprep.subr.bf16.mxu0 %v6255
    %6907 = vmatpush1.bf16.msra.mxu0 %v6254
    %6908 = vmatprep.subr.bf16.mxu0 %v6251
    %6909 = vmatpush1.bf16.msra.mxu0 %v6250
    %6910 = vmatprep.subr.bf16.mxu0 %v6247
    %6911 = vmatpush1.bf16.msra.mxu0 %v6246
    %6912 = vmatprep.subr.bf16.mxu0 %v6243
    %6913 = vmatpush1.bf16.msra.mxu0 %v6242
    %6914 = vmatprep.subr.bf16.mxu0 %v6239
    %6915 = vmatpush1.bf16.msra.mxu0 %v6238
    %6916 = vmatprep.subr.bf16.mxu0 %v6235
    %6917 = vmatpush1.bf16.msra.mxu0 %v6234
    %6918 = vmatprep.subr.bf16.mxu0 %v6231
    %6919 = vmatpush1.bf16.msra.mxu0 %v6230
    %6920 = vmatprep.subr.bf16.mxu0 %v6291
    %6921 = vmatpush2.bf16.msra.mxu0 %v6290
    %6922 = vmatprep.subr.bf16.mxu0 %v6287
    %6923 = vmatpush2.bf16.msra.mxu0 %v6286
    %6924 = vmatprep.subr.bf16.mxu0 %v6283
    %6925 = vmatpush2.bf16.msra.mxu0 %v6282
    %6926 = vmatprep.subr.bf16.mxu0 %v6279
    %6927 = vmatpush2.bf16.msra.mxu0 %v6278
    %6928 = vmatprep.subr.bf16.mxu0 %v6275
    %6929 = vmatpush2.bf16.msra.mxu0 %v6274
    %6930 = vmatprep.subr.bf16.mxu0 %v6271
    %6931 = vmatpush2.bf16.msra.mxu0 %v6270
    %6932 = vmatprep.subr.bf16.mxu0 %v6267
    %6933 = vmatpush2.bf16.msra.mxu0 %v6266
    %6934 = vmatprep.subr.bf16.mxu0 %v6263
    %6935 = vmatpush2.bf16.msra.mxu0 %v6262
    %6936 = vmatprep.mubr.bf16.mxu0 %v3317
    %6937 = vmatmul.mubr.bf16.gmra.mxu0 %v3316
    %v6938 = vpop.f32.mrf.mxu0
    %v6939 = vadd.f32 %v5454, %v6938
    %v6940 = vpop.f32.mrf.mxu0
    %v6941 = vadd.f32 %v5456, %v6940
    %v6942 = vpop.f32.mrf.mxu0
    %v6943 = vpop.f32.mrf.mxu0
    %6944 = vdwg.mxu0
    %6945 = vmatprep.subr.bf16.mxu0 %v6323
    %6946 = vmatpush1.bf16.msra.mxu0 %v6322
    %6947 = vmatprep.subr.bf16.mxu0 %v6319
    %6948 = vmatpush1.bf16.msra.mxu0 %v6318
    %6949 = vmatprep.subr.bf16.mxu0 %v6315
    %6950 = vmatpush1.bf16.msra.mxu0 %v6314
    %6951 = vmatprep.subr.bf16.mxu0 %v6311
    %6952 = vmatpush1.bf16.msra.mxu0 %v6310
    %6953 = vmatprep.subr.bf16.mxu0 %v6307
    %6954 = vmatpush1.bf16.msra.mxu0 %v6306
    %6955 = vmatprep.subr.bf16.mxu0 %v6303
    %6956 = vmatpush1.bf16.msra.mxu0 %v6302
    %6957 = vmatprep.subr.bf16.mxu0 %v6299
    %6958 = vmatpush1.bf16.msra.mxu0 %v6298
    %6959 = vmatprep.subr.bf16.mxu0 %v6295
    %6960 = vmatpush1.bf16.msra.mxu0 %v6294
    %6961 = vmatprep.subr.bf16.mxu0 %v6355
    %6962 = vmatpush2.bf16.msra.mxu0 %v6354
    %6963 = vmatprep.subr.bf16.mxu0 %v6351
    %6964 = vmatpush2.bf16.msra.mxu0 %v6350
    %6965 = vmatprep.subr.bf16.mxu0 %v6347
    %6966 = vmatpush2.bf16.msra.mxu0 %v6346
    %6967 = vmatprep.subr.bf16.mxu0 %v6343
    %6968 = vmatpush2.bf16.msra.mxu0 %v6342
    %6969 = vmatprep.subr.bf16.mxu0 %v6339
    %6970 = vmatpush2.bf16.msra.mxu0 %v6338
    %6971 = vmatprep.subr.bf16.mxu0 %v6335
    %6972 = vmatpush2.bf16.msra.mxu0 %v6334
    %6973 = vmatprep.subr.bf16.mxu0 %v6331
    %6974 = vmatpush2.bf16.msra.mxu0 %v6330
    %6975 = vmatprep.subr.bf16.mxu0 %v6327
    %6976 = vmatpush2.bf16.msra.mxu0 %v6326
    %6977 = vmatprep.mubr.bf16.mxu0 %v3319
    %6978 = vmatmul.mubr.bf16.gmra.mxu0 %v3318
    %v6979 = vpop.f32.mrf.mxu0
    %v6980 = vadd.f32 %v6939, %v6979
    %v6981 = vpop.f32.mrf.mxu0
    %v6982 = vadd.f32 %v6941, %v6981
    %v6983 = vpop.f32.mrf.mxu0
    %v6984 = vpop.f32.mrf.mxu0
    %6985 = vdwg.mxu0
    %6986 = vmatprep.subr.bf16.mxu0 %v6387
    %6987 = vmatpush1.bf16.msra.mxu0 %v6386
    %6988 = vmatprep.subr.bf16.mxu0 %v6383
    %6989 = vmatpush1.bf16.msra.mxu0 %v6382
    %6990 = vmatprep.subr.bf16.mxu0 %v6379
    %6991 = vmatpush1.bf16.msra.mxu0 %v6378
    %6992 = vmatprep.subr.bf16.mxu0 %v6375
    %6993 = vmatpush1.bf16.msra.mxu0 %v6374
    %6994 = vmatprep.subr.bf16.mxu0 %v6371
    %6995 = vmatpush1.bf16.msra.mxu0 %v6370
    %6996 = vmatprep.subr.bf16.mxu0 %v6367
    %6997 = vmatpush1.bf16.msra.mxu0 %v6366
    %6998 = vmatprep.subr.bf16.mxu0 %v6363
    %6999 = vmatpush1.bf16.msra.mxu0 %v6362
    %7000 = vmatprep.subr.bf16.mxu0 %v6359
    %7001 = vmatpush1.bf16.msra.mxu0 %v6358
    %7002 = vmatprep.subr.bf16.mxu0 %v6419
    %7003 = vmatpush2.bf16.msra.mxu0 %v6418
    %7004 = vmatprep.subr.bf16.mxu0 %v6415
    %7005 = vmatpush2.bf16.msra.mxu0 %v6414
    %7006 = vmatprep.subr.bf16.mxu0 %v6411
    %7007 = vmatpush2.bf16.msra.mxu0 %v6410
    %7008 = vmatprep.subr.bf16.mxu0 %v6407
    %7009 = vmatpush2.bf16.msra.mxu0 %v6406
    %7010 = vmatprep.subr.bf16.mxu0 %v6403
    %7011 = vmatpush2.bf16.msra.mxu0 %v6402
    %7012 = vmatprep.subr.bf16.mxu0 %v6399
    %7013 = vmatpush2.bf16.msra.mxu0 %v6398
    %7014 = vmatprep.subr.bf16.mxu0 %v6395
    %7015 = vmatpush2.bf16.msra.mxu0 %v6394
    %7016 = vmatprep.subr.bf16.mxu0 %v6391
    %7017 = vmatpush2.bf16.msra.mxu0 %v6390
    %7018 = vmatprep.mubr.bf16.mxu0 %v3321
    %7019 = vmatmul.mubr.bf16.gmra.mxu0 %v3320
    %v7020 = vpop.f32.mrf.mxu0
    %v7021 = vadd.f32 %v6980, %v7020
    %v7022 = vpop.f32.mrf.mxu0
    %v7023 = vadd.f32 %v6982, %v7022
    %v7024 = vpop.f32.mrf.mxu0
    %v7025 = vpop.f32.mrf.mxu0
    %7026 = vdwg.mxu0
    %7027 = vmatprep.subr.bf16.mxu0 %v6451
    %7028 = vmatpush1.bf16.msra.mxu0 %v6450
    %7029 = vmatprep.subr.bf16.mxu0 %v6447
    %7030 = vmatpush1.bf16.msra.mxu0 %v6446
    %7031 = vmatprep.subr.bf16.mxu0 %v6443
    %7032 = vmatpush1.bf16.msra.mxu0 %v6442
    %7033 = vmatprep.subr.bf16.mxu0 %v6439
    %7034 = vmatpush1.bf16.msra.mxu0 %v6438
    %7035 = vmatprep.subr.bf16.mxu0 %v6435
    %7036 = vmatpush1.bf16.msra.mxu0 %v6434
    %7037 = vmatprep.subr.bf16.mxu0 %v6431
    %7038 = vmatpush1.bf16.msra.mxu0 %v6430
    %7039 = vmatprep.subr.bf16.mxu0 %v6427
    %7040 = vmatpush1.bf16.msra.mxu0 %v6426
    %7041 = vmatprep.subr.bf16.mxu0 %v6423
    %7042 = vmatpush1.bf16.msra.mxu0 %v6422
    %7043 = vmatprep.subr.bf16.mxu0 %v6483
    %7044 = vmatpush2.bf16.msra.mxu0 %v6482
    %7045 = vmatprep.subr.bf16.mxu0 %v6479
    %7046 = vmatpush2.bf16.msra.mxu0 %v6478
    %7047 = vmatprep.subr.bf16.mxu0 %v6475
    %7048 = vmatpush2.bf16.msra.mxu0 %v6474
    %7049 = vmatprep.subr.bf16.mxu0 %v6471
    %7050 = vmatpush2.bf16.msra.mxu0 %v6470
    %7051 = vmatprep.subr.bf16.mxu0 %v6467
    %7052 = vmatpush2.bf16.msra.mxu0 %v6466
    %7053 = vmatprep.subr.bf16.mxu0 %v6463
    %7054 = vmatpush2.bf16.msra.mxu0 %v6462
    %7055 = vmatprep.subr.bf16.mxu0 %v6459
    %7056 = vmatpush2.bf16.msra.mxu0 %v6458
    %7057 = vmatprep.subr.bf16.mxu0 %v6455
    %7058 = vmatpush2.bf16.msra.mxu0 %v6454
    %7059 = vmatprep.mubr.bf16.mxu0 %v3323
    %7060 = vmatmul.mubr.bf16.gmra.mxu0 %v3322
    %v7061 = vpop.f32.mrf.mxu0
    %v7062 = vadd.f32 %v7021, %v7061
    %v7063 = vpop.f32.mrf.mxu0
    %v7064 = vadd.f32 %v7023, %v7063
    %v7065 = vpop.f32.mrf.mxu0
    %v7066 = vpop.f32.mrf.mxu0
    %7067 = vdwg.mxu0
    %v7068 = vld [vmem:[%s5] sm:$0xf]
    %v7070 = vlaneseq
    %v7071 = vshrl.u32 %v7070, 7
    %v7072 = vsub.s32 0, %v7071
    %v7073 = vrot.slane %v7068, %v7072
    %v7074 = vlaneseq
    %v7075 = vshrl.u32 %v7074, 7
    %v7076 = vsub.s32 1, %v7075
    %v7077 = vrot.slane %v7068, %v7076
    %v7078 = vlaneseq
    %v7079 = vshrl.u32 %v7078, 7
    %v7080 = vsub.s32 2, %v7079
    %v7081 = vrot.slane %v7068, %v7080
    %v7082 = vlaneseq
    %v7083 = vshrl.u32 %v7082, 7
    %v7084 = vsub.s32 3, %v7083
    %v7085 = vrot.slane %v7068, %v7084
    %v7090 = vadd.f32 %v6898, %v7073
    %v7091 = vadd.f32 %v6900, %v7077
    %v7092 = vadd.f32 %v7062, %v7081
    %v7093 = vadd.f32 %v7064, %v7085
    %v7094 = vmax.f32 %v7090, 0.0
    %v7095 = vmax.f32 %v7091, 0.0
    %v7096 = vmax.f32 %v7092, 0.0
    %v7097 = vmax.f32 %v7093, 0.0
    %v7098 = vpack.c.bf16 %v7094, %v7094
    %v7099 = vpack.c.bf16 %v7095, %v7095
    %v7100 = vpack.c.bf16 %v7096, %v7096
    %v7101 = vpack.c.bf16 %v7097, %v7097
    %v7102 = vld [vmem:[%s6] sm:$0xf]
    %v7103 = vld [vmem:[%s6 + $0x4] sm:$0xf]
    %v7104 = vld [vmem:[%s6 + $0x8] sm:$0xf]
    %v7105 = vld [vmem:[%s6 + $0xc] sm:$0xf]
    %v7106 = vld [vmem:[%s6 + $0x10] sm:$0xf]
    %v7107 = vld [vmem:[%s6 + $0x14] sm:$0xf]
    %v7108 = vld [vmem:[%s6 + $0x18] sm:$0xf]
    %v7109 = vld [vmem:[%s6 + $0x1c] sm:$0xf]
    %v7110 = vld [vmem:[%s6 + $0x20] sm:$0xf]
    %v7111 = vld [vmem:[%s6 + $0x24] sm:$0xf]
    %v7112 = vld [vmem:[%s6 + $0x28] sm:$0xf]
    %v7113 = vld [vmem:[%s6 + $0x2c] sm:$0xf]
    %v7114 = vld [vmem:[%s6 + $0x30] sm:$0xf]
    %v7115 = vld [vmem:[%s6 + $0x34] sm:$0xf]
    %v7116 = vld [vmem:[%s6 + $0x38] sm:$0xf]
    %v7117 = vld [vmem:[%s6 + $0x3c] sm:$0xf]
    %v7118 = vld [vmem:[%s6 + $0x40] sm:$0xf]
    %v7119 = vld [vmem:[%s6 + $0x44] sm:$0xf]
    %v7120 = vld [vmem:[%s6 + $0x48] sm:$0xf]
    %v7121 = vld [vmem:[%s6 + $0x4c] sm:$0xf]
    %v7122 = vld [vmem:[%s6 + $0x50] sm:$0xf]
    %v7123 = vld [vmem:[%s6 + $0x54] sm:$0xf]
    %v7124 = vld [vmem:[%s6 + $0x58] sm:$0xf]
    %v7125 = vld [vmem:[%s6 + $0x5c] sm:$0xf]
    %v7126 = vld [vmem:[%s6 + $0x60] sm:$0xf]
    %v7127 = vld [vmem:[%s6 + $0x64] sm:$0xf]
    %v7128 = vld [vmem:[%s6 + $0x68] sm:$0xf]
    %v7129 = vld [vmem:[%s6 + $0x6c] sm:$0xf]
    %v7130 = vld [vmem:[%s6 + $0x70] sm:$0xf]
    %v7131 = vld [vmem:[%s6 + $0x74] sm:$0xf]
    %v7132 = vld [vmem:[%s6 + $0x78] sm:$0xf]
    %v7133 = vld [vmem:[%s6 + $0x7c] sm:$0xf]
    %v7134 = vld [vmem:[%s6 + $0x80] sm:$0xf]
    %v7135 = vld [vmem:[%s6 + $0x84] sm:$0xf]
    %v7136 = vld [vmem:[%s6 + $0x88] sm:$0xf]
    %v7137 = vld [vmem:[%s6 + $0x8c] sm:$0xf]
    %v7138 = vld [vmem:[%s6 + $0x90] sm:$0xf]
    %v7139 = vld [vmem:[%s6 + $0x94] sm:$0xf]
    %v7140 = vld [vmem:[%s6 + $0x98] sm:$0xf]
    %v7141 = vld [vmem:[%s6 + $0x9c] sm:$0xf]
    %v7142 = vld [vmem:[%s6 + $0xa0] sm:$0xf]
    %v7143 = vld [vmem:[%s6 + $0xa4] sm:$0xf]
    %v7144 = vld [vmem:[%s6 + $0xa8] sm:$0xf]
    %v7145 = vld [vmem:[%s6 + $0xac] sm:$0xf]
    %v7146 = vld [vmem:[%s6 + $0xb0] sm:$0xf]
    %v7147 = vld [vmem:[%s6 + $0xb4] sm:$0xf]
    %v7148 = vld [vmem:[%s6 + $0xb8] sm:$0xf]
    %v7149 = vld [vmem:[%s6 + $0xbc] sm:$0xf]
    %v7150 = vld [vmem:[%s6 + $0xc0] sm:$0xf]
    %v7151 = vld [vmem:[%s6 + $0xc4] sm:$0xf]
    %v7152 = vld [vmem:[%s6 + $0xc8] sm:$0xf]
    %v7153 = vld [vmem:[%s6 + $0xcc] sm:$0xf]
    %v7154 = vld [vmem:[%s6 + $0xd0] sm:$0xf]
    %v7155 = vld [vmem:[%s6 + $0xd4] sm:$0xf]
    %v7156 = vld [vmem:[%s6 + $0xd8] sm:$0xf]
    %v7157 = vld [vmem:[%s6 + $0xdc] sm:$0xf]
    %v7158 = vld [vmem:[%s6 + $0xe0] sm:$0xf]
    %v7159 = vld [vmem:[%s6 + $0xe4] sm:$0xf]
    %v7160 = vld [vmem:[%s6 + $0xe8] sm:$0xf]
    %v7161 = vld [vmem:[%s6 + $0xec] sm:$0xf]
    %v7162 = vld [vmem:[%s6 + $0xf0] sm:$0xf]
    %v7163 = vld [vmem:[%s6 + $0xf4] sm:$0xf]
    %v7164 = vld [vmem:[%s6 + $0xf8] sm:$0xf]
    %v7165 = vld [vmem:[%s6 + $0xfc] sm:$0xf]
    %v7166 = vld [vmem:[%s7] sm:$0x1]
    %v7168 = vlaneseq
    %v7169 = vshrl.u32 %v7168, 7
    %v7170 = vsub.s32 0, %v7169
    %v7171 = vrot.slane %v7166, %v7170
    %v7237 = vunpack.c.l.b16 %v7102
    %v7238 = vunpack.c.l.b16 %v7103
    %v7239 = vunpack.c.l.b16 %v7104
    %v7240 = vunpack.c.l.b16 %v7105
    %v7241 = vunpack.c.l.b16 %v7106
    %v7242 = vunpack.c.l.b16 %v7107
    %v7243 = vunpack.c.l.b16 %v7108
    %v7244 = vunpack.c.l.b16 %v7109
    %v7245 = vunpack.c.l.b16 %v7110
    %v7246 = vunpack.c.l.b16 %v7111
    %v7247 = vunpack.c.l.b16 %v7112
    %v7248 = vunpack.c.l.b16 %v7113
    %v7249 = vunpack.c.l.b16 %v7114
    %v7250 = vunpack.c.l.b16 %v7115
    %v7251 = vunpack.c.l.b16 %v7116
    %v7252 = vunpack.c.l.b16 %v7117
    %v7253 = vunpack.c.l.b16 %v7118
    %v7254 = vunpack.c.l.b16 %v7119
    %v7255 = vunpack.c.l.b16 %v7120
    %v7256 = vunpack.c.l.b16 %v7121
    %v7257 = vunpack.c.l.b16 %v7122
    %v7258 = vunpack.c.l.b16 %v7123
    %v7259 = vunpack.c.l.b16 %v7124
    %v7260 = vunpack.c.l.b16 %v7125
    %v7261 = vunpack.c.l.b16 %v7126
    %v7262 = vunpack.c.l.b16 %v7127
    %v7263 = vunpack.c.l.b16 %v7128
    %v7264 = vunpack.c.l.b16 %v7129
    %v7265 = vunpack.c.l.b16 %v7130
    %v7266 = vunpack.c.l.b16 %v7131
    %v7267 = vunpack.c.l.b16 %v7132
    %v7268 = vunpack.c.l.b16 %v7133
    %v7269 = vunpack.c.l.b16 %v7134
    %v7270 = vunpack.c.l.b16 %v7135
    %v7271 = vunpack.c.l.b16 %v7136
    %v7272 = vunpack.c.l.b16 %v7137
    %v7273 = vunpack.c.l.b16 %v7138
    %v7274 = vunpack.c.l.b16 %v7139
    %v7275 = vunpack.c.l.b16 %v7140
    %v7276 = vunpack.c.l.b16 %v7141
    %v7277 = vunpack.c.l.b16 %v7142
    %v7278 = vunpack.c.l.b16 %v7143
    %v7279 = vunpack.c.l.b16 %v7144
    %v7280 = vunpack.c.l.b16 %v7145
    %v7281 = vunpack.c.l.b16 %v7146
    %v7282 = vunpack.c.l.b16 %v7147
    %v7283 = vunpack.c.l.b16 %v7148
    %v7284 = vunpack.c.l.b16 %v7149
    %v7285 = vunpack.c.l.b16 %v7150
    %v7286 = vunpack.c.l.b16 %v7151
    %v7287 = vunpack.c.l.b16 %v7152
    %v7288 = vunpack.c.l.b16 %v7153
    %v7289 = vunpack.c.l.b16 %v7154
    %v7290 = vunpack.c.l.b16 %v7155
    %v7291 = vunpack.c.l.b16 %v7156
    %v7292 = vunpack.c.l.b16 %v7157
    %v7293 = vunpack.c.l.b16 %v7158
    %v7294 = vunpack.c.l.b16 %v7159
    %v7295 = vunpack.c.l.b16 %v7160
    %v7296 = vunpack.c.l.b16 %v7161
    %v7297 = vunpack.c.l.b16 %v7162
    %v7298 = vunpack.c.l.b16 %v7163
    %v7299 = vunpack.c.l.b16 %v7164
    %v7300 = vunpack.c.l.b16 %v7165
    %v7301 = vpack.c.b16 %v7238, %v7237
    %v7302 = vpack.c.b16 %v7240, %v7239
    %v7303 = vpack.c.b16 %v7242, %v7241
    %v7304 = vpack.c.b16 %v7244, %v7243
    %v7305 = vpack.c.b16 %v7246, %v7245
    %v7306 = vpack.c.b16 %v7248, %v7247
    %v7307 = vpack.c.b16 %v7250, %v7249
    %v7308 = vpack.c.b16 %v7252, %v7251
    %v7309 = vpack.c.b16 %v7254, %v7253
    %v7310 = vpack.c.b16 %v7256, %v7255
    %v7311 = vpack.c.b16 %v7258, %v7257
    %v7312 = vpack.c.b16 %v7260, %v7259
    %v7313 = vpack.c.b16 %v7262, %v7261
    %v7314 = vpack.c.b16 %v7264, %v7263
    %v7315 = vpack.c.b16 %v7266, %v7265
    %v7316 = vpack.c.b16 %v7268, %v7267
    %v7317 = vpack.c.b16 %v7270, %v7269
    %v7318 = vpack.c.b16 %v7272, %v7271
    %v7319 = vpack.c.b16 %v7274, %v7273
    %v7320 = vpack.c.b16 %v7276, %v7275
    %v7321 = vpack.c.b16 %v7278, %v7277
    %v7322 = vpack.c.b16 %v7280, %v7279
    %v7323 = vpack.c.b16 %v7282, %v7281
    %v7324 = vpack.c.b16 %v7284, %v7283
    %v7325 = vpack.c.b16 %v7286, %v7285
    %v7326 = vpack.c.b16 %v7288, %v7287
    %v7327 = vpack.c.b16 %v7290, %v7289
    %v7328 = vpack.c.b16 %v7292, %v7291
    %v7329 = vpack.c.b16 %v7294, %v7293
    %v7330 = vpack.c.b16 %v7296, %v7295
    %v7331 = vpack.c.b16 %v7298, %v7297
    %v7332 = vpack.c.b16 %v7300, %v7299
    %7365 = vmatprep.subr.bf16.mxu0 0
    %7366 = vmatpush1.bf16.msra.mxu0 %v7308
    %7367 = vmatprep.subr.bf16.mxu0 0
    %7368 = vmatpush1.bf16.msra.mxu0 %v7307
    %7369 = vmatprep.subr.bf16.mxu0 0
    %7370 = vmatpush1.bf16.msra.mxu0 %v7306
    %7371 = vmatprep.subr.bf16.mxu0 0
    %7372 = vmatpush1.bf16.msra.mxu0 %v7305
    %7373 = vmatprep.subr.bf16.mxu0 0
    %7374 = vmatpush1.bf16.msra.mxu0 %v7304
    %7375 = vmatprep.subr.bf16.mxu0 0
    %7376 = vmatpush1.bf16.msra.mxu0 %v7303
    %7377 = vmatprep.subr.bf16.mxu0 0
    %7378 = vmatpush1.bf16.msra.mxu0 %v7302
    %7379 = vmatprep.subr.bf16.mxu0 0
    %7380 = vmatpush1.bf16.msra.mxu0 %v7301
    %7381 = vmatprep.subr.bf16.mxu0 0
    %7382 = vmatpush2.bf16.msra.mxu0 %v7316
    %7383 = vmatprep.subr.bf16.mxu0 0
    %7384 = vmatpush2.bf16.msra.mxu0 %v7315
    %7385 = vmatprep.subr.bf16.mxu0 0
    %7386 = vmatpush2.bf16.msra.mxu0 %v7314
    %7387 = vmatprep.subr.bf16.mxu0 0
    %7388 = vmatpush2.bf16.msra.mxu0 %v7313
    %7389 = vmatprep.subr.bf16.mxu0 0
    %7390 = vmatpush2.bf16.msra.mxu0 %v7312
    %7391 = vmatprep.subr.bf16.mxu0 0
    %7392 = vmatpush2.bf16.msra.mxu0 %v7311
    %7393 = vmatprep.subr.bf16.mxu0 0
    %7394 = vmatpush2.bf16.msra.mxu0 %v7310
    %7395 = vmatprep.subr.bf16.mxu0 0
    %7396 = vmatpush2.bf16.msra.mxu0 %v7309
    %7397 = vmatprep.mubr.bf16.mxu0 %v7099
    %7398 = vmatmul.mubr.bf16.gmra.mxu0 %v7098
    %v7399 = vpop.f32.mrf.mxu0
    %v7400 = vadd.f32 %v7171, %v7399
    %v7401 = vpop.f32.mrf.mxu0
    %v7402 = vpop.f32.mrf.mxu0
    %v7403 = vpop.f32.mrf.mxu0
    %7404 = vdwg.mxu0
    %7405 = vmatprep.subr.bf16.mxu0 0
    %7406 = vmatpush1.bf16.msra.mxu0 %v7324
    %7407 = vmatprep.subr.bf16.mxu0 0
    %7408 = vmatpush1.bf16.msra.mxu0 %v7323
    %7409 = vmatprep.subr.bf16.mxu0 0
    %7410 = vmatpush1.bf16.msra.mxu0 %v7322
    %7411 = vmatprep.subr.bf16.mxu0 0
    %7412 = vmatpush1.bf16.msra.mxu0 %v7321
    %7413 = vmatprep.subr.bf16.mxu0 0
    %7414 = vmatpush1.bf16.msra.mxu0 %v7320
    %7415 = vmatprep.subr.bf16.mxu0 0
    %7416 = vmatpush1.bf16.msra.mxu0 %v7319
    %7417 = vmatprep.subr.bf16.mxu0 0
    %7418 = vmatpush1.bf16.msra.mxu0 %v7318
    %7419 = vmatprep.subr.bf16.mxu0 0
    %7420 = vmatpush1.bf16.msra.mxu0 %v7317
    %7421 = vmatprep.subr.bf16.mxu0 0
    %7422 = vmatpush2.bf16.msra.mxu0 %v7332
    %7423 = vmatprep.subr.bf16.mxu0 0
    %7424 = vmatpush2.bf16.msra.mxu0 %v7331
    %7425 = vmatprep.subr.bf16.mxu0 0
    %7426 = vmatpush2.bf16.msra.mxu0 %v7330
    %7427 = vmatprep.subr.bf16.mxu0 0
    %7428 = vmatpush2.bf16.msra.mxu0 %v7329
    %7429 = vmatprep.subr.bf16.mxu0 0
    %7430 = vmatpush2.bf16.msra.mxu0 %v7328
    %7431 = vmatprep.subr.bf16.mxu0 0
    %7432 = vmatpush2.bf16.msra.mxu0 %v7327
    %7433 = vmatprep.subr.bf16.mxu0 0
    %7434 = vmatpush2.bf16.msra.mxu0 %v7326
    %7435 = vmatprep.subr.bf16.mxu0 0
    %7436 = vmatpush2.bf16.msra.mxu0 %v7325
    %7437 = vmatprep.mubr.bf16.mxu0 %v7101
    %7438 = vmatmul.mubr.bf16.gmra.mxu0 %v7100
    %v7439 = vpop.f32.mrf.mxu0
    %v7440 = vadd.f32 %v7400, %v7439
    %v7441 = vpop.f32.mrf.mxu0
    %v7442 = vpop.f32.mrf.mxu0
    %v7443 = vpop.f32.mrf.mxu0
    %7444 = vdwg.mxu0
    %7445 = vst [vmem:[#allocation8] sm:$0x3] %v7440
    // Predicated region
    $region46: #{_lambda_.1} parent=1 // pred_check
      _
    $region47: #{_lambda_.1} parent=1 // pred_check_branch
      %7447 = sbr.rel (0) target = $region49
    $region48: #{_lambda_.1} parent=1 // pred_region
      %s7449 = ssub.s32 32, 32
      %7450 = vsyncadd [#allocation4], %s7449
      %s7452 = sshll.u32 [#allocation8], 4
      %s7453 = int_to_ptr.vmem [resolvable:$true] %s7452
      %7455 = dma.vmem_to_hbm [thread:$0]  %s7453, 32, %s8, [#allocation4]
    $region49: #{_lambda_.1} parent=1 // pred_fallthru
      _
    // Predicated region
    $region50: #{_lambda_.1} parent=1 // pred_check
      _
    $region51: #{_lambda_.1} parent=1 // pred_check_branch
      %7457 = sbr.rel (0) target = $region53
    $region52: #{_lambda_.1} parent=1 // pred_region
      %7458 = dma.done [#allocation4], 32
    $region53: #{_lambda_.1} parent=1 // pred_fallthru
      _
    %7459 = vsyncpa [#allocation3], 1
    %7460 = vsyncpa [#allocation6], 1
    %7461 = vsyncpa [#allocation4], 1

</llo_original>
